<compile_context>
chip_gen: v6e
topology: v6e:2x2x1
jax: 0.10.0
libtpu: 0.0.40
codegen_flags: <defaults>
</compile_context>

<pallas_src>
import functools

import jax
import jax.numpy as jnp
from jax.experimental import pallas as pl
from jax.experimental.pallas import tpu as pltpu

# Small synthetic hyper-parameters consistent with the module's forward.
N_OBJ = 4      # num_object (number of detected objects fed to the GGNN)
C = 8          # num_obj_cls
H = 32         # hidden_dim
D_OUT = 32     # output_dim
T = 3          # time_step_num


def _round_up(x, m):
    return ((x + m - 1) // m) * m


def _wslab_layout(n):
    """Static sublane-row offsets inside the 32-lane weight/constant slab."""
    nc = n * C
    names = ["w3t", "w3b", "w4t", "w4b", "w5t", "w5b", "u3", "u5", "wout_h", "wout_x"]
    offs, r = {}, 0
    for nm in names:
        offs[nm] = r
        r += H
    offs["K"] = r;    r += 2 * nc               # folded message constant (2*N*C, N*C)
    offs["sel"] = r;  r += _round_up(n, 8)      # per-object row-sum selector (n, N*C)
    offs["bias"] = r; r += 8                    # rows: bz, br, bh, bout (+ zero pad)
    return offs, r


# ----------------------------------------------------------------------------
# Fused kernel: T GGNN steps + fc_output + ReLU + fc_obj_cls, all VMEM resident.
# ----------------------------------------------------------------------------
def _ggnn_obj_kernel(n, time_steps, x_ref, rep_ref, ws_ref, cs_ref, gs_ref, out_ref):
    f32 = jnp.float32
    nc = n * C
    offs, _ = _wslab_layout(n)

    def wrow(name, rows):
        o = offs[name]
        return ws_ref[o:o + rows, :]

    x = x_ref[...]                            # (n, H)      per-instance input
    rep = rep_ref[...]                        # (n*C, n)    kron(I_n, ones(C,1))

    # 32-lane slab slices (all static, 8-aligned sublane offsets).
    w3t = wrow("w3t", H); w3b = wrow("w3b", H)
    w4t = wrow("w4t", H); w4b = wrow("w4b", H)
    w5t = wrow("w5t", H); w5b = wrow("w5b", H)
    u3 = wrow("u3", H);   u5 = wrow("u5", H)
    wout_h = wrow("wout_h", H)
    wout_x = wrow("wout_x", H)
    kmsg = wrow("K", 2 * nc)                  # (2*n*C, n*C) folded message operator
    sel = wrow("sel", n)                      # (n, n*C)
    bo = offs["bias"]
    bz = ws_ref[bo + 0:bo + 1, :]             # (1, H)  b3w + bu3
    br = ws_ref[bo + 1:bo + 2, :]             # (1, H)  b4w + bu3 (torch reuses fc_eq3_u)
    bh = ws_ref[bo + 2:bo + 3, :]             # (1, H)  b5w + bu5
    bout = ws_ref[bo + 3:bo + 4, :]           # (1, D_OUT)

    # 64-lane classifier slab.
    wcat = cs_ref[0:D_OUT, :]                 # (D_OUT, C*C)  regrouped fc_obj_cls weight
    cmask = cs_ref[D_OUT:D_OUT + nc, :]       # (n*C, C*C)    0/1 per-row class mask

    # 8-lane slab: gather matrix + classifier bias.
    gmat = gs_ref[0:C * C, :]                 # (C*C, C)
    bcls = gs_ref[C * C:C * C + 1, :]         # (1, C)

    dot = functools.partial(jnp.dot, preferred_element_type=f32)

    # x_rep[i*C + c] = x[i]   (torch: input_ggnn.repeat(1, C).view(N*C, H))
    x_rep = dot(rep, x)                       # (n*C, H)
    hidden = x_rep

    # Loop-invariant half of fc_output: x_rep @ wout[H:] + bout.
    out_x = dot(x_rep, wout_x) + bout         # (n*C, D_OUT)

    for _ in range(time_steps):
        # Single MXU push replaces hidden_sum + tile + diff + message matmuls.
        msgs = dot(kmsg, hidden)              # (2*n*C, H)
        a1 = msgs[0:nc]                       # kron(I,M^T)(hidden_sum - hidden_i)
        a2 = msgs[nc:2 * nc]                  # kron(I,M)  (hidden_sum - hidden_i)

        hu3 = dot(hidden, u3)                 # shared by z and r gates (torch reuses fc_eq3_u)
        z_av = dot(a1, w3t) + dot(a2, w3b)    # av @ W == a1 @ W_top + a2 @ W_bot
        r_av = dot(a1, w4t) + dot(a2, w4b)
        h_av = dot(a1, w5t) + dot(a2, w5b)

        zv = jax.nn.sigmoid(z_av + hu3 + bz)
        rv = jax.nn.sigmoid(r_av + hu3 + br)
        hv = jnp.tanh(h_av + dot(rv * hidden, u5) + bh)
        hidden = hidden + zv * (hv - hidden)  # (1 - zv) * hidden + zv * hv

    # fc_output + ReLU (lane concat eliminated via split wout; x-term hoisted above).
    feats = jnp.maximum(dot(hidden, wout_h) + out_x, 0.0)    # (n*C, D_OUT)

    # Fused fc_obj_cls:  dists[i, j] = sum_{c,d} feats[i*C+c, d] * wcls[c*D_OUT+d, j] + bcls[j]
    # implemented as 2 matmuls + 1 mask-mul (no reshape, no per-class loop).
    z = dot(feats, wcat)                      # (n*C, C*C)
    zg = dot(z * cmask, gmat)                 # (n*C, C)
    out_ref[...] = dot(sel, zg) + bcls        # (n, C)


# ----------------------------------------------------------------------------
# Wrapper: batched over instances on a parallel grid axis; constants stay resident.
# ----------------------------------------------------------------------------
def ggnn_obj_forward(xs, kp):
    b, n, h = xs.shape
    assert h == H
    kernel = functools.partial(_ggnn_obj_kernel, n, T)

    def const_spec(arr):
        return pl.BlockSpec(arr.shape, lambda i: (0, 0))

    return pl.pallas_call(
        kernel,
        out_shape=jax.ShapeDtypeStruct((b, n, C), jnp.float32),
        grid=(b,),
        in_specs=[
            pl.BlockSpec((None, n, H), lambda i: (i, 0, 0)),   # per-instance x block
            const_spec(kp["rep"]),
            const_spec(kp["wslab"]),
            const_spec(kp["cslab"]),
            const_spec(kp["gslab"]),
        ],
        out_specs=pl.BlockSpec((None, n, C), lambda i: (i, 0, 0)),
        compiler_params=pltpu.CompilerParams(dimension_semantics=("parallel",)),
    )(xs, kp["rep"], kp["wslab"], kp["cslab"], kp["gslab"])


# ----------------------------------------------------------------------------
# Deterministic raw parameter init (shapes from GGNNObj.__init__).
# ----------------------------------------------------------------------------
def init_params(key):
    ks = jax.random.split(key, 10)

    def lin(k, fin, fout):
        kw, kb = jax.random.split(k)
        bound = 1.0 / jnp.sqrt(fin)
        w = jax.random.uniform(kw, (fin, fout), jnp.float32, -bound, bound)  # transposed torch W
        b = jax.random.uniform(kb, (1, fout), jnp.float32, -bound, bound)
        return w, b

    # Stand-in for prior obj_matrix.npy (row-normalized, deterministic).
    m = jax.random.uniform(ks[0], (C, C), jnp.float32, 0.0, 1.0)
    matrix = m / jnp.sum(m, axis=1, keepdims=True)

    w3w, b3w = lin(ks[1], 2 * H, H)          # fc_eq3_w
    u3, bu3 = lin(ks[2], H, H)               # fc_eq3_u
    w4w, b4w = lin(ks[3], 2 * H, H)          # fc_eq4_w
    u4, bu4 = lin(ks[4], H, H)               # fc_eq4_u (defined in __init__, unused in forward)
    w5w, b5w = lin(ks[5], 2 * H, H)          # fc_eq5_w
    u5, bu5 = lin(ks[6], H, H)               # fc_eq5_u
    wout, bout = lin(ks[7], 2 * H, D_OUT)    # fc_output
    wcls, bcls = lin(ks[8], C * D_OUT, C)    # fc_obj_cls

    return dict(matrix=matrix,
                w3w=w3w, b3w=b3w, u3=u3, bu3=bu3,
                w4w=w4w, b4w=b4w, u4=u4, bu4=bu4,
                w5w=w5w, b5w=b5w, u5=u5, bu5=bu5,
                wout=wout, bout=bout, wcls=wcls, bcls=bcls)


# ----------------------------------------------------------------------------
# One-time derivation of kernel-ready constant slabs (hoisted out of the forward).
# ----------------------------------------------------------------------------
def prepare_kernel_params(p, n):
    f32 = jnp.float32
    nc = n * C
    assert nc == H, "slab packing below assumes num_object * C == hidden_dim (demo shapes)"
    assert n <= C

    def pad_rows(a, rows):
        return jnp.pad(a, ((0, rows - a.shape[0]), (0, 0)))

    eye_n = jnp.eye(n, dtype=f32)
    big_msg = jnp.concatenate(
        [jnp.kron(eye_n, p["matrix"].T), jnp.kron(eye_n, p["matrix"])], axis=0)   # (2nc, nc)
    # Fold hidden_sum/diff into the message constant:  msgs = K @ hidden.
    s_sum = jnp.kron(jnp.ones((n, n), f32), jnp.eye(C, dtype=f32))                # (nc, nc)
    kmsg = big_msg @ (s_sum - jnp.eye(nc, dtype=f32))                             # (2nc, nc)

    rep = jnp.kron(eye_n, jnp.ones((C, 1), f32))     # (nc, n)   x -> x_rep
    sel = rep.T                                      # (n, nc)   per-object row sum

    # Pre-summed biases (torch forward reuses fc_eq3_u's bias for the r gate).
    bz = p["b3w"] + p["bu3"]
    br = p["b4w"] + p["bu3"]
    bh = p["b5w"] + p["bu5"]
    bias_rows = pad_rows(jnp.concatenate([bz, br, bh, p["bout"]], axis=0), 8)

    offs, total = _wslab_layout(n)
    wslab = jnp.concatenate([
        p["w3w"][:H], p["w3w"][H:],
        p["w4w"][:H], p["w4w"][H:],
        p["w5w"][:H], p["w5w"][H:],
        p["u3"], p["u5"],
        p["wout"][:H], p["wout"][H:],
        kmsg,
        pad_rows(sel, _round_up(n, 8)),
        bias_rows,
    ], axis=0)
    assert wslab.shape == (total, H)

    # Classifier constants:  Wcat[d, c*C + j] = wcls[c*D_OUT + d, j];
    # mask[i, c*C + j] = [i % C == c];  G[k, j] = [k % C == j].
    wcat = jnp.concatenate([p["wcls"][c * D_OUT:(c + 1) * D_OUT, :] for c in range(C)], axis=1)
    row_cls = jnp.arange(nc) % C
    col_cls = jnp.arange(C * C) // C
    cmask = (row_cls[:, None] == col_cls[None, :]).astype(f32)        # (nc, C*C)
    cslab = jnp.concatenate([wcat, cmask], axis=0)                    # (D_OUT + nc, C*C)

    gmat = (jnp.arange(C * C)[:, None] % C == jnp.arange(C)[None, :]).astype(f32)  # (C*C, C)
    gslab = pad_rows(jnp.concatenate([gmat, p["bcls"]], axis=0), _round_up(C * C + 1, 8))

    return dict(rep=rep, wslab=wslab, cslab=cslab, gslab=gslab)


# ----------------------------------------------------------------------------
# Pure-JAX reference (literal transcription of the torch forward), per instance.
# ----------------------------------------------------------------------------
def reference_forward(x, p):
    n = x.shape[0]
    mat = p["matrix"]
    hidden = jnp.repeat(x, C, axis=0).reshape(n, C, H)
    for _ in range(T):
        hs = hidden.sum(0)
        a1 = jnp.concatenate([mat.T @ (hs - hidden[i]) for i in range(n)], axis=0)
        a2 = jnp.concatenate([mat @ (hs - hidden[i]) for i in range(n)], axis=0)
        av = jnp.concatenate([a1, a2], axis=1)
        h2 = hidden.reshape(n * C, H)
        zv = jax.nn.sigmoid(av @ p["w3w"] + p["b3w"] + h2 @ p["u3"] + p["bu3"])
        rv = jax.nn.sigmoid(av @ p["w4w"] + p["b4w"] + h2 @ p["u3"] + p["bu3"])
        hv = jnp.tanh(av @ p["w5w"] + p["b5w"] + (rv * h2) @ p["u5"] + p["bu5"])
        h2 = (1.0 - zv) * h2 + zv * hv
        hidden = h2.reshape(n, C, H)
    cat = jnp.concatenate([hidden.reshape(n * C, H), jnp.repeat(x, C, axis=0)], axis=1)
    out = jax.nn.relu(cat @ p["wout"] + p["bout"])
    return out.reshape(n, C * D_OUT) @ p["wcls"] + p["bcls"]


if __name__ == "__main__":
    key = jax.random.PRNGKey(0)
    kx, kw = jax.random.split(key)
    B = 2                                                   # batch of instances on the grid axis
    xs = jax.random.normal(kx, (B, N_OBJ, H), jnp.float32)

    raw = init_params(kw)
    kparams = prepare_kernel_params(raw, N_OBJ)             # constants built once, outside jit

    fwd = jax.jit(ggnn_obj_forward)
    dists = jax.block_until_ready(fwd(xs, kparams))
    assert dists.shape == (B, N_OBJ, C)

    for b in range(B):
        ref = reference_forward(xs[b], raw)
        err = float(jnp.max(jnp.abs(dists[b] - ref)))
        assert jnp.allclose(dists[b], ref, atol=1e-4, rtol=1e-4), ("mismatch", b, err)
    print("KERNEL_OK")
</pallas_src>

<mosaic_0001>
module attributes {stable_mosaic.version = 11 : i64} {
  func.func @_ggnn_obj_kernel(%arg0: i32, %arg1: memref<1x4x32xf32, #tpu.memory_space<vmem>>, %arg2: memref<32x4xf32, #tpu.memory_space<vmem>>, %arg3: memref<400x32xf32, #tpu.memory_space<vmem>>, %arg4: memref<64x64xf32, #tpu.memory_space<vmem>>, %arg5: memref<72x8xf32, #tpu.memory_space<vmem>>, %arg6: memref<1x4x8xf32, #tpu.memory_space<vmem>>) attributes {dimension_semantics = [#tpu.dimension_semantics<parallel>], iteration_bounds = array<i64: 2>, scalar_prefetch = 0 : i64, scratch_operands = 0 : i64, tpu.core_type = #tpu.core_type<tc>, window_params = [{transform_indices = @transform_0, window_bounds = array<i64: 1, 4, 32>}, {pipeline_mode = #tpu.pipeline_mode<synchronous>, transform_indices = @transform_1, window_bounds = array<i64: 32, 4>}, {pipeline_mode = #tpu.pipeline_mode<synchronous>, transform_indices = @transform_2, window_bounds = array<i64: 400, 32>}, {pipeline_mode = #tpu.pipeline_mode<synchronous>, transform_indices = @transform_3, window_bounds = array<i64: 64, 64>}, {pipeline_mode = #tpu.pipeline_mode<synchronous>, transform_indices = @transform_4, window_bounds = array<i64: 72, 8>}, {transform_indices = @transform_5, window_bounds = array<i64: 1, 4, 8>}]} {
    %c0 = arith.constant 0 : index
    %c0_0 = arith.constant 0 : index
    %c0_1 = arith.constant 0 : index
    %0 = vector.load %arg1[%c0, %c0_0, %c0_1] : memref<1x4x32xf32, #tpu.memory_space<vmem>>, vector<1x4x32xf32>
    %1 = vector.shape_cast %0 : vector<1x4x32xf32> to vector<4x32xf32>
    %c0_2 = arith.constant 0 : index
    %c0_3 = arith.constant 0 : index
    %2 = vector.load %arg2[%c0_2, %c0_3] : memref<32x4xf32, #tpu.memory_space<vmem>>, vector<32x4xf32>
    %c0_4 = arith.constant 0 : index
    %c0_5 = arith.constant 0 : index
    %3 = vector.load %arg3[%c0_4, %c0_5] : memref<400x32xf32, #tpu.memory_space<vmem>>, vector<32x32xf32>
    %c32 = arith.constant 32 : index
    %c0_6 = arith.constant 0 : index
    %4 = vector.load %arg3[%c32, %c0_6] : memref<400x32xf32, #tpu.memory_space<vmem>>, vector<32x32xf32>
    %c64 = arith.constant 64 : index
    %c0_7 = arith.constant 0 : index
    %5 = vector.load %arg3[%c64, %c0_7] : memref<400x32xf32, #tpu.memory_space<vmem>>, vector<32x32xf32>
    %c96 = arith.constant 96 : index
    %c0_8 = arith.constant 0 : index
    %6 = vector.load %arg3[%c96, %c0_8] : memref<400x32xf32, #tpu.memory_space<vmem>>, vector<32x32xf32>
    %c128 = arith.constant 128 : index
    %c0_9 = arith.constant 0 : index
    %7 = vector.load %arg3[%c128, %c0_9] : memref<400x32xf32, #tpu.memory_space<vmem>>, vector<32x32xf32>
    %c160 = arith.constant 160 : index
    %c0_10 = arith.constant 0 : index
    %8 = vector.load %arg3[%c160, %c0_10] : memref<400x32xf32, #tpu.memory_space<vmem>>, vector<32x32xf32>
    %c192 = arith.constant 192 : index
    %c0_11 = arith.constant 0 : index
    %9 = vector.load %arg3[%c192, %c0_11] : memref<400x32xf32, #tpu.memory_space<vmem>>, vector<32x32xf32>
    %c224 = arith.constant 224 : index
    %c0_12 = arith.constant 0 : index
    %10 = vector.load %arg3[%c224, %c0_12] : memref<400x32xf32, #tpu.memory_space<vmem>>, vector<32x32xf32>
    %c256 = arith.constant 256 : index
    %c0_13 = arith.constant 0 : index
    %11 = vector.load %arg3[%c256, %c0_13] : memref<400x32xf32, #tpu.memory_space<vmem>>, vector<32x32xf32>
    %c288 = arith.constant 288 : index
    %c0_14 = arith.constant 0 : index
    %12 = vector.load %arg3[%c288, %c0_14] : memref<400x32xf32, #tpu.memory_space<vmem>>, vector<32x32xf32>
    %c320 = arith.constant 320 : index
    %c0_15 = arith.constant 0 : index
    %13 = vector.load %arg3[%c320, %c0_15] : memref<400x32xf32, #tpu.memory_space<vmem>>, vector<64x32xf32>
    %c384 = arith.constant 384 : index
    %c0_16 = arith.constant 0 : index
    %14 = vector.load %arg3[%c384, %c0_16] : memref<400x32xf32, #tpu.memory_space<vmem>>, vector<4x32xf32>
    %c392 = arith.constant 392 : index
    %c0_17 = arith.constant 0 : index
    %15 = vector.load %arg3[%c392, %c0_17] : memref<400x32xf32, #tpu.memory_space<vmem>>, vector<1x32xf32>
    %c393 = arith.constant 393 : index
    %c0_18 = arith.constant 0 : index
    %16 = vector.load %arg3[%c393, %c0_18] : memref<400x32xf32, #tpu.memory_space<vmem>>, vector<1x32xf32>
    %c394 = arith.constant 394 : index
    %c0_19 = arith.constant 0 : index
    %17 = vector.load %arg3[%c394, %c0_19] : memref<400x32xf32, #tpu.memory_space<vmem>>, vector<1x32xf32>
    %c395 = arith.constant 395 : index
    %c0_20 = arith.constant 0 : index
    %18 = vector.load %arg3[%c395, %c0_20] : memref<400x32xf32, #tpu.memory_space<vmem>>, vector<1x32xf32>
    %c0_21 = arith.constant 0 : index
    %c0_22 = arith.constant 0 : index
    %19 = vector.load %arg4[%c0_21, %c0_22] : memref<64x64xf32, #tpu.memory_space<vmem>>, vector<32x64xf32>
    %c32_23 = arith.constant 32 : index
    %c0_24 = arith.constant 0 : index
    %20 = vector.load %arg4[%c32_23, %c0_24] : memref<64x64xf32, #tpu.memory_space<vmem>>, vector<32x64xf32>
    %c0_25 = arith.constant 0 : index
    %c0_26 = arith.constant 0 : index
    %21 = vector.load %arg5[%c0_25, %c0_26] : memref<72x8xf32, #tpu.memory_space<vmem>>, vector<64x8xf32>
    %c64_27 = arith.constant 64 : index
    %c0_28 = arith.constant 0 : index
    %22 = vector.load %arg5[%c64_27, %c0_28] : memref<72x8xf32, #tpu.memory_space<vmem>>, vector<1x8xf32>
    %cst = arith.constant dense<0.000000e+00> : vector<32x32xf32>
    %23 = tpu.matmul %2, %1, %cst {dimension_numbers = #tpu.dot_dimension_numbers<[1], [0], [0], [1], [0, 0, 1, 1], [], []>} : vector<32x4xf32>, vector<4x32xf32>, vector<32x32xf32> -> vector<32x32xf32>
    %cst_29 = arith.constant dense<0.000000e+00> : vector<32x32xf32>
    %24 = tpu.matmul %23, %12, %cst_29 {dimension_numbers = #tpu.dot_dimension_numbers<[1], [0], [0], [1], [0, 0, 1, 1], [], []>} : vector<32x32xf32>, vector<32x32xf32>, vector<32x32xf32> -> vector<32x32xf32>
    %25 = vector.broadcast %18 : vector<1x32xf32> to vector<32x32xf32>
    %26 = arith.addf %24, %25 : vector<32x32xf32>
    %cst_30 = arith.constant dense<0.000000e+00> : vector<64x32xf32>
    %27 = tpu.matmul %13, %23, %cst_30 {dimension_numbers = #tpu.dot_dimension_numbers<[1], [0], [0], [1], [0, 0, 1, 1], [], []>} : vector<64x32xf32>, vector<32x32xf32>, vector<64x32xf32> -> vector<64x32xf32>
    %28 = vector.extract_strided_slice %27 {offsets = [0, 0], sizes = [32, 32], strides = [1, 1]} : vector<64x32xf32> to vector<32x32xf32>
    %29 = vector.extract_strided_slice %27 {offsets = [32, 0], sizes = [32, 32], strides = [1, 1]} : vector<64x32xf32> to vector<32x32xf32>
    %cst_31 = arith.constant dense<0.000000e+00> : vector<32x32xf32>
    %30 = tpu.matmul %23, %9, %cst_31 {dimension_numbers = #tpu.dot_dimension_numbers<[1], [0], [0], [1], [0, 0, 1, 1], [], []>} : vector<32x32xf32>, vector<32x32xf32>, vector<32x32xf32> -> vector<32x32xf32>
    %cst_32 = arith.constant dense<0.000000e+00> : vector<32x32xf32>
    %31 = tpu.matmul %28, %3, %cst_32 {dimension_numbers = #tpu.dot_dimension_numbers<[1], [0], [0], [1], [0, 0, 1, 1], [], []>} : vector<32x32xf32>, vector<32x32xf32>, vector<32x32xf32> -> vector<32x32xf32>
    %cst_33 = arith.constant dense<0.000000e+00> : vector<32x32xf32>
    %32 = tpu.matmul %29, %4, %cst_33 {dimension_numbers = #tpu.dot_dimension_numbers<[1], [0], [0], [1], [0, 0, 1, 1], [], []>} : vector<32x32xf32>, vector<32x32xf32>, vector<32x32xf32> -> vector<32x32xf32>
    %33 = arith.addf %31, %32 : vector<32x32xf32>
    %cst_34 = arith.constant dense<0.000000e+00> : vector<32x32xf32>
    %34 = tpu.matmul %28, %5, %cst_34 {dimension_numbers = #tpu.dot_dimension_numbers<[1], [0], [0], [1], [0, 0, 1, 1], [], []>} : vector<32x32xf32>, vector<32x32xf32>, vector<32x32xf32> -> vector<32x32xf32>
    %cst_35 = arith.constant dense<0.000000e+00> : vector<32x32xf32>
    %35 = tpu.matmul %29, %6, %cst_35 {dimension_numbers = #tpu.dot_dimension_numbers<[1], [0], [0], [1], [0, 0, 1, 1], [], []>} : vector<32x32xf32>, vector<32x32xf32>, vector<32x32xf32> -> vector<32x32xf32>
    %36 = arith.addf %34, %35 : vector<32x32xf32>
    %cst_36 = arith.constant dense<0.000000e+00> : vector<32x32xf32>
    %37 = tpu.matmul %28, %7, %cst_36 {dimension_numbers = #tpu.dot_dimension_numbers<[1], [0], [0], [1], [0, 0, 1, 1], [], []>} : vector<32x32xf32>, vector<32x32xf32>, vector<32x32xf32> -> vector<32x32xf32>
    %cst_37 = arith.constant dense<0.000000e+00> : vector<32x32xf32>
    %38 = tpu.matmul %29, %8, %cst_37 {dimension_numbers = #tpu.dot_dimension_numbers<[1], [0], [0], [1], [0, 0, 1, 1], [], []>} : vector<32x32xf32>, vector<32x32xf32>, vector<32x32xf32> -> vector<32x32xf32>
    %39 = arith.addf %37, %38 : vector<32x32xf32>
    %40 = arith.addf %33, %30 : vector<32x32xf32>
    %41 = vector.broadcast %15 : vector<1x32xf32> to vector<32x32xf32>
    %42 = arith.addf %40, %41 : vector<32x32xf32>
    %43 = arith.negf %42 : vector<32x32xf32>
    %44 = math.exp %43 : vector<32x32xf32>
    %cst_38 = arith.constant 1.000000e+00 : f32
    %45 = vector.broadcast %cst_38 : f32 to vector<32x32xf32>
    %46 = arith.addf %45, %44 : vector<32x32xf32>
    %47 = arith.divf %45, %46 : vector<32x32xf32>
    %48 = arith.addf %36, %30 : vector<32x32xf32>
    %49 = vector.broadcast %16 : vector<1x32xf32> to vector<32x32xf32>
    %50 = arith.addf %48, %49 : vector<32x32xf32>
    %51 = arith.negf %50 : vector<32x32xf32>
    %52 = math.exp %51 : vector<32x32xf32>
    %cst_39 = arith.constant 1.000000e+00 : f32
    %53 = vector.broadcast %cst_39 : f32 to vector<32x32xf32>
    %54 = arith.addf %53, %52 : vector<32x32xf32>
    %55 = arith.divf %53, %54 : vector<32x32xf32>
    %56 = arith.mulf %55, %23 : vector<32x32xf32>
    %cst_40 = arith.constant dense<0.000000e+00> : vector<32x32xf32>
    %57 = tpu.matmul %56, %10, %cst_40 {dimension_numbers = #tpu.dot_dimension_numbers<[1], [0], [0], [1], [0, 0, 1, 1], [], []>} : vector<32x32xf32>, vector<32x32xf32>, vector<32x32xf32> -> vector<32x32xf32>
    %58 = arith.addf %39, %57 : vector<32x32xf32>
    %59 = vector.broadcast %17 : vector<1x32xf32> to vector<32x32xf32>
    %60 = arith.addf %58, %59 : vector<32x32xf32>
    %61 = math.tanh %60 : vector<32x32xf32>
    %62 = arith.subf %61, %23 : vector<32x32xf32>
    %63 = arith.mulf %47, %62 : vector<32x32xf32>
    %64 = arith.addf %23, %63 : vector<32x32xf32>
    %cst_41 = arith.constant dense<0.000000e+00> : vector<64x32xf32>
    %65 = tpu.matmul %13, %64, %cst_41 {dimension_numbers = #tpu.dot_dimension_numbers<[1], [0], [0], [1], [0, 0, 1, 1], [], []>} : vector<64x32xf32>, vector<32x32xf32>, vector<64x32xf32> -> vector<64x32xf32>
    %66 = vector.extract_strided_slice %65 {offsets = [0, 0], sizes = [32, 32], strides = [1, 1]} : vector<64x32xf32> to vector<32x32xf32>
    %67 = vector.extract_strided_slice %65 {offsets = [32, 0], sizes = [32, 32], strides = [1, 1]} : vector<64x32xf32> to vector<32x32xf32>
    %cst_42 = arith.constant dense<0.000000e+00> : vector<32x32xf32>
    %68 = tpu.matmul %64, %9, %cst_42 {dimension_numbers = #tpu.dot_dimension_numbers<[1], [0], [0], [1], [0, 0, 1, 1], [], []>} : vector<32x32xf32>, vector<32x32xf32>, vector<32x32xf32> -> vector<32x32xf32>
    %cst_43 = arith.constant dense<0.000000e+00> : vector<32x32xf32>
    %69 = tpu.matmul %66, %3, %cst_43 {dimension_numbers = #tpu.dot_dimension_numbers<[1], [0], [0], [1], [0, 0, 1, 1], [], []>} : vector<32x32xf32>, vector<32x32xf32>, vector<32x32xf32> -> vector<32x32xf32>
    %cst_44 = arith.constant dense<0.000000e+00> : vector<32x32xf32>
    %70 = tpu.matmul %67, %4, %cst_44 {dimension_numbers = #tpu.dot_dimension_numbers<[1], [0], [0], [1], [0, 0, 1, 1], [], []>} : vector<32x32xf32>, vector<32x32xf32>, vector<32x32xf32> -> vector<32x32xf32>
    %71 = arith.addf %69, %70 : vector<32x32xf32>
    %cst_45 = arith.constant dense<0.000000e+00> : vector<32x32xf32>
    %72 = tpu.matmul %66, %5, %cst_45 {dimension_numbers = #tpu.dot_dimension_numbers<[1], [0], [0], [1], [0, 0, 1, 1], [], []>} : vector<32x32xf32>, vector<32x32xf32>, vector<32x32xf32> -> vector<32x32xf32>
    %cst_46 = arith.constant dense<0.000000e+00> : vector<32x32xf32>
    %73 = tpu.matmul %67, %6, %cst_46 {dimension_numbers = #tpu.dot_dimension_numbers<[1], [0], [0], [1], [0, 0, 1, 1], [], []>} : vector<32x32xf32>, vector<32x32xf32>, vector<32x32xf32> -> vector<32x32xf32>
    %74 = arith.addf %72, %73 : vector<32x32xf32>
    %cst_47 = arith.constant dense<0.000000e+00> : vector<32x32xf32>
    %75 = tpu.matmul %66, %7, %cst_47 {dimension_numbers = #tpu.dot_dimension_numbers<[1], [0], [0], [1], [0, 0, 1, 1], [], []>} : vector<32x32xf32>, vector<32x32xf32>, vector<32x32xf32> -> vector<32x32xf32>
    %cst_48 = arith.constant dense<0.000000e+00> : vector<32x32xf32>
    %76 = tpu.matmul %67, %8, %cst_48 {dimension_numbers = #tpu.dot_dimension_numbers<[1], [0], [0], [1], [0, 0, 1, 1], [], []>} : vector<32x32xf32>, vector<32x32xf32>, vector<32x32xf32> -> vector<32x32xf32>
    %77 = arith.addf %75, %76 : vector<32x32xf32>
    %78 = arith.addf %71, %68 : vector<32x32xf32>
    %79 = vector.broadcast %15 : vector<1x32xf32> to vector<32x32xf32>
    %80 = arith.addf %78, %79 : vector<32x32xf32>
    %81 = arith.negf %80 : vector<32x32xf32>
    %82 = math.exp %81 : vector<32x32xf32>
    %cst_49 = arith.constant 1.000000e+00 : f32
    %83 = vector.broadcast %cst_49 : f32 to vector<32x32xf32>
    %84 = arith.addf %83, %82 : vector<32x32xf32>
    %85 = arith.divf %83, %84 : vector<32x32xf32>
    %86 = arith.addf %74, %68 : vector<32x32xf32>
    %87 = vector.broadcast %16 : vector<1x32xf32> to vector<32x32xf32>
    %88 = arith.addf %86, %87 : vector<32x32xf32>
    %89 = arith.negf %88 : vector<32x32xf32>
    %90 = math.exp %89 : vector<32x32xf32>
    %cst_50 = arith.constant 1.000000e+00 : f32
    %91 = vector.broadcast %cst_50 : f32 to vector<32x32xf32>
    %92 = arith.addf %91, %90 : vector<32x32xf32>
    %93 = arith.divf %91, %92 : vector<32x32xf32>
    %94 = arith.mulf %93, %64 : vector<32x32xf32>
    %cst_51 = arith.constant dense<0.000000e+00> : vector<32x32xf32>
    %95 = tpu.matmul %94, %10, %cst_51 {dimension_numbers = #tpu.dot_dimension_numbers<[1], [0], [0], [1], [0, 0, 1, 1], [], []>} : vector<32x32xf32>, vector<32x32xf32>, vector<32x32xf32> -> vector<32x32xf32>
    %96 = arith.addf %77, %95 : vector<32x32xf32>
    %97 = vector.broadcast %17 : vector<1x32xf32> to vector<32x32xf32>
    %98 = arith.addf %96, %97 : vector<32x32xf32>
    %99 = math.tanh %98 : vector<32x32xf32>
    %100 = arith.subf %99, %64 : vector<32x32xf32>
    %101 = arith.mulf %85, %100 : vector<32x32xf32>
    %102 = arith.addf %64, %101 : vector<32x32xf32>
    %cst_52 = arith.constant dense<0.000000e+00> : vector<64x32xf32>
    %103 = tpu.matmul %13, %102, %cst_52 {dimension_numbers = #tpu.dot_dimension_numbers<[1], [0], [0], [1], [0, 0, 1, 1], [], []>} : vector<64x32xf32>, vector<32x32xf32>, vector<64x32xf32> -> vector<64x32xf32>
    %104 = vector.extract_strided_slice %103 {offsets = [0, 0], sizes = [32, 32], strides = [1, 1]} : vector<64x32xf32> to vector<32x32xf32>
    %105 = vector.extract_strided_slice %103 {offsets = [32, 0], sizes = [32, 32], strides = [1, 1]} : vector<64x32xf32> to vector<32x32xf32>
    %cst_53 = arith.constant dense<0.000000e+00> : vector<32x32xf32>
    %106 = tpu.matmul %102, %9, %cst_53 {dimension_numbers = #tpu.dot_dimension_numbers<[1], [0], [0], [1], [0, 0, 1, 1], [], []>} : vector<32x32xf32>, vector<32x32xf32>, vector<32x32xf32> -> vector<32x32xf32>
    %cst_54 = arith.constant dense<0.000000e+00> : vector<32x32xf32>
    %107 = tpu.matmul %104, %3, %cst_54 {dimension_numbers = #tpu.dot_dimension_numbers<[1], [0], [0], [1], [0, 0, 1, 1], [], []>} : vector<32x32xf32>, vector<32x32xf32>, vector<32x32xf32> -> vector<32x32xf32>
    %cst_55 = arith.constant dense<0.000000e+00> : vector<32x32xf32>
    %108 = tpu.matmul %105, %4, %cst_55 {dimension_numbers = #tpu.dot_dimension_numbers<[1], [0], [0], [1], [0, 0, 1, 1], [], []>} : vector<32x32xf32>, vector<32x32xf32>, vector<32x32xf32> -> vector<32x32xf32>
    %109 = arith.addf %107, %108 : vector<32x32xf32>
    %cst_56 = arith.constant dense<0.000000e+00> : vector<32x32xf32>
    %110 = tpu.matmul %104, %5, %cst_56 {dimension_numbers = #tpu.dot_dimension_numbers<[1], [0], [0], [1], [0, 0, 1, 1], [], []>} : vector<32x32xf32>, vector<32x32xf32>, vector<32x32xf32> -> vector<32x32xf32>
    %cst_57 = arith.constant dense<0.000000e+00> : vector<32x32xf32>
    %111 = tpu.matmul %105, %6, %cst_57 {dimension_numbers = #tpu.dot_dimension_numbers<[1], [0], [0], [1], [0, 0, 1, 1], [], []>} : vector<32x32xf32>, vector<32x32xf32>, vector<32x32xf32> -> vector<32x32xf32>
    %112 = arith.addf %110, %111 : vector<32x32xf32>
    %cst_58 = arith.constant dense<0.000000e+00> : vector<32x32xf32>
    %113 = tpu.matmul %104, %7, %cst_58 {dimension_numbers = #tpu.dot_dimension_numbers<[1], [0], [0], [1], [0, 0, 1, 1], [], []>} : vector<32x32xf32>, vector<32x32xf32>, vector<32x32xf32> -> vector<32x32xf32>
    %cst_59 = arith.constant dense<0.000000e+00> : vector<32x32xf32>
    %114 = tpu.matmul %105, %8, %cst_59 {dimension_numbers = #tpu.dot_dimension_numbers<[1], [0], [0], [1], [0, 0, 1, 1], [], []>} : vector<32x32xf32>, vector<32x32xf32>, vector<32x32xf32> -> vector<32x32xf32>
    %115 = arith.addf %113, %114 : vector<32x32xf32>
    %116 = arith.addf %109, %106 : vector<32x32xf32>
    %117 = vector.broadcast %15 : vector<1x32xf32> to vector<32x32xf32>
    %118 = arith.addf %116, %117 : vector<32x32xf32>
    %119 = arith.negf %118 : vector<32x32xf32>
    %120 = math.exp %119 : vector<32x32xf32>
    %cst_60 = arith.constant 1.000000e+00 : f32
    %121 = vector.broadcast %cst_60 : f32 to vector<32x32xf32>
    %122 = arith.addf %121, %120 : vector<32x32xf32>
    %123 = arith.divf %121, %122 : vector<32x32xf32>
    %124 = arith.addf %112, %106 : vector<32x32xf32>
    %125 = vector.broadcast %16 : vector<1x32xf32> to vector<32x32xf32>
    %126 = arith.addf %124, %125 : vector<32x32xf32>
    %127 = arith.negf %126 : vector<32x32xf32>
    %128 = math.exp %127 : vector<32x32xf32>
    %cst_61 = arith.constant 1.000000e+00 : f32
    %129 = vector.broadcast %cst_61 : f32 to vector<32x32xf32>
    %130 = arith.addf %129, %128 : vector<32x32xf32>
    %131 = arith.divf %129, %130 : vector<32x32xf32>
    %132 = arith.mulf %131, %102 : vector<32x32xf32>
    %cst_62 = arith.constant dense<0.000000e+00> : vector<32x32xf32>
    %133 = tpu.matmul %132, %10, %cst_62 {dimension_numbers = #tpu.dot_dimension_numbers<[1], [0], [0], [1], [0, 0, 1, 1], [], []>} : vector<32x32xf32>, vector<32x32xf32>, vector<32x32xf32> -> vector<32x32xf32>
    %134 = arith.addf %115, %133 : vector<32x32xf32>
    %135 = vector.broadcast %17 : vector<1x32xf32> to vector<32x32xf32>
    %136 = arith.addf %134, %135 : vector<32x32xf32>
    %137 = math.tanh %136 : vector<32x32xf32>
    %138 = arith.subf %137, %102 : vector<32x32xf32>
    %139 = arith.mulf %123, %138 : vector<32x32xf32>
    %140 = arith.addf %102, %139 : vector<32x32xf32>
    %cst_63 = arith.constant dense<0.000000e+00> : vector<32x32xf32>
    %141 = tpu.matmul %140, %11, %cst_63 {dimension_numbers = #tpu.dot_dimension_numbers<[1], [0], [0], [1], [0, 0, 1, 1], [], []>} : vector<32x32xf32>, vector<32x32xf32>, vector<32x32xf32> -> vector<32x32xf32>
    %142 = arith.addf %141, %26 : vector<32x32xf32>
    %cst_64 = arith.constant 0.000000e+00 : f32
    %143 = vector.broadcast %cst_64 : f32 to vector<32x32xf32>
    %144 = arith.maximumf %142, %143 : vector<32x32xf32>
    %cst_65 = arith.constant dense<0.000000e+00> : vector<32x64xf32>
    %145 = tpu.matmul %144, %19, %cst_65 {dimension_numbers = #tpu.dot_dimension_numbers<[1], [0], [0], [1], [0, 0, 1, 1], [], []>} : vector<32x32xf32>, vector<32x64xf32>, vector<32x64xf32> -> vector<32x64xf32>
    %146 = arith.mulf %145, %20 : vector<32x64xf32>
    %cst_66 = arith.constant dense<0.000000e+00> : vector<32x8xf32>
    %147 = tpu.matmul %146, %21, %cst_66 {dimension_numbers = #tpu.dot_dimension_numbers<[1], [0], [0], [1], [0, 0, 1, 1], [], []>} : vector<32x64xf32>, vector<64x8xf32>, vector<32x8xf32> -> vector<32x8xf32>
    %cst_67 = arith.constant dense<0.000000e+00> : vector<4x8xf32>
    %148 = tpu.matmul %14, %147, %cst_67 {dimension_numbers = #tpu.dot_dimension_numbers<[1], [0], [0], [1], [0, 0, 1, 1], [], []>} : vector<4x32xf32>, vector<32x8xf32>, vector<4x8xf32> -> vector<4x8xf32>
    %149 = vector.broadcast %22 : vector<1x8xf32> to vector<4x8xf32>
    %150 = arith.addf %148, %149 : vector<4x8xf32>
    %c0_68 = arith.constant 0 : index
    %c0_69 = arith.constant 0 : index
    %c0_70 = arith.constant 0 : index
    %151 = vector.load %arg6[%c0_68, %c0_69, %c0_70] : memref<1x4x8xf32, #tpu.memory_space<vmem>>, vector<1x4x8xf32>
    %152 = vector.shape_cast %151 : vector<1x4x8xf32> to vector<4x8xf32>
    %153 = vector.shape_cast %150 : vector<4x8xf32> to vector<1x4x8xf32>
    tpu.vector_store %arg6[%c0_68, %c0_69, %c0_70], %153 {strides = array<i32>} : memref<1x4x8xf32, #tpu.memory_space<vmem>>, vector<1x4x8xf32>,
    return
  }
  func.func @transform_0(%arg0: i32) -> (i32, i32, i32) {
    %c0_i32 = arith.constant 0 : i32
    %c0_i32_0 = arith.constant 0 : i32
    %c0_i32_1 = arith.constant 0 : i32
    return %arg0, %c0_i32, %c0_i32_0 : i32, i32, i32
  }
  func.func @transform_1(%arg0: i32) -> (i32, i32) {
    %c0_i32 = arith.constant 0 : i32
    %c0_i32_0 = arith.constant 0 : i32
    %c0_i32_1 = arith.constant 0 : i32
    return %c0_i32, %c0_i32_0 : i32, i32
  }
  func.func @transform_2(%arg0: i32) -> (i32, i32) {
    %c0_i32 = arith.constant 0 : i32
    %c0_i32_0 = arith.constant 0 : i32
    %c0_i32_1 = arith.constant 0 : i32
    return %c0_i32, %c0_i32_0 : i32, i32
  }
  func.func @transform_3(%arg0: i32) -> (i32, i32) {
    %c0_i32 = arith.constant 0 : i32
    %c0_i32_0 = arith.constant 0 : i32
    %c0_i32_1 = arith.constant 0 : i32
    return %c0_i32, %c0_i32_0 : i32, i32
  }
  func.func @transform_4(%arg0: i32) -> (i32, i32) {
    %c0_i32 = arith.constant 0 : i32
    %c0_i32_0 = arith.constant 0 : i32
    %c0_i32_1 = arith.constant 0 : i32
    return %c0_i32, %c0_i32_0 : i32, i32
  }
  func.func @transform_5(%arg0: i32) -> (i32, i32, i32) {
    %c0_i32 = arith.constant 0 : i32
    %c0_i32_0 = arith.constant 0 : i32
    %c0_i32_1 = arith.constant 0 : i32
    return %arg0, %c0_i32, %c0_i32_0 : i32, i32, i32
  }
}

</mosaic_0001>

<llo_original>
// kernel: ggnn_obj_forward.1
$region0: #{ggnn_obj_forward.1}
  #allocation0 [shape = 'u32[]', space=smem, size = 0x4, offset = 0x4, fixed_abs, tag = 'smem constant byte address 0x4 - core index']
  #allocation1 [shape = 'u32[144,128]{1,0:T(1,128)}', space=vmem, size = 0x12000, scoped, tag = 'internal scratch']
  %s0 = inlined_call_operand.vmem [shape: f32[2,4,32], index: 0, kind: input, shape index: {}]
  %s1 = inlined_call_operand.vmem [shape: f32[32,4], index: 1, kind: input, shape index: {}]
  %s2 = inlined_call_operand.vmem [shape: f32[400,32], index: 2, kind: input, shape index: {}]
  %s3 = inlined_call_operand.vmem [shape: f32[64,64], index: 3, kind: input, shape index: {}]
  %s4 = inlined_call_operand.vmem [shape: f32[72,8], index: 4, kind: input, shape index: {}]
  %s5 = inlined_call_operand.hbm [shape: f32[2,4,8], index: 5, kind: output, shape index: {}]
  %s6 = sld [smem:[#allocation0]]
  $region53: #{ggnn_obj_forward.1} parent=0
    _
  %s8 = ssub.s32 1, %s6
  %s9 = scalar_select 0, %s8, %s6
  $region1: #{ggnn_obj_forward.1} parent=0
    #allocation2 [shape = 'u8[4096]{0}', space=vmem, size = 0x1000, scoped, tag = 'output window, operand 0']
    #allocation3 [shape = 's32[2]{0}', space=sflag, size = 0x8, scoped, tag = 'scoped memory for ggnn_obj_forward.1']
    %10 = vsyncpa [#allocation3], 0
    %s11 = scalar_lea.sflag [#allocation3], 1
    %12 = vsyncpa %s11, 0
    loop: start=0, step=1, limit=4
    $region2: #{ggnn_obj_forward.1} parent=1 // loop_pre_header
      _
    $region3: #{ggnn_obj_forward.1} parent=1 // loop_header
      %s14 = sphi 0, %s18
      %p15 = scmp.ge.s32.totalorder %s14, 4
      %s24 = sphi 0, %s26
      %s27 = sphi 0, %s24
      %s28 = sphi 0, %s27
      %s44 = sphi 0, %s28
      %s48 = sphi 0, %s48
      %s50 = sphi 0, %s48
      %s51 = sphi 0, %s50
      %s65 = sphi 0, %s51
      %s69 = sphi 0, %s69
      %s71 = sphi 0, %s69
      %s72 = sphi 0, %s71
      %s86 = sphi 0, %s72
      %s90 = sphi 0, %s90
      %s92 = sphi 0, %s90
      %s93 = sphi 0, %s92
      %s107 = sphi 0, %s93
      %s111 = sphi 0, %s111
      %s113 = sphi 0, %s111
      %s114 = sphi 0, %s113
      %s128 = sphi 0, %s114
      %s134 = sphi 0, %s136
      %s137 = sphi 0, %s134
      %s138 = sphi 0, %s137
      %s154 = sphi 0, %s138
    $region4: #{ggnn_obj_forward.1} parent=1 // loop_header_branch
      %17 = sbr.rel (%p15) target = $region8
    $region5: #{ggnn_obj_forward.1} parent=1 // loop_body
      %s19 = ssub.s32 %s14, 1
      %s20 = ssub.s32 %s14, 2
      %s21 = sadd.s32 %s14, 1
      %s22 = ssub.s32 %s14, %s21
      %p23 = scmp.eq.s32.totalorder %s22, 0
      %s25 = sadd.s32 %s24, 1
      %s26 = scalar_select %p23, %s24, %s25
      %p29 = pneg %p23
      %p30 = scmp.eq.s32.totalorder %s14, 1
      %p31 = por %p29, %p30
      %p32 = scmp.ne.s32.totalorder %s24, %s27
      %p33 = scmp.eq.s32.totalorder %s14, 0
      %p34 = por %p32, %p33
      %p35 = scmp.ne.s32.totalorder %s24, %s27
      %p36 = scmp.eq.s32.totalorder %s19, 1
      %p37 = por %p35, %p36
      %p38 = scmp.ne.s32.totalorder %s27, %s28
      %p39 = scmp.eq.s32.totalorder %s19, 0
      %p40 = por %p38, %p39
      %p41 = scmp.ne.s32.totalorder %s27, %s28
      %p42 = scmp.eq.s32.totalorder %s20, 1
      %p43 = por %p41, %p42
      %p45 = scmp.ne.s32.totalorder %s28, %s44
      %p46 = scmp.eq.s32.totalorder %s20, 0
      %p47 = por %p45, %p46
      %s49 = sadd.s32 %s48, 1
      %p52 = scmp.eq.s32.totalorder %s14, 1
      %p53 = scmp.ne.s32.totalorder %s48, %s50
      %p54 = scmp.eq.s32.totalorder %s14, 0
      %p55 = por %p53, %p54
      %p56 = scmp.ne.s32.totalorder %s48, %s50
      %p57 = scmp.eq.s32.totalorder %s19, 1
      %p58 = por %p56, %p57
      %p59 = scmp.ne.s32.totalorder %s50, %s51
      %p60 = scmp.eq.s32.totalorder %s19, 0
      %p61 = por %p59, %p60
      %p62 = scmp.ne.s32.totalorder %s50, %s51
      %p63 = scmp.eq.s32.totalorder %s20, 1
      %p64 = por %p62, %p63
      %p66 = scmp.ne.s32.totalorder %s51, %s65
      %p67 = scmp.eq.s32.totalorder %s20, 0
      %p68 = por %p66, %p67
      %s70 = sadd.s32 %s69, 1
      %p73 = scmp.eq.s32.totalorder %s14, 1
      %p74 = scmp.ne.s32.totalorder %s69, %s71
      %p75 = scmp.eq.s32.totalorder %s14, 0
      %p76 = por %p74, %p75
      %p77 = scmp.ne.s32.totalorder %s69, %s71
      %p78 = scmp.eq.s32.totalorder %s19, 1
      %p79 = por %p77, %p78
      %p80 = scmp.ne.s32.totalorder %s71, %s72
      %p81 = scmp.eq.s32.totalorder %s19, 0
      %p82 = por %p80, %p81
      %p83 = scmp.ne.s32.totalorder %s71, %s72
      %p84 = scmp.eq.s32.totalorder %s20, 1
      %p85 = por %p83, %p84
      %p87 = scmp.ne.s32.totalorder %s72, %s86
      %p88 = scmp.eq.s32.totalorder %s20, 0
      %p89 = por %p87, %p88
      %s91 = sadd.s32 %s90, 1
      %p94 = scmp.eq.s32.totalorder %s14, 1
      %p95 = scmp.ne.s32.totalorder %s90, %s92
      %p96 = scmp.eq.s32.totalorder %s14, 0
      %p97 = por %p95, %p96
      %p98 = scmp.ne.s32.totalorder %s90, %s92
      %p99 = scmp.eq.s32.totalorder %s19, 1
      %p100 = por %p98, %p99
      %p101 = scmp.ne.s32.totalorder %s92, %s93
      %p102 = scmp.eq.s32.totalorder %s19, 0
      %p103 = por %p101, %p102
      %p104 = scmp.ne.s32.totalorder %s92, %s93
      %p105 = scmp.eq.s32.totalorder %s20, 1
      %p106 = por %p104, %p105
      %p108 = scmp.ne.s32.totalorder %s93, %s107
      %p109 = scmp.eq.s32.totalorder %s20, 0
      %p110 = por %p108, %p109
      %s112 = sadd.s32 %s111, 1
      %p115 = scmp.eq.s32.totalorder %s14, 1
      %p116 = scmp.ne.s32.totalorder %s111, %s113
      %p117 = scmp.eq.s32.totalorder %s14, 0
      %p118 = por %p116, %p117
      %p119 = scmp.ne.s32.totalorder %s111, %s113
      %p120 = scmp.eq.s32.totalorder %s19, 1
      %p121 = por %p119, %p120
      %p122 = scmp.ne.s32.totalorder %s113, %s114
      %p123 = scmp.eq.s32.totalorder %s19, 0
      %p124 = por %p122, %p123
      %p125 = scmp.ne.s32.totalorder %s113, %s114
      %p126 = scmp.eq.s32.totalorder %s20, 1
      %p127 = por %p125, %p126
      %p129 = scmp.ne.s32.totalorder %s114, %s128
      %p130 = scmp.eq.s32.totalorder %s20, 0
      %p131 = por %p129, %p130
      %s132 = ssub.s32 %s14, %s21
      %p133 = scmp.eq.s32.totalorder %s132, 0
      %s135 = sadd.s32 %s134, 1
      %s136 = scalar_select %p133, %s134, %s135
      %p139 = pneg %p133
      %p140 = scmp.eq.s32.totalorder %s14, 1
      %p141 = por %p139, %p140
      %p142 = scmp.ne.s32.totalorder %s134, %s137
      %p143 = scmp.eq.s32.totalorder %s14, 0
      %p144 = por %p142, %p143
      %p145 = scmp.ne.s32.totalorder %s134, %s137
      %p146 = scmp.eq.s32.totalorder %s19, 1
      %p147 = por %p145, %p146
      %p148 = scmp.ne.s32.totalorder %s137, %s138
      %p149 = scmp.eq.s32.totalorder %s19, 0
      %p150 = por %p148, %p149
      %p151 = scmp.ne.s32.totalorder %s137, %s138
      %p152 = scmp.eq.s32.totalorder %s20, 1
      %p153 = por %p151, %p152
      %p155 = scmp.ne.s32.totalorder %s138, %s154
      %p156 = scmp.eq.s32.totalorder %s20, 0
      %p157 = por %p155, %p156
      %p158 = scmp.le.s32.totalorder 1, %s14
      %p159 = scmp.lt.s32.totalorder %s14, 3
      %p160 = pnand %p158, %p159
      %p161 = pneg %p160
      // Predicated region
      $region9: #{ggnn_obj_forward.1} parent=5 // pred_check
        _
      $region10: #{ggnn_obj_forward.1} parent=5 // pred_check_branch
        %163 = sbr.rel (%p160) target = $region12
      $region11: #{ggnn_obj_forward.1} parent=5 // pred_region
        %s164 = ssub.s32 %s14, 1
        // Predicated region
        $region13: #{ggnn_obj_forward.1} parent=11 // pred_check
          %p165 = pneg %p61
        $region14: #{ggnn_obj_forward.1} parent=11 // pred_check_branch
          %167 = sbr.rel (%p165) target = $region16
        $region15: #{ggnn_obj_forward.1} parent=11 // pred_region
          _
        $region16: #{ggnn_obj_forward.1} parent=11 // pred_fallthru
          _
        // Predicated region
        $region17: #{ggnn_obj_forward.1} parent=11 // pred_check
          %p168 = pneg %p82
        $region18: #{ggnn_obj_forward.1} parent=11 // pred_check_branch
          %170 = sbr.rel (%p168) target = $region20
        $region19: #{ggnn_obj_forward.1} parent=11 // pred_region
          _
        $region20: #{ggnn_obj_forward.1} parent=11 // pred_fallthru
          _
        // Predicated region
        $region21: #{ggnn_obj_forward.1} parent=11 // pred_check
          %p171 = pneg %p103
        $region22: #{ggnn_obj_forward.1} parent=11 // pred_check_branch
          %173 = sbr.rel (%p171) target = $region24
        $region23: #{ggnn_obj_forward.1} parent=11 // pred_region
          _
        $region24: #{ggnn_obj_forward.1} parent=11 // pred_fallthru
          _
        // Predicated region
        $region25: #{ggnn_obj_forward.1} parent=11 // pred_check
          %p174 = pneg %p124
        $region26: #{ggnn_obj_forward.1} parent=11 // pred_check_branch
          %176 = sbr.rel (%p174) target = $region28
        $region27: #{ggnn_obj_forward.1} parent=11 // pred_region
          _
        $region28: #{ggnn_obj_forward.1} parent=11 // pred_fallthru
          _
      $region12: #{ggnn_obj_forward.1} parent=5 // pred_fallthru
        _
      %p177 = scmp.lt.s32.totalorder %s14, 2
      // Predicated region
      $region29: #{ggnn_obj_forward.1} parent=5 // pred_check
        %p178 = pneg %p177
      $region30: #{ggnn_obj_forward.1} parent=5 // pred_check_branch
        %180 = sbr.rel (%p178) target = $region32
      $region31: #{ggnn_obj_forward.1} parent=5 // pred_region
        // Predicated region
        $region33: #{ggnn_obj_forward.1} parent=31 // pred_check
          %p181 = pneg %p34
        $region34: #{ggnn_obj_forward.1} parent=31 // pred_check_branch
          %183 = sbr.rel (%p181) target = $region36
        $region35: #{ggnn_obj_forward.1} parent=31 // pred_region
          %p184 = scmp.lt.s32.totalorder %s14, 1
          %s185 = scalar_select %p184, %s14, 1
          %s186 = smul.addr %s185, 4
          %s187 = scalar_lea.vmem %s0, %s186
        $region36: #{ggnn_obj_forward.1} parent=31 // pred_fallthru
          _
      $region32: #{ggnn_obj_forward.1} parent=5 // pred_fallthru
        _
      %p188 = scmp.le.s32.totalorder 1, %s14
      %p189 = scmp.lt.s32.totalorder %s14, 3
      %p190 = pnand %p188, %p189
      %p191 = pneg %p190
      // Predicated region
      $region37: #{ggnn_obj_forward.1} parent=5 // pred_check
        _
      $region38: #{ggnn_obj_forward.1} parent=5 // pred_check_branch
        %193 = sbr.rel (%p190) target = $region40
      $region39: #{ggnn_obj_forward.1} parent=5 // pred_region
        %s194 = ssub.s32 %s14, 1
        %p195 = scmp.lt.s32.totalorder %s19, 1
        %s196 = scalar_select %p195, %s19, 1
        %s197 = smul.addr %s196, 4
        %s198 = scalar_lea.vmem %s0, %s197
        %p199 = pneg %p40
        %p200 = pneg %p37
        %p201 = pneg %p61
        %p202 = pneg %p58
        %p203 = pneg %p82
        %p204 = pneg %p79
        %p205 = pneg %p103
        %p206 = pneg %p100
        %p207 = pneg %p124
        %p208 = pneg %p121
        %p209 = pneg %p150
        %p210 = pneg %p147
        %s211 = sand.u32 %s137, 1
        %s212 = scalar_lea.sflag [#allocation3], %s211
        %s213 = sand.u32 %s137, 1
        %s214 = smul.addr %s213, 4
        %s215 = scalar_lea.vmem [#allocation2], %s214
        %p216 = scmp.lt.s32.totalorder %s19, 1
        %s217 = scalar_select %p216, %s19, 1
        %s218 = smul.addr %s217, 4
        %s219 = scalar_lea.vmem %s0, %s218
        %v220 = vld [vmem:[%s219] sm:$0xf]
        %v221 = vld [vmem:[%s1] sm:$0xff]
        %v222 = vld [vmem:[%s1 + $0x8] sm:$0xff]
        %v223 = vld [vmem:[%s1 + $0x10] sm:$0xff]
        %v224 = vld [vmem:[%s1 + $0x18] sm:$0xff]
        %v225 = vld [vmem:[%s2] sm:$0xff]
        %v226 = vld [vmem:[%s2 + $0x8] sm:$0xff]
        %v227 = vld [vmem:[%s2 + $0x10] sm:$0xff]
        %v228 = vld [vmem:[%s2 + $0x18] sm:$0xff]
        %v229 = vld [vmem:[%s2 + $0x20] sm:$0xff]
        %v230 = vld [vmem:[%s2 + $0x28] sm:$0xff]
        %v231 = vld [vmem:[%s2 + $0x30] sm:$0xff]
        %v232 = vld [vmem:[%s2 + $0x38] sm:$0xff]
        %v233 = vld [vmem:[%s2 + $0x40] sm:$0xff]
        %v234 = vld [vmem:[%s2 + $0x48] sm:$0xff]
        %v235 = vld [vmem:[%s2 + $0x50] sm:$0xff]
        %v236 = vld [vmem:[%s2 + $0x58] sm:$0xff]
        %v237 = vld [vmem:[%s2 + $0x60] sm:$0xff]
        %v238 = vld [vmem:[%s2 + $0x68] sm:$0xff]
        %v239 = vld [vmem:[%s2 + $0x70] sm:$0xff]
        %v240 = vld [vmem:[%s2 + $0x78] sm:$0xff]
        %v241 = vld [vmem:[%s2 + $0x80] sm:$0xff]
        %v242 = vld [vmem:[%s2 + $0x88] sm:$0xff]
        %v243 = vld [vmem:[%s2 + $0x90] sm:$0xff]
        %v244 = vld [vmem:[%s2 + $0x98] sm:$0xff]
        %v245 = vld [vmem:[%s2 + $0xa0] sm:$0xff]
        %v246 = vld [vmem:[%s2 + $0xa8] sm:$0xff]
        %v247 = vld [vmem:[%s2 + $0xb0] sm:$0xff]
        %v248 = vld [vmem:[%s2 + $0xb8] sm:$0xff]
        %v249 = vld [vmem:[%s2 + $0xc0] sm:$0xff]
        %v250 = vld [vmem:[%s2 + $0xc8] sm:$0xff]
        %v251 = vld [vmem:[%s2 + $0xd0] sm:$0xff]
        %v252 = vld [vmem:[%s2 + $0xd8] sm:$0xff]
        %v253 = vld [vmem:[%s2 + $0xe0] sm:$0xff]
        %v254 = vld [vmem:[%s2 + $0xe8] sm:$0xff]
        %v255 = vld [vmem:[%s2 + $0xf0] sm:$0xff]
        %v256 = vld [vmem:[%s2 + $0xf8] sm:$0xff]
        %v257 = vld [vmem:[%s2 + $0x100] sm:$0xff]
        %v258 = vld [vmem:[%s2 + $0x108] sm:$0xff]
        %v259 = vld [vmem:[%s2 + $0x110] sm:$0xff]
        %v260 = vld [vmem:[%s2 + $0x118] sm:$0xff]
        %v261 = vld [vmem:[%s2 + $0x120] sm:$0xff]
        %v262 = vld [vmem:[%s2 + $0x128] sm:$0xff]
        %v263 = vld [vmem:[%s2 + $0x130] sm:$0xff]
        %v264 = vld [vmem:[%s2 + $0x138] sm:$0xff]
        %v265 = vld [vmem:[%s2 + $0x140] sm:$0xff]
        %v266 = vld [vmem:[%s2 + $0x148] sm:$0xff]
        %v267 = vld [vmem:[%s2 + $0x150] sm:$0xff]
        %v268 = vld [vmem:[%s2 + $0x158] sm:$0xff]
        %v269 = vld [vmem:[%s2 + $0x160] sm:$0xff]
        %v270 = vld [vmem:[%s2 + $0x168] sm:$0xff]
        %v271 = vld [vmem:[%s2 + $0x170] sm:$0xff]
        %v272 = vld [vmem:[%s2 + $0x178] sm:$0xff]
        %v273 = vld [vmem:[%s2 + $0x180] sm:$0xf]
        %v274 = vld [vmem:[%s2 + $0x188] sm:$0x1]
        %v275 = vld [vmem:[%s2 + $0x189] sm:$0x1]
        %v276 = vld [vmem:[%s2 + $0x18a] sm:$0x1]
        %v277 = vld [vmem:[%s2 + $0x18b] sm:$0x1]
        %v278 = vld [vmem:[%s3] sm:$0xff]
        %v279 = vld [vmem:[%s3 + $0x8] sm:$0xff]
        %v280 = vld [vmem:[%s3 + $0x10] sm:$0xff]
        %v281 = vld [vmem:[%s3 + $0x18] sm:$0xff]
        %v282 = vld [vmem:[%s3 + $0x20] sm:$0xff]
        %v283 = vld [vmem:[%s3 + $0x28] sm:$0xff]
        %v284 = vld [vmem:[%s3 + $0x30] sm:$0xff]
        %v285 = vld [vmem:[%s3 + $0x38] sm:$0xff]
        %v286 = vld [vmem:[%s4] sm:$0xff]
        %v287 = vld [vmem:[%s4 + $0x8] sm:$0xff]
        %v288 = vld [vmem:[%s4 + $0x10] sm:$0xff]
        %v289 = vld [vmem:[%s4 + $0x18] sm:$0xff]
        %v290 = vld [vmem:[%s4 + $0x20] sm:$0xff]
        %v291 = vld [vmem:[%s4 + $0x28] sm:$0xff]
        %v292 = vld [vmem:[%s4 + $0x30] sm:$0xff]
        %v293 = vld [vmem:[%s4 + $0x38] sm:$0xff]
        %v294 = vld [vmem:[%s4 + $0x40] sm:$0x1]
        %vm295 = vcmask 31744
        %v297 = vsel %vm295, %v221, 0
        %v300 = vsel %vm295, %v222, 0
        %v303 = vsel %vm295, %v223, 0
        %v306 = vsel %vm295, %v224, 0
        %vm308 = vcmask 1043456
        %v310 = vsel %vm308, %v220, 0
        %312 = vmatprep.subr.mxu0 0.0
        %313 = vmatpush1.msra.mxu0 0.0
        %314 = vmatprep.subr.mxu0 0.0
        %315 = vmatpush1.msra.mxu0 0.0
        %316 = vmatprep.subr.mxu0 0.0
        %317 = vmatpush1.msra.mxu0 0.0
        %318 = vmatprep.subr.mxu0 0.0
        %319 = vmatpush1.msra.mxu0 0.0
        %320 = vmatprep.subr.mxu0 0.0
        %321 = vmatpush1.msra.mxu0 0.0
        %322 = vmatprep.subr.mxu0 0.0
        %323 = vmatpush1.msra.mxu0 0.0
        %324 = vmatprep.subr.mxu0 0.0
        %325 = vmatpush1.msra.mxu0 0.0
        %326 = vmatprep.subr.mxu0 0.0
        %327 = vmatpush1.msra.mxu0 0.0
        %328 = vmatprep.subr.mxu0 0.0
        %329 = vmatpush1.msra.mxu0 0.0
        %330 = vmatprep.subr.mxu0 0.0
        %331 = vmatpush1.msra.mxu0 0.0
        %332 = vmatprep.subr.mxu0 0.0
        %333 = vmatpush1.msra.mxu0 0.0
        %334 = vmatprep.subr.mxu0 0.0
        %335 = vmatpush1.msra.mxu0 0.0
        %336 = vmatprep.subr.mxu0 0.0
        %337 = vmatpush1.msra.mxu0 0.0
        %338 = vmatprep.subr.mxu0 0.0
        %339 = vmatpush1.msra.mxu0 0.0
        %340 = vmatprep.subr.mxu0 0.0
        %341 = vmatpush1.msra.mxu0 0.0
        %342 = vmatprep.subr.mxu0 0.0
        %343 = vmatpush1.msra.mxu0 %v310
        %344 = vmatprep.subr.mxu0 0.0
        %345 = vmatpush2.msra.mxu0 0.0
        %346 = vmatprep.subr.mxu0 0.0
        %347 = vmatpush2.msra.mxu0 0.0
        %348 = vmatprep.subr.mxu0 0.0
        %349 = vmatpush2.msra.mxu0 0.0
        %350 = vmatprep.subr.mxu0 0.0
        %351 = vmatpush2.msra.mxu0 0.0
        %352 = vmatprep.subr.mxu0 0.0
        %353 = vmatpush2.msra.mxu0 0.0
        %354 = vmatprep.subr.mxu0 0.0
        %355 = vmatpush2.msra.mxu0 0.0
        %356 = vmatprep.subr.mxu0 0.0
        %357 = vmatpush2.msra.mxu0 0.0
        %358 = vmatprep.subr.mxu0 0.0
        %359 = vmatpush2.msra.mxu0 0.0
        %360 = vmatprep.subr.mxu0 0.0
        %361 = vmatpush2.msra.mxu0 0.0
        %362 = vmatprep.subr.mxu0 0.0
        %363 = vmatpush2.msra.mxu0 0.0
        %364 = vmatprep.subr.mxu0 0.0
        %365 = vmatpush2.msra.mxu0 0.0
        %366 = vmatprep.subr.mxu0 0.0
        %367 = vmatpush2.msra.mxu0 0.0
        %368 = vmatprep.subr.mxu0 0.0
        %369 = vmatpush2.msra.mxu0 0.0
        %370 = vmatprep.subr.mxu0 0.0
        %371 = vmatpush2.msra.mxu0 0.0
        %372 = vmatprep.subr.mxu0 0.0
        %373 = vmatpush2.msra.mxu0 0.0
        %374 = vmatprep.subr.mxu0 0.0
        %375 = vmatpush2.msra.mxu0 0.0
        %376 = vmatprep.mubr.f32.mxu0 0.0
        %377 = vmatmul.mubr.f32.gmra.mxu0 %v297
        %v378 = vpop.f32.mrf.mxu0
        %v379 = vadd.f32 0.0, %v378
        %v380 = vpop.f32.mrf.mxu0
        %381 = vmatprep.mubr.f32.mxu0 0.0
        %382 = vmatmul.mubr.f32.gmra.mxu0 %v300
        %v383 = vpop.f32.mrf.mxu0
        %v384 = vadd.f32 0.0, %v383
        %v385 = vpop.f32.mrf.mxu0
        %386 = vmatprep.mubr.f32.mxu0 0.0
        %387 = vmatmul.mubr.f32.gmra.mxu0 %v303
        %v388 = vpop.f32.mrf.mxu0
        %v389 = vadd.f32 0.0, %v388
        %v390 = vpop.f32.mrf.mxu0
        %391 = vmatprep.mubr.f32.mxu0 0.0
        %392 = vmatmul.mubr.f32.gmra.mxu0 %v306
        %v393 = vpop.f32.mrf.mxu0
        %v394 = vadd.f32 0.0, %v393
        %v395 = vpop.f32.mrf.mxu0
        %396 = vdwg.mxu0
        %v397 = vlaneseq
        %v398 = vshrl.u32 %v397, 7
        %v399 = vsub.s32 0, %v398
        %v400 = vrot.slane %v277, %v399
        %vm401 = vcmask 261120
        %v403 = vsel %vm401, %v379, 0
        %v406 = vsel %vm401, %v384, 0
        %v409 = vsel %vm401, %v389, 0
        %v412 = vsel %vm401, %v394, 0
        %414 = vmatprep.subr.mxu0 0.0
        %415 = vmatpush1.msra.mxu0 0.0
        %416 = vmatprep.subr.mxu0 0.0
        %417 = vmatpush1.msra.mxu0 0.0
        %418 = vmatprep.subr.mxu0 0.0
        %419 = vmatpush1.msra.mxu0 0.0
        %420 = vmatprep.subr.mxu0 0.0
        %421 = vmatpush1.msra.mxu0 0.0
        %422 = vmatprep.subr.mxu0 0.0
        %423 = vmatpush1.msra.mxu0 0.0
        %424 = vmatprep.subr.mxu0 0.0
        %425 = vmatpush1.msra.mxu0 0.0
        %426 = vmatprep.subr.mxu0 0.0
        %427 = vmatpush1.msra.mxu0 0.0
        %428 = vmatprep.subr.mxu0 0.0
        %429 = vmatpush1.msra.mxu0 0.0
        %430 = vmatprep.subr.mxu0 0.0
        %431 = vmatpush1.msra.mxu0 0.0
        %432 = vmatprep.subr.mxu0 0.0
        %433 = vmatpush1.msra.mxu0 0.0
        %434 = vmatprep.subr.mxu0 0.0
        %435 = vmatpush1.msra.mxu0 0.0
        %436 = vmatprep.subr.mxu0 0.0
        %437 = vmatpush1.msra.mxu0 0.0
        %438 = vmatprep.subr.mxu0 0.0
        %439 = vmatpush1.msra.mxu0 %v264
        %440 = vmatprep.subr.mxu0 0.0
        %441 = vmatpush1.msra.mxu0 %v263
        %442 = vmatprep.subr.mxu0 0.0
        %443 = vmatpush1.msra.mxu0 %v262
        %444 = vmatprep.subr.mxu0 0.0
        %445 = vmatpush1.msra.mxu0 %v261
        %446 = vmatprep.subr.mxu0 0.0
        %447 = vmatpush2.msra.mxu0 0.0
        %448 = vmatprep.subr.mxu0 0.0
        %449 = vmatpush2.msra.mxu0 0.0
        %450 = vmatprep.subr.mxu0 0.0
        %451 = vmatpush2.msra.mxu0 0.0
        %452 = vmatprep.subr.mxu0 0.0
        %453 = vmatpush2.msra.mxu0 0.0
        %454 = vmatprep.subr.mxu0 0.0
        %455 = vmatpush2.msra.mxu0 0.0
        %456 = vmatprep.subr.mxu0 0.0
        %457 = vmatpush2.msra.mxu0 0.0
        %458 = vmatprep.subr.mxu0 0.0
        %459 = vmatpush2.msra.mxu0 0.0
        %460 = vmatprep.subr.mxu0 0.0
        %461 = vmatpush2.msra.mxu0 0.0
        %462 = vmatprep.subr.mxu0 0.0
        %463 = vmatpush2.msra.mxu0 0.0
        %464 = vmatprep.subr.mxu0 0.0
        %465 = vmatpush2.msra.mxu0 0.0
        %466 = vmatprep.subr.mxu0 0.0
        %467 = vmatpush2.msra.mxu0 0.0
        %468 = vmatprep.subr.mxu0 0.0
        %469 = vmatpush2.msra.mxu0 0.0
        %470 = vmatprep.subr.mxu0 0.0
        %471 = vmatpush2.msra.mxu0 0.0
        %472 = vmatprep.subr.mxu0 0.0
        %473 = vmatpush2.msra.mxu0 0.0
        %474 = vmatprep.subr.mxu0 0.0
        %475 = vmatpush2.msra.mxu0 0.0
        %476 = vmatprep.subr.mxu0 0.0
        %477 = vmatpush2.msra.mxu0 0.0
        %478 = vmatprep.mubr.f32.mxu0 0.0
        %479 = vmatmul.mubr.f32.gmra.mxu0 %v403
        %v480 = vpop.f32.mrf.mxu0
        %v481 = vadd.f32 %v400, %v480
        %v482 = vpop.f32.mrf.mxu0
        %483 = vmatprep.mubr.f32.mxu0 0.0
        %484 = vmatmul.mubr.f32.gmra.mxu0 %v406
        %v485 = vpop.f32.mrf.mxu0
        %v486 = vadd.f32 %v400, %v485
        %v487 = vpop.f32.mrf.mxu0
        %488 = vmatprep.mubr.f32.mxu0 0.0
        %489 = vmatmul.mubr.f32.gmra.mxu0 %v409
        %v490 = vpop.f32.mrf.mxu0
        %v491 = vadd.f32 %v400, %v490
        %v492 = vpop.f32.mrf.mxu0
        %493 = vmatprep.mubr.f32.mxu0 0.0
        %494 = vmatmul.mubr.f32.gmra.mxu0 %v412
        %v495 = vpop.f32.mrf.mxu0
        %v496 = vadd.f32 %v400, %v495
        %v497 = vpop.f32.mrf.mxu0
        %498 = vdwg.mxu0
        %v500 = vsel %vm401, %v265, 0
        %v503 = vsel %vm401, %v266, 0
        %v506 = vsel %vm401, %v267, 0
        %v509 = vsel %vm401, %v268, 0
        %v512 = vsel %vm401, %v269, 0
        %v515 = vsel %vm401, %v270, 0
        %v518 = vsel %vm401, %v271, 0
        %v521 = vsel %vm401, %v272, 0
        %523 = vmatprep.subr.mxu0 0.0
        %524 = vmatpush1.msra.mxu0 0.0
        %525 = vmatprep.subr.mxu0 0.0
        %526 = vmatpush1.msra.mxu0 0.0
        %527 = vmatprep.subr.mxu0 0.0
        %528 = vmatpush1.msra.mxu0 0.0
        %529 = vmatprep.subr.mxu0 0.0
        %530 = vmatpush1.msra.mxu0 0.0
        %531 = vmatprep.subr.mxu0 0.0
        %532 = vmatpush1.msra.mxu0 0.0
        %533 = vmatprep.subr.mxu0 0.0
        %534 = vmatpush1.msra.mxu0 0.0
        %535 = vmatprep.subr.mxu0 0.0
        %536 = vmatpush1.msra.mxu0 0.0
        %537 = vmatprep.subr.mxu0 0.0
        %538 = vmatpush1.msra.mxu0 0.0
        %539 = vmatprep.subr.mxu0 0.0
        %540 = vmatpush1.msra.mxu0 0.0
        %541 = vmatprep.subr.mxu0 0.0
        %542 = vmatpush1.msra.mxu0 0.0
        %543 = vmatprep.subr.mxu0 0.0
        %544 = vmatpush1.msra.mxu0 0.0
        %545 = vmatprep.subr.mxu0 0.0
        %546 = vmatpush1.msra.mxu0 0.0
        %547 = vmatprep.subr.mxu0 0.0
        %548 = vmatpush1.msra.mxu0 %v394
        %549 = vmatprep.subr.mxu0 0.0
        %550 = vmatpush1.msra.mxu0 %v389
        %551 = vmatprep.subr.mxu0 0.0
        %552 = vmatpush1.msra.mxu0 %v384
        %553 = vmatprep.subr.mxu0 0.0
        %554 = vmatpush1.msra.mxu0 %v379
        %555 = vmatprep.subr.mxu0 0.0
        %556 = vmatpush2.msra.mxu0 0.0
        %557 = vmatprep.subr.mxu0 0.0
        %558 = vmatpush2.msra.mxu0 0.0
        %559 = vmatprep.subr.mxu0 0.0
        %560 = vmatpush2.msra.mxu0 0.0
        %561 = vmatprep.subr.mxu0 0.0
        %562 = vmatpush2.msra.mxu0 0.0
        %563 = vmatprep.subr.mxu0 0.0
        %564 = vmatpush2.msra.mxu0 0.0
        %565 = vmatprep.subr.mxu0 0.0
        %566 = vmatpush2.msra.mxu0 0.0
        %567 = vmatprep.subr.mxu0 0.0
        %568 = vmatpush2.msra.mxu0 0.0
        %569 = vmatprep.subr.mxu0 0.0
        %570 = vmatpush2.msra.mxu0 0.0
        %571 = vmatprep.subr.mxu0 0.0
        %572 = vmatpush2.msra.mxu0 0.0
        %573 = vmatprep.subr.mxu0 0.0
        %574 = vmatpush2.msra.mxu0 0.0
        %575 = vmatprep.subr.mxu0 0.0
        %576 = vmatpush2.msra.mxu0 0.0
        %577 = vmatprep.subr.mxu0 0.0
        %578 = vmatpush2.msra.mxu0 0.0
        %579 = vmatprep.subr.mxu0 0.0
        %580 = vmatpush2.msra.mxu0 0.0
        %581 = vmatprep.subr.mxu0 0.0
        %582 = vmatpush2.msra.mxu0 0.0
        %583 = vmatprep.subr.mxu0 0.0
        %584 = vmatpush2.msra.mxu0 0.0
        %585 = vmatprep.subr.mxu0 0.0
        %586 = vmatpush2.msra.mxu0 0.0
        %587 = vmatprep.mubr.f32.mxu0 0.0
        %588 = vmatmul.mubr.f32.gmra.mxu0 %v500
        %v589 = vpop.f32.mrf.mxu0
        %v590 = vadd.f32 0.0, %v589
        %v591 = vpop.f32.mrf.mxu0
        %592 = vmatprep.mubr.f32.mxu0 0.0
        %593 = vmatmul.mubr.f32.gmra.mxu0 %v503
        %v594 = vpop.f32.mrf.mxu0
        %v595 = vadd.f32 0.0, %v594
        %v596 = vpop.f32.mrf.mxu0
        %597 = vmatprep.mubr.f32.mxu0 0.0
        %598 = vmatmul.mubr.f32.gmra.mxu0 %v506
        %v599 = vpop.f32.mrf.mxu0
        %v600 = vadd.f32 0.0, %v599
        %v601 = vpop.f32.mrf.mxu0
        %602 = vmatprep.mubr.f32.mxu0 0.0
        %603 = vmatmul.mubr.f32.gmra.mxu0 %v509
        %v604 = vpop.f32.mrf.mxu0
        %v605 = vadd.f32 0.0, %v604
        %v606 = vpop.f32.mrf.mxu0
        %607 = vmatprep.mubr.f32.mxu0 0.0
        %608 = vmatmul.mubr.f32.gmra.mxu0 %v512
        %v609 = vpop.f32.mrf.mxu0
        %v610 = vadd.f32 0.0, %v609
        %v611 = vpop.f32.mrf.mxu0
        %612 = vmatprep.mubr.f32.mxu0 0.0
        %613 = vmatmul.mubr.f32.gmra.mxu0 %v515
        %v614 = vpop.f32.mrf.mxu0
        %v615 = vadd.f32 0.0, %v614
        %v616 = vpop.f32.mrf.mxu0
        %617 = vmatprep.mubr.f32.mxu0 0.0
        %618 = vmatmul.mubr.f32.gmra.mxu0 %v518
        %v619 = vpop.f32.mrf.mxu0
        %v620 = vadd.f32 0.0, %v619
        %v621 = vpop.f32.mrf.mxu0
        %622 = vmatprep.mubr.f32.mxu0 0.0
        %623 = vmatmul.mubr.f32.gmra.mxu0 %v521
        %v624 = vpop.f32.mrf.mxu0
        %v625 = vadd.f32 0.0, %v624
        %v626 = vpop.f32.mrf.mxu0
        %627 = vdwg.mxu0
        %628 = vmatprep.subr.mxu0 0.0
        %629 = vmatpush1.msra.mxu0 0.0
        %630 = vmatprep.subr.mxu0 0.0
        %631 = vmatpush1.msra.mxu0 0.0
        %632 = vmatprep.subr.mxu0 0.0
        %633 = vmatpush1.msra.mxu0 0.0
        %634 = vmatprep.subr.mxu0 0.0
        %635 = vmatpush1.msra.mxu0 0.0
        %636 = vmatprep.subr.mxu0 0.0
        %637 = vmatpush1.msra.mxu0 0.0
        %638 = vmatprep.subr.mxu0 0.0
        %639 = vmatpush1.msra.mxu0 0.0
        %640 = vmatprep.subr.mxu0 0.0
        %641 = vmatpush1.msra.mxu0 0.0
        %642 = vmatprep.subr.mxu0 0.0
        %643 = vmatpush1.msra.mxu0 0.0
        %644 = vmatprep.subr.mxu0 0.0
        %645 = vmatpush1.msra.mxu0 0.0
        %646 = vmatprep.subr.mxu0 0.0
        %647 = vmatpush1.msra.mxu0 0.0
        %648 = vmatprep.subr.mxu0 0.0
        %649 = vmatpush1.msra.mxu0 0.0
        %650 = vmatprep.subr.mxu0 0.0
        %651 = vmatpush1.msra.mxu0 0.0
        %652 = vmatprep.subr.mxu0 0.0
        %653 = vmatpush1.msra.mxu0 %v252
        %654 = vmatprep.subr.mxu0 0.0
        %655 = vmatpush1.msra.mxu0 %v251
        %656 = vmatprep.subr.mxu0 0.0
        %657 = vmatpush1.msra.mxu0 %v250
        %658 = vmatprep.subr.mxu0 0.0
        %659 = vmatpush1.msra.mxu0 %v249
        %660 = vmatprep.subr.mxu0 0.0
        %661 = vmatpush2.msra.mxu0 0.0
        %662 = vmatprep.subr.mxu0 0.0
        %663 = vmatpush2.msra.mxu0 0.0
        %664 = vmatprep.subr.mxu0 0.0
        %665 = vmatpush2.msra.mxu0 0.0
        %666 = vmatprep.subr.mxu0 0.0
        %667 = vmatpush2.msra.mxu0 0.0
        %668 = vmatprep.subr.mxu0 0.0
        %669 = vmatpush2.msra.mxu0 0.0
        %670 = vmatprep.subr.mxu0 0.0
        %671 = vmatpush2.msra.mxu0 0.0
        %672 = vmatprep.subr.mxu0 0.0
        %673 = vmatpush2.msra.mxu0 0.0
        %674 = vmatprep.subr.mxu0 0.0
        %675 = vmatpush2.msra.mxu0 0.0
        %676 = vmatprep.subr.mxu0 0.0
        %677 = vmatpush2.msra.mxu0 0.0
        %678 = vmatprep.subr.mxu0 0.0
        %679 = vmatpush2.msra.mxu0 0.0
        %680 = vmatprep.subr.mxu0 0.0
        %681 = vmatpush2.msra.mxu0 0.0
        %682 = vmatprep.subr.mxu0 0.0
        %683 = vmatpush2.msra.mxu0 0.0
        %684 = vmatprep.subr.mxu0 0.0
        %685 = vmatpush2.msra.mxu0 0.0
        %686 = vmatprep.subr.mxu0 0.0
        %687 = vmatpush2.msra.mxu0 0.0
        %688 = vmatprep.subr.mxu0 0.0
        %689 = vmatpush2.msra.mxu0 0.0
        %690 = vmatprep.subr.mxu0 0.0
        %691 = vmatpush2.msra.mxu0 0.0
        %692 = vmatprep.mubr.f32.mxu0 0.0
        %693 = vmatmul.mubr.f32.gmra.mxu0 %v403
        %v694 = vpop.f32.mrf.mxu0
        %v695 = vadd.f32 0.0, %v694
        %v696 = vpop.f32.mrf.mxu0
        %697 = vmatprep.mubr.f32.mxu0 0.0
        %698 = vmatmul.mubr.f32.gmra.mxu0 %v406
        %v699 = vpop.f32.mrf.mxu0
        %v700 = vadd.f32 0.0, %v699
        %v701 = vpop.f32.mrf.mxu0
        %702 = vmatprep.mubr.f32.mxu0 0.0
        %703 = vmatmul.mubr.f32.gmra.mxu0 %v409
        %v704 = vpop.f32.mrf.mxu0
        %v705 = vadd.f32 0.0, %v704
        %v706 = vpop.f32.mrf.mxu0
        %707 = vmatprep.mubr.f32.mxu0 0.0
        %708 = vmatmul.mubr.f32.gmra.mxu0 %v412
        %v709 = vpop.f32.mrf.mxu0
        %v710 = vadd.f32 0.0, %v709
        %v711 = vpop.f32.mrf.mxu0
        %712 = vdwg.mxu0
        %v714 = vsel %vm401, %v610, 0
        %v717 = vsel %vm401, %v615, 0
        %v720 = vsel %vm401, %v620, 0
        %v723 = vsel %vm401, %v625, 0
        %725 = vmatprep.subr.mxu0 0.0
        %726 = vmatpush1.msra.mxu0 0.0
        %727 = vmatprep.subr.mxu0 0.0
        %728 = vmatpush1.msra.mxu0 0.0
        %729 = vmatprep.subr.mxu0 0.0
        %730 = vmatpush1.msra.mxu0 0.0
        %731 = vmatprep.subr.mxu0 0.0
        %732 = vmatpush1.msra.mxu0 0.0
        %733 = vmatprep.subr.mxu0 0.0
        %734 = vmatpush1.msra.mxu0 0.0
        %735 = vmatprep.subr.mxu0 0.0
        %736 = vmatpush1.msra.mxu0 0.0
        %737 = vmatprep.subr.mxu0 0.0
        %738 = vmatpush1.msra.mxu0 0.0
        %739 = vmatprep.subr.mxu0 0.0
        %740 = vmatpush1.msra.mxu0 0.0
        %741 = vmatprep.subr.mxu0 0.0
        %742 = vmatpush1.msra.mxu0 0.0
        %743 = vmatprep.subr.mxu0 0.0
        %744 = vmatpush1.msra.mxu0 0.0
        %745 = vmatprep.subr.mxu0 0.0
        %746 = vmatpush1.msra.mxu0 0.0
        %747 = vmatprep.subr.mxu0 0.0
        %748 = vmatpush1.msra.mxu0 0.0
        %749 = vmatprep.subr.mxu0 0.0
        %750 = vmatpush1.msra.mxu0 %v232
        %751 = vmatprep.subr.mxu0 0.0
        %752 = vmatpush1.msra.mxu0 %v231
        %753 = vmatprep.subr.mxu0 0.0
        %754 = vmatpush1.msra.mxu0 %v230
        %755 = vmatprep.subr.mxu0 0.0
        %756 = vmatpush1.msra.mxu0 %v229
        %757 = vmatprep.subr.mxu0 0.0
        %758 = vmatpush2.msra.mxu0 0.0
        %759 = vmatprep.subr.mxu0 0.0
        %760 = vmatpush2.msra.mxu0 0.0
        %761 = vmatprep.subr.mxu0 0.0
        %762 = vmatpush2.msra.mxu0 0.0
        %763 = vmatprep.subr.mxu0 0.0
        %764 = vmatpush2.msra.mxu0 0.0
        %765 = vmatprep.subr.mxu0 0.0
        %766 = vmatpush2.msra.mxu0 0.0
        %767 = vmatprep.subr.mxu0 0.0
        %768 = vmatpush2.msra.mxu0 0.0
        %769 = vmatprep.subr.mxu0 0.0
        %770 = vmatpush2.msra.mxu0 0.0
        %771 = vmatprep.subr.mxu0 0.0
        %772 = vmatpush2.msra.mxu0 0.0
        %773 = vmatprep.subr.mxu0 0.0
        %774 = vmatpush2.msra.mxu0 0.0
        %775 = vmatprep.subr.mxu0 0.0
        %776 = vmatpush2.msra.mxu0 0.0
        %777 = vmatprep.subr.mxu0 0.0
        %778 = vmatpush2.msra.mxu0 0.0
        %779 = vmatprep.subr.mxu0 0.0
        %780 = vmatpush2.msra.mxu0 0.0
        %781 = vmatprep.subr.mxu0 0.0
        %782 = vmatpush2.msra.mxu0 0.0
        %783 = vmatprep.subr.mxu0 0.0
        %784 = vmatpush2.msra.mxu0 0.0
        %785 = vmatprep.subr.mxu0 0.0
        %786 = vmatpush2.msra.mxu0 0.0
        %787 = vmatprep.subr.mxu0 0.0
        %788 = vmatpush2.msra.mxu0 0.0
        %789 = vmatprep.mubr.f32.mxu0 0.0
        %790 = vmatmul.mubr.f32.gmra.mxu0 %v714
        %v791 = vpop.f32.mrf.mxu0
        %v792 = vadd.f32 0.0, %v791
        %v793 = vpop.f32.mrf.mxu0
        %794 = vmatprep.mubr.f32.mxu0 0.0
        %795 = vmatmul.mubr.f32.gmra.mxu0 %v717
        %v796 = vpop.f32.mrf.mxu0
        %v797 = vadd.f32 0.0, %v796
        %v798 = vpop.f32.mrf.mxu0
        %799 = vmatprep.mubr.f32.mxu0 0.0
        %800 = vmatmul.mubr.f32.gmra.mxu0 %v720
        %v801 = vpop.f32.mrf.mxu0
        %v802 = vadd.f32 0.0, %v801
        %v803 = vpop.f32.mrf.mxu0
        %804 = vmatprep.mubr.f32.mxu0 0.0
        %805 = vmatmul.mubr.f32.gmra.mxu0 %v723
        %v806 = vpop.f32.mrf.mxu0
        %v807 = vadd.f32 0.0, %v806
        %v808 = vpop.f32.mrf.mxu0
        %809 = vdwg.mxu0
        %v811 = vsel %vm401, %v590, 0
        %v814 = vsel %vm401, %v595, 0
        %v817 = vsel %vm401, %v600, 0
        %v820 = vsel %vm401, %v605, 0
        %822 = vmatprep.subr.mxu0 0.0
        %823 = vmatpush1.msra.mxu0 0.0
        %824 = vmatprep.subr.mxu0 0.0
        %825 = vmatpush1.msra.mxu0 0.0
        %826 = vmatprep.subr.mxu0 0.0
        %827 = vmatpush1.msra.mxu0 0.0
        %828 = vmatprep.subr.mxu0 0.0
        %829 = vmatpush1.msra.mxu0 0.0
        %830 = vmatprep.subr.mxu0 0.0
        %831 = vmatpush1.msra.mxu0 0.0
        %832 = vmatprep.subr.mxu0 0.0
        %833 = vmatpush1.msra.mxu0 0.0
        %834 = vmatprep.subr.mxu0 0.0
        %835 = vmatpush1.msra.mxu0 0.0
        %836 = vmatprep.subr.mxu0 0.0
        %837 = vmatpush1.msra.mxu0 0.0
        %838 = vmatprep.subr.mxu0 0.0
        %839 = vmatpush1.msra.mxu0 0.0
        %840 = vmatprep.subr.mxu0 0.0
        %841 = vmatpush1.msra.mxu0 0.0
        %842 = vmatprep.subr.mxu0 0.0
        %843 = vmatpush1.msra.mxu0 0.0
        %844 = vmatprep.subr.mxu0 0.0
        %845 = vmatpush1.msra.mxu0 0.0
        %846 = vmatprep.subr.mxu0 0.0
        %847 = vmatpush1.msra.mxu0 %v228
        %848 = vmatprep.subr.mxu0 0.0
        %849 = vmatpush1.msra.mxu0 %v227
        %850 = vmatprep.subr.mxu0 0.0
        %851 = vmatpush1.msra.mxu0 %v226
        %852 = vmatprep.subr.mxu0 0.0
        %853 = vmatpush1.msra.mxu0 %v225
        %854 = vmatprep.subr.mxu0 0.0
        %855 = vmatpush2.msra.mxu0 0.0
        %856 = vmatprep.subr.mxu0 0.0
        %857 = vmatpush2.msra.mxu0 0.0
        %858 = vmatprep.subr.mxu0 0.0
        %859 = vmatpush2.msra.mxu0 0.0
        %860 = vmatprep.subr.mxu0 0.0
        %861 = vmatpush2.msra.mxu0 0.0
        %862 = vmatprep.subr.mxu0 0.0
        %863 = vmatpush2.msra.mxu0 0.0
        %864 = vmatprep.subr.mxu0 0.0
        %865 = vmatpush2.msra.mxu0 0.0
        %866 = vmatprep.subr.mxu0 0.0
        %867 = vmatpush2.msra.mxu0 0.0
        %868 = vmatprep.subr.mxu0 0.0
        %869 = vmatpush2.msra.mxu0 0.0
        %870 = vmatprep.subr.mxu0 0.0
        %871 = vmatpush2.msra.mxu0 0.0
        %872 = vmatprep.subr.mxu0 0.0
        %873 = vmatpush2.msra.mxu0 0.0
        %874 = vmatprep.subr.mxu0 0.0
        %875 = vmatpush2.msra.mxu0 0.0
        %876 = vmatprep.subr.mxu0 0.0
        %877 = vmatpush2.msra.mxu0 0.0
        %878 = vmatprep.subr.mxu0 0.0
        %879 = vmatpush2.msra.mxu0 0.0
        %880 = vmatprep.subr.mxu0 0.0
        %881 = vmatpush2.msra.mxu0 0.0
        %882 = vmatprep.subr.mxu0 0.0
        %883 = vmatpush2.msra.mxu0 0.0
        %884 = vmatprep.subr.mxu0 0.0
        %885 = vmatpush2.msra.mxu0 0.0
        %886 = vmatprep.mubr.f32.mxu0 0.0
        %887 = vmatmul.mubr.f32.gmra.mxu0 %v811
        %v888 = vpop.f32.mrf.mxu0
        %v889 = vadd.f32 %v792, %v888
        %v890 = vpop.f32.mrf.mxu0
        %891 = vmatprep.mubr.f32.mxu0 0.0
        %892 = vmatmul.mubr.f32.gmra.mxu0 %v814
        %v893 = vpop.f32.mrf.mxu0
        %v894 = vadd.f32 %v797, %v893
        %v895 = vpop.f32.mrf.mxu0
        %896 = vmatprep.mubr.f32.mxu0 0.0
        %897 = vmatmul.mubr.f32.gmra.mxu0 %v817
        %v898 = vpop.f32.mrf.mxu0
        %v899 = vadd.f32 %v802, %v898
        %v900 = vpop.f32.mrf.mxu0
        %901 = vmatprep.mubr.f32.mxu0 0.0
        %902 = vmatmul.mubr.f32.gmra.mxu0 %v820
        %v903 = vpop.f32.mrf.mxu0
        %v904 = vadd.f32 %v807, %v903
        %v905 = vpop.f32.mrf.mxu0
        %906 = vdwg.mxu0
        %907 = vmatprep.subr.mxu0 0.0
        %908 = vmatpush1.msra.mxu0 0.0
        %909 = vmatprep.subr.mxu0 0.0
        %910 = vmatpush1.msra.mxu0 0.0
        %911 = vmatprep.subr.mxu0 0.0
        %912 = vmatpush1.msra.mxu0 0.0
        %913 = vmatprep.subr.mxu0 0.0
        %914 = vmatpush1.msra.mxu0 0.0
        %915 = vmatprep.subr.mxu0 0.0
        %916 = vmatpush1.msra.mxu0 0.0
        %917 = vmatprep.subr.mxu0 0.0
        %918 = vmatpush1.msra.mxu0 0.0
        %919 = vmatprep.subr.mxu0 0.0
        %920 = vmatpush1.msra.mxu0 0.0
        %921 = vmatprep.subr.mxu0 0.0
        %922 = vmatpush1.msra.mxu0 0.0
        %923 = vmatprep.subr.mxu0 0.0
        %924 = vmatpush1.msra.mxu0 0.0
        %925 = vmatprep.subr.mxu0 0.0
        %926 = vmatpush1.msra.mxu0 0.0
        %927 = vmatprep.subr.mxu0 0.0
        %928 = vmatpush1.msra.mxu0 0.0
        %929 = vmatprep.subr.mxu0 0.0
        %930 = vmatpush1.msra.mxu0 0.0
        %931 = vmatprep.subr.mxu0 0.0
        %932 = vmatpush1.msra.mxu0 %v240
        %933 = vmatprep.subr.mxu0 0.0
        %934 = vmatpush1.msra.mxu0 %v239
        %935 = vmatprep.subr.mxu0 0.0
        %936 = vmatpush1.msra.mxu0 %v238
        %937 = vmatprep.subr.mxu0 0.0
        %938 = vmatpush1.msra.mxu0 %v237
        %939 = vmatprep.subr.mxu0 0.0
        %940 = vmatpush2.msra.mxu0 0.0
        %941 = vmatprep.subr.mxu0 0.0
        %942 = vmatpush2.msra.mxu0 0.0
        %943 = vmatprep.subr.mxu0 0.0
        %944 = vmatpush2.msra.mxu0 0.0
        %945 = vmatprep.subr.mxu0 0.0
        %946 = vmatpush2.msra.mxu0 0.0
        %947 = vmatprep.subr.mxu0 0.0
        %948 = vmatpush2.msra.mxu0 0.0
        %949 = vmatprep.subr.mxu0 0.0
        %950 = vmatpush2.msra.mxu0 0.0
        %951 = vmatprep.subr.mxu0 0.0
        %952 = vmatpush2.msra.mxu0 0.0
        %953 = vmatprep.subr.mxu0 0.0
        %954 = vmatpush2.msra.mxu0 0.0
        %955 = vmatprep.subr.mxu0 0.0
        %956 = vmatpush2.msra.mxu0 0.0
        %957 = vmatprep.subr.mxu0 0.0
        %958 = vmatpush2.msra.mxu0 0.0
        %959 = vmatprep.subr.mxu0 0.0
        %960 = vmatpush2.msra.mxu0 0.0
        %961 = vmatprep.subr.mxu0 0.0
        %962 = vmatpush2.msra.mxu0 0.0
        %963 = vmatprep.subr.mxu0 0.0
        %964 = vmatpush2.msra.mxu0 0.0
        %965 = vmatprep.subr.mxu0 0.0
        %966 = vmatpush2.msra.mxu0 0.0
        %967 = vmatprep.subr.mxu0 0.0
        %968 = vmatpush2.msra.mxu0 0.0
        %969 = vmatprep.subr.mxu0 0.0
        %970 = vmatpush2.msra.mxu0 0.0
        %971 = vmatprep.mubr.f32.mxu0 0.0
        %972 = vmatmul.mubr.f32.gmra.mxu0 %v714
        %v973 = vpop.f32.mrf.mxu0
        %v974 = vadd.f32 0.0, %v973
        %v975 = vpop.f32.mrf.mxu0
        %976 = vmatprep.mubr.f32.mxu0 0.0
        %977 = vmatmul.mubr.f32.gmra.mxu0 %v717
        %v978 = vpop.f32.mrf.mxu0
        %v979 = vadd.f32 0.0, %v978
        %v980 = vpop.f32.mrf.mxu0
        %981 = vmatprep.mubr.f32.mxu0 0.0
        %982 = vmatmul.mubr.f32.gmra.mxu0 %v720
        %v983 = vpop.f32.mrf.mxu0
        %v984 = vadd.f32 0.0, %v983
        %v985 = vpop.f32.mrf.mxu0
        %986 = vmatprep.mubr.f32.mxu0 0.0
        %987 = vmatmul.mubr.f32.gmra.mxu0 %v723
        %v988 = vpop.f32.mrf.mxu0
        %v989 = vadd.f32 0.0, %v988
        %v990 = vpop.f32.mrf.mxu0
        %991 = vdwg.mxu0
        %992 = vmatprep.subr.mxu0 0.0
        %993 = vmatpush1.msra.mxu0 0.0
        %994 = vmatprep.subr.mxu0 0.0
        %995 = vmatpush1.msra.mxu0 0.0
        %996 = vmatprep.subr.mxu0 0.0
        %997 = vmatpush1.msra.mxu0 0.0
        %998 = vmatprep.subr.mxu0 0.0
        %999 = vmatpush1.msra.mxu0 0.0
        %1000 = vmatprep.subr.mxu0 0.0
        %1001 = vmatpush1.msra.mxu0 0.0
        %1002 = vmatprep.subr.mxu0 0.0
        %1003 = vmatpush1.msra.mxu0 0.0
        %1004 = vmatprep.subr.mxu0 0.0
        %1005 = vmatpush1.msra.mxu0 0.0
        %1006 = vmatprep.subr.mxu0 0.0
        %1007 = vmatpush1.msra.mxu0 0.0
        %1008 = vmatprep.subr.mxu0 0.0
        %1009 = vmatpush1.msra.mxu0 0.0
        %1010 = vmatprep.subr.mxu0 0.0
        %1011 = vmatpush1.msra.mxu0 0.0
        %1012 = vmatprep.subr.mxu0 0.0
        %1013 = vmatpush1.msra.mxu0 0.0
        %1014 = vmatprep.subr.mxu0 0.0
        %1015 = vmatpush1.msra.mxu0 0.0
        %1016 = vmatprep.subr.mxu0 0.0
        %1017 = vmatpush1.msra.mxu0 %v236
        %1018 = vmatprep.subr.mxu0 0.0
        %1019 = vmatpush1.msra.mxu0 %v235
        %1020 = vmatprep.subr.mxu0 0.0
        %1021 = vmatpush1.msra.mxu0 %v234
        %1022 = vmatprep.subr.mxu0 0.0
        %1023 = vmatpush1.msra.mxu0 %v233
        %1024 = vmatprep.subr.mxu0 0.0
        %1025 = vmatpush2.msra.mxu0 0.0
        %1026 = vmatprep.subr.mxu0 0.0
        %1027 = vmatpush2.msra.mxu0 0.0
        %1028 = vmatprep.subr.mxu0 0.0
        %1029 = vmatpush2.msra.mxu0 0.0
        %1030 = vmatprep.subr.mxu0 0.0
        %1031 = vmatpush2.msra.mxu0 0.0
        %1032 = vmatprep.subr.mxu0 0.0
        %1033 = vmatpush2.msra.mxu0 0.0
        %1034 = vmatprep.subr.mxu0 0.0
        %1035 = vmatpush2.msra.mxu0 0.0
        %1036 = vmatprep.subr.mxu0 0.0
        %1037 = vmatpush2.msra.mxu0 0.0
        %1038 = vmatprep.subr.mxu0 0.0
        %1039 = vmatpush2.msra.mxu0 0.0
        %1040 = vmatprep.subr.mxu0 0.0
        %1041 = vmatpush2.msra.mxu0 0.0
        %1042 = vmatprep.subr.mxu0 0.0
        %1043 = vmatpush2.msra.mxu0 0.0
        %1044 = vmatprep.subr.mxu0 0.0
        %1045 = vmatpush2.msra.mxu0 0.0
        %1046 = vmatprep.subr.mxu0 0.0
        %1047 = vmatpush2.msra.mxu0 0.0
        %1048 = vmatprep.subr.mxu0 0.0
        %1049 = vmatpush2.msra.mxu0 0.0
        %1050 = vmatprep.subr.mxu0 0.0
        %1051 = vmatpush2.msra.mxu0 0.0
        %1052 = vmatprep.subr.mxu0 0.0
        %1053 = vmatpush2.msra.mxu0 0.0
        %1054 = vmatprep.subr.mxu0 0.0
        %1055 = vmatpush2.msra.mxu0 0.0
        %1056 = vmatprep.mubr.f32.mxu0 0.0
        %1057 = vmatmul.mubr.f32.gmra.mxu0 %v811
        %v1058 = vpop.f32.mrf.mxu0
        %v1059 = vadd.f32 %v974, %v1058
        %v1060 = vpop.f32.mrf.mxu0
        %1061 = vmatprep.mubr.f32.mxu0 0.0
        %1062 = vmatmul.mubr.f32.gmra.mxu0 %v814
        %v1063 = vpop.f32.mrf.mxu0
        %v1064 = vadd.f32 %v979, %v1063
        %v1065 = vpop.f32.mrf.mxu0
        %1066 = vmatprep.mubr.f32.mxu0 0.0
        %1067 = vmatmul.mubr.f32.gmra.mxu0 %v817
        %v1068 = vpop.f32.mrf.mxu0
        %v1069 = vadd.f32 %v984, %v1068
        %v1070 = vpop.f32.mrf.mxu0
        %1071 = vmatprep.mubr.f32.mxu0 0.0
        %1072 = vmatmul.mubr.f32.gmra.mxu0 %v820
        %v1073 = vpop.f32.mrf.mxu0
        %v1074 = vadd.f32 %v989, %v1073
        %v1075 = vpop.f32.mrf.mxu0
        %1076 = vdwg.mxu0
        %1077 = vmatprep.subr.mxu0 0.0
        %1078 = vmatpush1.msra.mxu0 0.0
        %1079 = vmatprep.subr.mxu0 0.0
        %1080 = vmatpush1.msra.mxu0 0.0
        %1081 = vmatprep.subr.mxu0 0.0
        %1082 = vmatpush1.msra.mxu0 0.0
        %1083 = vmatprep.subr.mxu0 0.0
        %1084 = vmatpush1.msra.mxu0 0.0
        %1085 = vmatprep.subr.mxu0 0.0
        %1086 = vmatpush1.msra.mxu0 0.0
        %1087 = vmatprep.subr.mxu0 0.0
        %1088 = vmatpush1.msra.mxu0 0.0
        %1089 = vmatprep.subr.mxu0 0.0
        %1090 = vmatpush1.msra.mxu0 0.0
        %1091 = vmatprep.subr.mxu0 0.0
        %1092 = vmatpush1.msra.mxu0 0.0
        %1093 = vmatprep.subr.mxu0 0.0
        %1094 = vmatpush1.msra.mxu0 0.0
        %1095 = vmatprep.subr.mxu0 0.0
        %1096 = vmatpush1.msra.mxu0 0.0
        %1097 = vmatprep.subr.mxu0 0.0
        %1098 = vmatpush1.msra.mxu0 0.0
        %1099 = vmatprep.subr.mxu0 0.0
        %1100 = vmatpush1.msra.mxu0 0.0
        %1101 = vmatprep.subr.mxu0 0.0
        %1102 = vmatpush1.msra.mxu0 %v248
        %1103 = vmatprep.subr.mxu0 0.0
        %1104 = vmatpush1.msra.mxu0 %v247
        %1105 = vmatprep.subr.mxu0 0.0
        %1106 = vmatpush1.msra.mxu0 %v246
        %1107 = vmatprep.subr.mxu0 0.0
        %1108 = vmatpush1.msra.mxu0 %v245
        %1109 = vmatprep.subr.mxu0 0.0
        %1110 = vmatpush2.msra.mxu0 0.0
        %1111 = vmatprep.subr.mxu0 0.0
        %1112 = vmatpush2.msra.mxu0 0.0
        %1113 = vmatprep.subr.mxu0 0.0
        %1114 = vmatpush2.msra.mxu0 0.0
        %1115 = vmatprep.subr.mxu0 0.0
        %1116 = vmatpush2.msra.mxu0 0.0
        %1117 = vmatprep.subr.mxu0 0.0
        %1118 = vmatpush2.msra.mxu0 0.0
        %1119 = vmatprep.subr.mxu0 0.0
        %1120 = vmatpush2.msra.mxu0 0.0
        %1121 = vmatprep.subr.mxu0 0.0
        %1122 = vmatpush2.msra.mxu0 0.0
        %1123 = vmatprep.subr.mxu0 0.0
        %1124 = vmatpush2.msra.mxu0 0.0
        %1125 = vmatprep.subr.mxu0 0.0
        %1126 = vmatpush2.msra.mxu0 0.0
        %1127 = vmatprep.subr.mxu0 0.0
        %1128 = vmatpush2.msra.mxu0 0.0
        %1129 = vmatprep.subr.mxu0 0.0
        %1130 = vmatpush2.msra.mxu0 0.0
        %1131 = vmatprep.subr.mxu0 0.0
        %1132 = vmatpush2.msra.mxu0 0.0
        %1133 = vmatprep.subr.mxu0 0.0
        %1134 = vmatpush2.msra.mxu0 0.0
        %1135 = vmatprep.subr.mxu0 0.0
        %1136 = vmatpush2.msra.mxu0 0.0
        %1137 = vmatprep.subr.mxu0 0.0
        %1138 = vmatpush2.msra.mxu0 0.0
        %1139 = vmatprep.subr.mxu0 0.0
        %1140 = vmatpush2.msra.mxu0 0.0
        %1141 = vmatprep.mubr.f32.mxu0 0.0
        %1142 = vmatmul.mubr.f32.gmra.mxu0 %v714
        %v1143 = vpop.f32.mrf.mxu0
        %v1144 = vadd.f32 0.0, %v1143
        %v1145 = vpop.f32.mrf.mxu0
        %1146 = vmatprep.mubr.f32.mxu0 0.0
        %1147 = vmatmul.mubr.f32.gmra.mxu0 %v717
        %v1148 = vpop.f32.mrf.mxu0
        %v1149 = vadd.f32 0.0, %v1148
        %v1150 = vpop.f32.mrf.mxu0
        %1151 = vmatprep.mubr.f32.mxu0 0.0
        %1152 = vmatmul.mubr.f32.gmra.mxu0 %v720
        %v1153 = vpop.f32.mrf.mxu0
        %v1154 = vadd.f32 0.0, %v1153
        %v1155 = vpop.f32.mrf.mxu0
        %1156 = vmatprep.mubr.f32.mxu0 0.0
        %1157 = vmatmul.mubr.f32.gmra.mxu0 %v723
        %v1158 = vpop.f32.mrf.mxu0
        %v1159 = vadd.f32 0.0, %v1158
        %v1160 = vpop.f32.mrf.mxu0
        %1161 = vdwg.mxu0
        %1162 = vmatprep.subr.mxu0 0.0
        %1163 = vmatpush1.msra.mxu0 0.0
        %1164 = vmatprep.subr.mxu0 0.0
        %1165 = vmatpush1.msra.mxu0 0.0
        %1166 = vmatprep.subr.mxu0 0.0
        %1167 = vmatpush1.msra.mxu0 0.0
        %1168 = vmatprep.subr.mxu0 0.0
        %1169 = vmatpush1.msra.mxu0 0.0
        %1170 = vmatprep.subr.mxu0 0.0
        %1171 = vmatpush1.msra.mxu0 0.0
        %1172 = vmatprep.subr.mxu0 0.0
        %1173 = vmatpush1.msra.mxu0 0.0
        %1174 = vmatprep.subr.mxu0 0.0
        %1175 = vmatpush1.msra.mxu0 0.0
        %1176 = vmatprep.subr.mxu0 0.0
        %1177 = vmatpush1.msra.mxu0 0.0
        %1178 = vmatprep.subr.mxu0 0.0
        %1179 = vmatpush1.msra.mxu0 0.0
        %1180 = vmatprep.subr.mxu0 0.0
        %1181 = vmatpush1.msra.mxu0 0.0
        %1182 = vmatprep.subr.mxu0 0.0
        %1183 = vmatpush1.msra.mxu0 0.0
        %1184 = vmatprep.subr.mxu0 0.0
        %1185 = vmatpush1.msra.mxu0 0.0
        %1186 = vmatprep.subr.mxu0 0.0
        %1187 = vmatpush1.msra.mxu0 %v244
        %1188 = vmatprep.subr.mxu0 0.0
        %1189 = vmatpush1.msra.mxu0 %v243
        %1190 = vmatprep.subr.mxu0 0.0
        %1191 = vmatpush1.msra.mxu0 %v242
        %1192 = vmatprep.subr.mxu0 0.0
        %1193 = vmatpush1.msra.mxu0 %v241
        %1194 = vmatprep.subr.mxu0 0.0
        %1195 = vmatpush2.msra.mxu0 0.0
        %1196 = vmatprep.subr.mxu0 0.0
        %1197 = vmatpush2.msra.mxu0 0.0
        %1198 = vmatprep.subr.mxu0 0.0
        %1199 = vmatpush2.msra.mxu0 0.0
        %1200 = vmatprep.subr.mxu0 0.0
        %1201 = vmatpush2.msra.mxu0 0.0
        %1202 = vmatprep.subr.mxu0 0.0
        %1203 = vmatpush2.msra.mxu0 0.0
        %1204 = vmatprep.subr.mxu0 0.0
        %1205 = vmatpush2.msra.mxu0 0.0
        %1206 = vmatprep.subr.mxu0 0.0
        %1207 = vmatpush2.msra.mxu0 0.0
        %1208 = vmatprep.subr.mxu0 0.0
        %1209 = vmatpush2.msra.mxu0 0.0
        %1210 = vmatprep.subr.mxu0 0.0
        %1211 = vmatpush2.msra.mxu0 0.0
        %1212 = vmatprep.subr.mxu0 0.0
        %1213 = vmatpush2.msra.mxu0 0.0
        %1214 = vmatprep.subr.mxu0 0.0
        %1215 = vmatpush2.msra.mxu0 0.0
        %1216 = vmatprep.subr.mxu0 0.0
        %1217 = vmatpush2.msra.mxu0 0.0
        %1218 = vmatprep.subr.mxu0 0.0
        %1219 = vmatpush2.msra.mxu0 0.0
        %1220 = vmatprep.subr.mxu0 0.0
        %1221 = vmatpush2.msra.mxu0 0.0
        %1222 = vmatprep.subr.mxu0 0.0
        %1223 = vmatpush2.msra.mxu0 0.0
        %1224 = vmatprep.subr.mxu0 0.0
        %1225 = vmatpush2.msra.mxu0 0.0
        %1226 = vmatprep.mubr.f32.mxu0 0.0
        %1227 = vmatmul.mubr.f32.gmra.mxu0 %v811
        %v1228 = vpop.f32.mrf.mxu0
        %v1229 = vadd.f32 %v1144, %v1228
        %v1230 = vpop.f32.mrf.mxu0
        %1231 = vmatprep.mubr.f32.mxu0 0.0
        %1232 = vmatmul.mubr.f32.gmra.mxu0 %v814
        %v1233 = vpop.f32.mrf.mxu0
        %v1234 = vadd.f32 %v1149, %v1233
        %v1235 = vpop.f32.mrf.mxu0
        %1236 = vmatprep.mubr.f32.mxu0 0.0
        %1237 = vmatmul.mubr.f32.gmra.mxu0 %v817
        %v1238 = vpop.f32.mrf.mxu0
        %v1239 = vadd.f32 %v1154, %v1238
        %v1240 = vpop.f32.mrf.mxu0
        %1241 = vmatprep.mubr.f32.mxu0 0.0
        %1242 = vmatmul.mubr.f32.gmra.mxu0 %v820
        %v1243 = vpop.f32.mrf.mxu0
        %v1244 = vadd.f32 %v1159, %v1243
        %v1245 = vpop.f32.mrf.mxu0
        %1246 = vdwg.mxu0
        %v1247 = vadd.f32 %v889, %v695
        %v1248 = vadd.f32 %v894, %v700
        %v1249 = vadd.f32 %v899, %v705
        %v1250 = vadd.f32 %v904, %v710
        %v1251 = vlaneseq
        %v1252 = vshrl.u32 %v1251, 7
        %v1253 = vsub.s32 0, %v1252
        %v1254 = vrot.slane %v274, %v1253
        %v1255 = vadd.f32 %v1247, %v1254
        %v1256 = vadd.f32 %v1248, %v1254
        %v1257 = vadd.f32 %v1249, %v1254
        %v1258 = vadd.f32 %v1250, %v1254
        %v1259 = vxor.u32 %v1255, 2147483648
        %v1260 = vxor.u32 %v1256, 2147483648
        %v1261 = vxor.u32 %v1257, 2147483648
        %v1262 = vxor.u32 %v1258, 2147483648
        %v1263 = vmul.f32 %v1259, 1.442695
        %v1264 = vpow.pop %v1263
        %v1265 = vmul.f32 %v1260, 1.442695
        %v1266 = vpow.pop %v1265
        %v1267 = vmul.f32 %v1261, 1.442695
        %v1268 = vpow.pop %v1267
        %v1269 = vmul.f32 %v1262, 1.442695
        %v1270 = vpow.pop %v1269
        %v1271 = vadd.f32 %v1264, 1.0
        %v1272 = vadd.f32 %v1266, 1.0
        %v1273 = vadd.f32 %v1268, 1.0
        %v1274 = vadd.f32 %v1270, 1.0
        %v1275 = vrcp.pop %v1271
        %v1276 = vmul.f32 1.0, %v1275
        %v1277 = vrcp.pop %v1272
        %v1278 = vmul.f32 1.0, %v1277
        %v1279 = vrcp.pop %v1273
        %v1280 = vmul.f32 1.0, %v1279
        %v1281 = vrcp.pop %v1274
        %v1282 = vmul.f32 1.0, %v1281
        %v1283 = vadd.f32 %v1059, %v695
        %v1284 = vadd.f32 %v1064, %v700
        %v1285 = vadd.f32 %v1069, %v705
        %v1286 = vadd.f32 %v1074, %v710
        %v1287 = vlaneseq
        %v1288 = vshrl.u32 %v1287, 7
        %v1289 = vsub.s32 0, %v1288
        %v1290 = vrot.slane %v275, %v1289
        %v1291 = vadd.f32 %v1283, %v1290
        %v1292 = vadd.f32 %v1284, %v1290
        %v1293 = vadd.f32 %v1285, %v1290
        %v1294 = vadd.f32 %v1286, %v1290
        %v1295 = vxor.u32 %v1291, 2147483648
        %v1296 = vxor.u32 %v1292, 2147483648
        %v1297 = vxor.u32 %v1293, 2147483648
        %v1298 = vxor.u32 %v1294, 2147483648
        %v1299 = vmul.f32 %v1295, 1.442695
        %v1300 = vpow.pop %v1299
        %v1301 = vmul.f32 %v1296, 1.442695
        %v1302 = vpow.pop %v1301
        %v1303 = vmul.f32 %v1297, 1.442695
        %v1304 = vpow.pop %v1303
        %v1305 = vmul.f32 %v1298, 1.442695
        %v1306 = vpow.pop %v1305
        %v1307 = vadd.f32 %v1300, 1.0
        %v1308 = vadd.f32 %v1302, 1.0
        %v1309 = vadd.f32 %v1304, 1.0
        %v1310 = vadd.f32 %v1306, 1.0
        %v1311 = vrcp.pop %v1307
        %v1312 = vmul.f32 1.0, %v1311
        %v1313 = vrcp.pop %v1308
        %v1314 = vmul.f32 1.0, %v1313
        %v1315 = vrcp.pop %v1309
        %v1316 = vmul.f32 1.0, %v1315
        %v1317 = vrcp.pop %v1310
        %v1318 = vmul.f32 1.0, %v1317
        %v1319 = vmul.f32 %v1312, %v379
        %v1320 = vmul.f32 %v1314, %v384
        %v1321 = vmul.f32 %v1316, %v389
        %v1322 = vmul.f32 %v1318, %v394
        %v1324 = vsel %vm401, %v1319, 0
        %v1327 = vsel %vm401, %v1320, 0
        %v1330 = vsel %vm401, %v1321, 0
        %v1333 = vsel %vm401, %v1322, 0
        %1335 = vmatprep.subr.mxu0 0.0
        %1336 = vmatpush1.msra.mxu0 0.0
        %1337 = vmatprep.subr.mxu0 0.0
        %1338 = vmatpush1.msra.mxu0 0.0
        %1339 = vmatprep.subr.mxu0 0.0
        %1340 = vmatpush1.msra.mxu0 0.0
        %1341 = vmatprep.subr.mxu0 0.0
        %1342 = vmatpush1.msra.mxu0 0.0
        %1343 = vmatprep.subr.mxu0 0.0
        %1344 = vmatpush1.msra.mxu0 0.0
        %1345 = vmatprep.subr.mxu0 0.0
        %1346 = vmatpush1.msra.mxu0 0.0
        %1347 = vmatprep.subr.mxu0 0.0
        %1348 = vmatpush1.msra.mxu0 0.0
        %1349 = vmatprep.subr.mxu0 0.0
        %1350 = vmatpush1.msra.mxu0 0.0
        %1351 = vmatprep.subr.mxu0 0.0
        %1352 = vmatpush1.msra.mxu0 0.0
        %1353 = vmatprep.subr.mxu0 0.0
        %1354 = vmatpush1.msra.mxu0 0.0
        %1355 = vmatprep.subr.mxu0 0.0
        %1356 = vmatpush1.msra.mxu0 0.0
        %1357 = vmatprep.subr.mxu0 0.0
        %1358 = vmatpush1.msra.mxu0 0.0
        %1359 = vmatprep.subr.mxu0 0.0
        %1360 = vmatpush1.msra.mxu0 %v256
        %1361 = vmatprep.subr.mxu0 0.0
        %1362 = vmatpush1.msra.mxu0 %v255
        %1363 = vmatprep.subr.mxu0 0.0
        %1364 = vmatpush1.msra.mxu0 %v254
        %1365 = vmatprep.subr.mxu0 0.0
        %1366 = vmatpush1.msra.mxu0 %v253
        %1367 = vmatprep.subr.mxu0 0.0
        %1368 = vmatpush2.msra.mxu0 0.0
        %1369 = vmatprep.subr.mxu0 0.0
        %1370 = vmatpush2.msra.mxu0 0.0
        %1371 = vmatprep.subr.mxu0 0.0
        %1372 = vmatpush2.msra.mxu0 0.0
        %1373 = vmatprep.subr.mxu0 0.0
        %1374 = vmatpush2.msra.mxu0 0.0
        %1375 = vmatprep.subr.mxu0 0.0
        %1376 = vmatpush2.msra.mxu0 0.0
        %1377 = vmatprep.subr.mxu0 0.0
        %1378 = vmatpush2.msra.mxu0 0.0
        %1379 = vmatprep.subr.mxu0 0.0
        %1380 = vmatpush2.msra.mxu0 0.0
        %1381 = vmatprep.subr.mxu0 0.0
        %1382 = vmatpush2.msra.mxu0 0.0
        %1383 = vmatprep.subr.mxu0 0.0
        %1384 = vmatpush2.msra.mxu0 0.0
        %1385 = vmatprep.subr.mxu0 0.0
        %1386 = vmatpush2.msra.mxu0 0.0
        %1387 = vmatprep.subr.mxu0 0.0
        %1388 = vmatpush2.msra.mxu0 0.0
        %1389 = vmatprep.subr.mxu0 0.0
        %1390 = vmatpush2.msra.mxu0 0.0
        %1391 = vmatprep.subr.mxu0 0.0
        %1392 = vmatpush2.msra.mxu0 0.0
        %1393 = vmatprep.subr.mxu0 0.0
        %1394 = vmatpush2.msra.mxu0 0.0
        %1395 = vmatprep.subr.mxu0 0.0
        %1396 = vmatpush2.msra.mxu0 0.0
        %1397 = vmatprep.subr.mxu0 0.0
        %1398 = vmatpush2.msra.mxu0 0.0
        %1399 = vmatprep.mubr.f32.mxu0 0.0
        %1400 = vmatmul.mubr.f32.gmra.mxu0 %v1324
        %v1401 = vpop.f32.mrf.mxu0
        %v1402 = vadd.f32 0.0, %v1401
        %v1403 = vpop.f32.mrf.mxu0
        %1404 = vmatprep.mubr.f32.mxu0 0.0
        %1405 = vmatmul.mubr.f32.gmra.mxu0 %v1327
        %v1406 = vpop.f32.mrf.mxu0
        %v1407 = vadd.f32 0.0, %v1406
        %v1408 = vpop.f32.mrf.mxu0
        %1409 = vmatprep.mubr.f32.mxu0 0.0
        %1410 = vmatmul.mubr.f32.gmra.mxu0 %v1330
        %v1411 = vpop.f32.mrf.mxu0
        %v1412 = vadd.f32 0.0, %v1411
        %v1413 = vpop.f32.mrf.mxu0
        %1414 = vmatprep.mubr.f32.mxu0 0.0
        %1415 = vmatmul.mubr.f32.gmra.mxu0 %v1333
        %v1416 = vpop.f32.mrf.mxu0
        %v1417 = vadd.f32 0.0, %v1416
        %v1418 = vpop.f32.mrf.mxu0
        %1419 = vdwg.mxu0
        %v1420 = vadd.f32 %v1229, %v1402
        %v1421 = vadd.f32 %v1234, %v1407
        %v1422 = vadd.f32 %v1239, %v1412
        %v1423 = vadd.f32 %v1244, %v1417
        %v1424 = vlaneseq
        %v1425 = vshrl.u32 %v1424, 7
        %v1426 = vsub.s32 0, %v1425
        %v1427 = vrot.slane %v276, %v1426
        %v1428 = vadd.f32 %v1420, %v1427
        %v1429 = vadd.f32 %v1421, %v1427
        %v1430 = vadd.f32 %v1422, %v1427
        %v1431 = vadd.f32 %v1423, %v1427
        %v1432 = vtanh.pop %v1428
        %v1433 = vtanh.pop %v1429
        %v1434 = vtanh.pop %v1430
        %v1435 = vtanh.pop %v1431
        %v1436 = vsub.f32 %v1432, %v379
        %v1437 = vsub.f32 %v1433, %v384
        %v1438 = vsub.f32 %v1434, %v389
        %v1439 = vsub.f32 %v1435, %v394
        %v1440 = vmul.f32 %v1276, %v1436
        %v1441 = vmul.f32 %v1278, %v1437
        %v1442 = vmul.f32 %v1280, %v1438
        %v1443 = vmul.f32 %v1282, %v1439
        %v1444 = vadd.f32 %v379, %v1440
        %v1445 = vadd.f32 %v384, %v1441
        %v1446 = vadd.f32 %v389, %v1442
        %v1447 = vadd.f32 %v394, %v1443
        %1448 = vmatprep.subr.mxu0 0.0
        %1449 = vmatpush1.msra.mxu0 0.0
        %1450 = vmatprep.subr.mxu0 0.0
        %1451 = vmatpush1.msra.mxu0 0.0
        %1452 = vmatprep.subr.mxu0 0.0
        %1453 = vmatpush1.msra.mxu0 0.0
        %1454 = vmatprep.subr.mxu0 0.0
        %1455 = vmatpush1.msra.mxu0 0.0
        %1456 = vmatprep.subr.mxu0 0.0
        %1457 = vmatpush1.msra.mxu0 0.0
        %1458 = vmatprep.subr.mxu0 0.0
        %1459 = vmatpush1.msra.mxu0 0.0
        %1460 = vmatprep.subr.mxu0 0.0
        %1461 = vmatpush1.msra.mxu0 0.0
        %1462 = vmatprep.subr.mxu0 0.0
        %1463 = vmatpush1.msra.mxu0 0.0
        %1464 = vmatprep.subr.mxu0 0.0
        %1465 = vmatpush1.msra.mxu0 0.0
        %1466 = vmatprep.subr.mxu0 0.0
        %1467 = vmatpush1.msra.mxu0 0.0
        %1468 = vmatprep.subr.mxu0 0.0
        %1469 = vmatpush1.msra.mxu0 0.0
        %1470 = vmatprep.subr.mxu0 0.0
        %1471 = vmatpush1.msra.mxu0 0.0
        %1472 = vmatprep.subr.mxu0 0.0
        %1473 = vmatpush1.msra.mxu0 %v1447
        %1474 = vmatprep.subr.mxu0 0.0
        %1475 = vmatpush1.msra.mxu0 %v1446
        %1476 = vmatprep.subr.mxu0 0.0
        %1477 = vmatpush1.msra.mxu0 %v1445
        %1478 = vmatprep.subr.mxu0 0.0
        %1479 = vmatpush1.msra.mxu0 %v1444
        %1480 = vmatprep.subr.mxu0 0.0
        %1481 = vmatpush2.msra.mxu0 0.0
        %1482 = vmatprep.subr.mxu0 0.0
        %1483 = vmatpush2.msra.mxu0 0.0
        %1484 = vmatprep.subr.mxu0 0.0
        %1485 = vmatpush2.msra.mxu0 0.0
        %1486 = vmatprep.subr.mxu0 0.0
        %1487 = vmatpush2.msra.mxu0 0.0
        %1488 = vmatprep.subr.mxu0 0.0
        %1489 = vmatpush2.msra.mxu0 0.0
        %1490 = vmatprep.subr.mxu0 0.0
        %1491 = vmatpush2.msra.mxu0 0.0
        %1492 = vmatprep.subr.mxu0 0.0
        %1493 = vmatpush2.msra.mxu0 0.0
        %1494 = vmatprep.subr.mxu0 0.0
        %1495 = vmatpush2.msra.mxu0 0.0
        %1496 = vmatprep.subr.mxu0 0.0
        %1497 = vmatpush2.msra.mxu0 0.0
        %1498 = vmatprep.subr.mxu0 0.0
        %1499 = vmatpush2.msra.mxu0 0.0
        %1500 = vmatprep.subr.mxu0 0.0
        %1501 = vmatpush2.msra.mxu0 0.0
        %1502 = vmatprep.subr.mxu0 0.0
        %1503 = vmatpush2.msra.mxu0 0.0
        %1504 = vmatprep.subr.mxu0 0.0
        %1505 = vmatpush2.msra.mxu0 0.0
        %1506 = vmatprep.subr.mxu0 0.0
        %1507 = vmatpush2.msra.mxu0 0.0
        %1508 = vmatprep.subr.mxu0 0.0
        %1509 = vmatpush2.msra.mxu0 0.0
        %1510 = vmatprep.subr.mxu0 0.0
        %1511 = vmatpush2.msra.mxu0 0.0
        %1512 = vmatprep.mubr.f32.mxu0 0.0
        %1513 = vmatmul.mubr.f32.gmra.mxu0 %v500
        %v1514 = vpop.f32.mrf.mxu0
        %v1515 = vadd.f32 0.0, %v1514
        %v1516 = vpop.f32.mrf.mxu0
        %1517 = vmatprep.mubr.f32.mxu0 0.0
        %1518 = vmatmul.mubr.f32.gmra.mxu0 %v503
        %v1519 = vpop.f32.mrf.mxu0
        %v1520 = vadd.f32 0.0, %v1519
        %v1521 = vpop.f32.mrf.mxu0
        %1522 = vmatprep.mubr.f32.mxu0 0.0
        %1523 = vmatmul.mubr.f32.gmra.mxu0 %v506
        %v1524 = vpop.f32.mrf.mxu0
        %v1525 = vadd.f32 0.0, %v1524
        %v1526 = vpop.f32.mrf.mxu0
        %1527 = vmatprep.mubr.f32.mxu0 0.0
        %1528 = vmatmul.mubr.f32.gmra.mxu0 %v509
        %v1529 = vpop.f32.mrf.mxu0
        %v1530 = vadd.f32 0.0, %v1529
        %v1531 = vpop.f32.mrf.mxu0
        %1532 = vmatprep.mubr.f32.mxu0 0.0
        %1533 = vmatmul.mubr.f32.gmra.mxu0 %v512
        %v1534 = vpop.f32.mrf.mxu0
        %v1535 = vadd.f32 0.0, %v1534
        %v1536 = vpop.f32.mrf.mxu0
        %1537 = vmatprep.mubr.f32.mxu0 0.0
        %1538 = vmatmul.mubr.f32.gmra.mxu0 %v515
        %v1539 = vpop.f32.mrf.mxu0
        %v1540 = vadd.f32 0.0, %v1539
        %v1541 = vpop.f32.mrf.mxu0
        %1542 = vmatprep.mubr.f32.mxu0 0.0
        %1543 = vmatmul.mubr.f32.gmra.mxu0 %v518
        %v1544 = vpop.f32.mrf.mxu0
        %v1545 = vadd.f32 0.0, %v1544
        %v1546 = vpop.f32.mrf.mxu0
        %1547 = vmatprep.mubr.f32.mxu0 0.0
        %1548 = vmatmul.mubr.f32.gmra.mxu0 %v521
        %v1549 = vpop.f32.mrf.mxu0
        %v1550 = vadd.f32 0.0, %v1549
        %v1551 = vpop.f32.mrf.mxu0
        %1552 = vdwg.mxu0
        %v1554 = vsel %vm401, %v1444, 0
        %v1557 = vsel %vm401, %v1445, 0
        %v1560 = vsel %vm401, %v1446, 0
        %v1563 = vsel %vm401, %v1447, 0
        %1565 = vmatprep.subr.mxu0 0.0
        %1566 = vmatpush1.msra.mxu0 0.0
        %1567 = vmatprep.subr.mxu0 0.0
        %1568 = vmatpush1.msra.mxu0 0.0
        %1569 = vmatprep.subr.mxu0 0.0
        %1570 = vmatpush1.msra.mxu0 0.0
        %1571 = vmatprep.subr.mxu0 0.0
        %1572 = vmatpush1.msra.mxu0 0.0
        %1573 = vmatprep.subr.mxu0 0.0
        %1574 = vmatpush1.msra.mxu0 0.0
        %1575 = vmatprep.subr.mxu0 0.0
        %1576 = vmatpush1.msra.mxu0 0.0
        %1577 = vmatprep.subr.mxu0 0.0
        %1578 = vmatpush1.msra.mxu0 0.0
        %1579 = vmatprep.subr.mxu0 0.0
        %1580 = vmatpush1.msra.mxu0 0.0
        %1581 = vmatprep.subr.mxu0 0.0
        %1582 = vmatpush1.msra.mxu0 0.0
        %1583 = vmatprep.subr.mxu0 0.0
        %1584 = vmatpush1.msra.mxu0 0.0
        %1585 = vmatprep.subr.mxu0 0.0
        %1586 = vmatpush1.msra.mxu0 0.0
        %1587 = vmatprep.subr.mxu0 0.0
        %1588 = vmatpush1.msra.mxu0 0.0
        %1589 = vmatprep.subr.mxu0 0.0
        %1590 = vmatpush1.msra.mxu0 %v252
        %1591 = vmatprep.subr.mxu0 0.0
        %1592 = vmatpush1.msra.mxu0 %v251
        %1593 = vmatprep.subr.mxu0 0.0
        %1594 = vmatpush1.msra.mxu0 %v250
        %1595 = vmatprep.subr.mxu0 0.0
        %1596 = vmatpush1.msra.mxu0 %v249
        %1597 = vmatprep.subr.mxu0 0.0
        %1598 = vmatpush2.msra.mxu0 0.0
        %1599 = vmatprep.subr.mxu0 0.0
        %1600 = vmatpush2.msra.mxu0 0.0
        %1601 = vmatprep.subr.mxu0 0.0
        %1602 = vmatpush2.msra.mxu0 0.0
        %1603 = vmatprep.subr.mxu0 0.0
        %1604 = vmatpush2.msra.mxu0 0.0
        %1605 = vmatprep.subr.mxu0 0.0
        %1606 = vmatpush2.msra.mxu0 0.0
        %1607 = vmatprep.subr.mxu0 0.0
        %1608 = vmatpush2.msra.mxu0 0.0
        %1609 = vmatprep.subr.mxu0 0.0
        %1610 = vmatpush2.msra.mxu0 0.0
        %1611 = vmatprep.subr.mxu0 0.0
        %1612 = vmatpush2.msra.mxu0 0.0
        %1613 = vmatprep.subr.mxu0 0.0
        %1614 = vmatpush2.msra.mxu0 0.0
        %1615 = vmatprep.subr.mxu0 0.0
        %1616 = vmatpush2.msra.mxu0 0.0
        %1617 = vmatprep.subr.mxu0 0.0
        %1618 = vmatpush2.msra.mxu0 0.0
        %1619 = vmatprep.subr.mxu0 0.0
        %1620 = vmatpush2.msra.mxu0 0.0
        %1621 = vmatprep.subr.mxu0 0.0
        %1622 = vmatpush2.msra.mxu0 0.0
        %1623 = vmatprep.subr.mxu0 0.0
        %1624 = vmatpush2.msra.mxu0 0.0
        %1625 = vmatprep.subr.mxu0 0.0
        %1626 = vmatpush2.msra.mxu0 0.0
        %1627 = vmatprep.subr.mxu0 0.0
        %1628 = vmatpush2.msra.mxu0 0.0
        %1629 = vmatprep.mubr.f32.mxu0 0.0
        %1630 = vmatmul.mubr.f32.gmra.mxu0 %v1554
        %v1631 = vpop.f32.mrf.mxu0
        %v1632 = vadd.f32 0.0, %v1631
        %v1633 = vpop.f32.mrf.mxu0
        %1634 = vmatprep.mubr.f32.mxu0 0.0
        %1635 = vmatmul.mubr.f32.gmra.mxu0 %v1557
        %v1636 = vpop.f32.mrf.mxu0
        %v1637 = vadd.f32 0.0, %v1636
        %v1638 = vpop.f32.mrf.mxu0
        %1639 = vmatprep.mubr.f32.mxu0 0.0
        %1640 = vmatmul.mubr.f32.gmra.mxu0 %v1560
        %v1641 = vpop.f32.mrf.mxu0
        %v1642 = vadd.f32 0.0, %v1641
        %v1643 = vpop.f32.mrf.mxu0
        %1644 = vmatprep.mubr.f32.mxu0 0.0
        %1645 = vmatmul.mubr.f32.gmra.mxu0 %v1563
        %v1646 = vpop.f32.mrf.mxu0
        %v1647 = vadd.f32 0.0, %v1646
        %v1648 = vpop.f32.mrf.mxu0
        %1649 = vdwg.mxu0
        %v1651 = vsel %vm401, %v1535, 0
        %v1654 = vsel %vm401, %v1540, 0
        %v1657 = vsel %vm401, %v1545, 0
        %v1660 = vsel %vm401, %v1550, 0
        %1662 = vmatprep.subr.mxu0 0.0
        %1663 = vmatpush1.msra.mxu0 0.0
        %1664 = vmatprep.subr.mxu0 0.0
        %1665 = vmatpush1.msra.mxu0 0.0
        %1666 = vmatprep.subr.mxu0 0.0
        %1667 = vmatpush1.msra.mxu0 0.0
        %1668 = vmatprep.subr.mxu0 0.0
        %1669 = vmatpush1.msra.mxu0 0.0
        %1670 = vmatprep.subr.mxu0 0.0
        %1671 = vmatpush1.msra.mxu0 0.0
        %1672 = vmatprep.subr.mxu0 0.0
        %1673 = vmatpush1.msra.mxu0 0.0
        %1674 = vmatprep.subr.mxu0 0.0
        %1675 = vmatpush1.msra.mxu0 0.0
        %1676 = vmatprep.subr.mxu0 0.0
        %1677 = vmatpush1.msra.mxu0 0.0
        %1678 = vmatprep.subr.mxu0 0.0
        %1679 = vmatpush1.msra.mxu0 0.0
        %1680 = vmatprep.subr.mxu0 0.0
        %1681 = vmatpush1.msra.mxu0 0.0
        %1682 = vmatprep.subr.mxu0 0.0
        %1683 = vmatpush1.msra.mxu0 0.0
        %1684 = vmatprep.subr.mxu0 0.0
        %1685 = vmatpush1.msra.mxu0 0.0
        %1686 = vmatprep.subr.mxu0 0.0
        %1687 = vmatpush1.msra.mxu0 %v232
        %1688 = vmatprep.subr.mxu0 0.0
        %1689 = vmatpush1.msra.mxu0 %v231
        %1690 = vmatprep.subr.mxu0 0.0
        %1691 = vmatpush1.msra.mxu0 %v230
        %1692 = vmatprep.subr.mxu0 0.0
        %1693 = vmatpush1.msra.mxu0 %v229
        %1694 = vmatprep.subr.mxu0 0.0
        %1695 = vmatpush2.msra.mxu0 0.0
        %1696 = vmatprep.subr.mxu0 0.0
        %1697 = vmatpush2.msra.mxu0 0.0
        %1698 = vmatprep.subr.mxu0 0.0
        %1699 = vmatpush2.msra.mxu0 0.0
        %1700 = vmatprep.subr.mxu0 0.0
        %1701 = vmatpush2.msra.mxu0 0.0
        %1702 = vmatprep.subr.mxu0 0.0
        %1703 = vmatpush2.msra.mxu0 0.0
        %1704 = vmatprep.subr.mxu0 0.0
        %1705 = vmatpush2.msra.mxu0 0.0
        %1706 = vmatprep.subr.mxu0 0.0
        %1707 = vmatpush2.msra.mxu0 0.0
        %1708 = vmatprep.subr.mxu0 0.0
        %1709 = vmatpush2.msra.mxu0 0.0
        %1710 = vmatprep.subr.mxu0 0.0
        %1711 = vmatpush2.msra.mxu0 0.0
        %1712 = vmatprep.subr.mxu0 0.0
        %1713 = vmatpush2.msra.mxu0 0.0
        %1714 = vmatprep.subr.mxu0 0.0
        %1715 = vmatpush2.msra.mxu0 0.0
        %1716 = vmatprep.subr.mxu0 0.0
        %1717 = vmatpush2.msra.mxu0 0.0
        %1718 = vmatprep.subr.mxu0 0.0
        %1719 = vmatpush2.msra.mxu0 0.0
        %1720 = vmatprep.subr.mxu0 0.0
        %1721 = vmatpush2.msra.mxu0 0.0
        %1722 = vmatprep.subr.mxu0 0.0
        %1723 = vmatpush2.msra.mxu0 0.0
        %1724 = vmatprep.subr.mxu0 0.0
        %1725 = vmatpush2.msra.mxu0 0.0
        %1726 = vmatprep.mubr.f32.mxu0 0.0
        %1727 = vmatmul.mubr.f32.gmra.mxu0 %v1651
        %v1728 = vpop.f32.mrf.mxu0
        %v1729 = vadd.f32 0.0, %v1728
        %v1730 = vpop.f32.mrf.mxu0
        %1731 = vmatprep.mubr.f32.mxu0 0.0
        %1732 = vmatmul.mubr.f32.gmra.mxu0 %v1654
        %v1733 = vpop.f32.mrf.mxu0
        %v1734 = vadd.f32 0.0, %v1733
        %v1735 = vpop.f32.mrf.mxu0
        %1736 = vmatprep.mubr.f32.mxu0 0.0
        %1737 = vmatmul.mubr.f32.gmra.mxu0 %v1657
        %v1738 = vpop.f32.mrf.mxu0
        %v1739 = vadd.f32 0.0, %v1738
        %v1740 = vpop.f32.mrf.mxu0
        %1741 = vmatprep.mubr.f32.mxu0 0.0
        %1742 = vmatmul.mubr.f32.gmra.mxu0 %v1660
        %v1743 = vpop.f32.mrf.mxu0
        %v1744 = vadd.f32 0.0, %v1743
        %v1745 = vpop.f32.mrf.mxu0
        %1746 = vdwg.mxu0
        %v1748 = vsel %vm401, %v1515, 0
        %v1751 = vsel %vm401, %v1520, 0
        %v1754 = vsel %vm401, %v1525, 0
        %v1757 = vsel %vm401, %v1530, 0
        %1759 = vmatprep.subr.mxu0 0.0
        %1760 = vmatpush1.msra.mxu0 0.0
        %1761 = vmatprep.subr.mxu0 0.0
        %1762 = vmatpush1.msra.mxu0 0.0
        %1763 = vmatprep.subr.mxu0 0.0
        %1764 = vmatpush1.msra.mxu0 0.0
        %1765 = vmatprep.subr.mxu0 0.0
        %1766 = vmatpush1.msra.mxu0 0.0
        %1767 = vmatprep.subr.mxu0 0.0
        %1768 = vmatpush1.msra.mxu0 0.0
        %1769 = vmatprep.subr.mxu0 0.0
        %1770 = vmatpush1.msra.mxu0 0.0
        %1771 = vmatprep.subr.mxu0 0.0
        %1772 = vmatpush1.msra.mxu0 0.0
        %1773 = vmatprep.subr.mxu0 0.0
        %1774 = vmatpush1.msra.mxu0 0.0
        %1775 = vmatprep.subr.mxu0 0.0
        %1776 = vmatpush1.msra.mxu0 0.0
        %1777 = vmatprep.subr.mxu0 0.0
        %1778 = vmatpush1.msra.mxu0 0.0
        %1779 = vmatprep.subr.mxu0 0.0
        %1780 = vmatpush1.msra.mxu0 0.0
        %1781 = vmatprep.subr.mxu0 0.0
        %1782 = vmatpush1.msra.mxu0 0.0
        %1783 = vmatprep.subr.mxu0 0.0
        %1784 = vmatpush1.msra.mxu0 %v228
        %1785 = vmatprep.subr.mxu0 0.0
        %1786 = vmatpush1.msra.mxu0 %v227
        %1787 = vmatprep.subr.mxu0 0.0
        %1788 = vmatpush1.msra.mxu0 %v226
        %1789 = vmatprep.subr.mxu0 0.0
        %1790 = vmatpush1.msra.mxu0 %v225
        %1791 = vmatprep.subr.mxu0 0.0
        %1792 = vmatpush2.msra.mxu0 0.0
        %1793 = vmatprep.subr.mxu0 0.0
        %1794 = vmatpush2.msra.mxu0 0.0
        %1795 = vmatprep.subr.mxu0 0.0
        %1796 = vmatpush2.msra.mxu0 0.0
        %1797 = vmatprep.subr.mxu0 0.0
        %1798 = vmatpush2.msra.mxu0 0.0
        %1799 = vmatprep.subr.mxu0 0.0
        %1800 = vmatpush2.msra.mxu0 0.0
        %1801 = vmatprep.subr.mxu0 0.0
        %1802 = vmatpush2.msra.mxu0 0.0
        %1803 = vmatprep.subr.mxu0 0.0
        %1804 = vmatpush2.msra.mxu0 0.0
        %1805 = vmatprep.subr.mxu0 0.0
        %1806 = vmatpush2.msra.mxu0 0.0
        %1807 = vmatprep.subr.mxu0 0.0
        %1808 = vmatpush2.msra.mxu0 0.0
        %1809 = vmatprep.subr.mxu0 0.0
        %1810 = vmatpush2.msra.mxu0 0.0
        %1811 = vmatprep.subr.mxu0 0.0
        %1812 = vmatpush2.msra.mxu0 0.0
        %1813 = vmatprep.subr.mxu0 0.0
        %1814 = vmatpush2.msra.mxu0 0.0
        %1815 = vmatprep.subr.mxu0 0.0
        %1816 = vmatpush2.msra.mxu0 0.0
        %1817 = vmatprep.subr.mxu0 0.0
        %1818 = vmatpush2.msra.mxu0 0.0
        %1819 = vmatprep.subr.mxu0 0.0
        %1820 = vmatpush2.msra.mxu0 0.0
        %1821 = vmatprep.subr.mxu0 0.0
        %1822 = vmatpush2.msra.mxu0 0.0
        %1823 = vmatprep.mubr.f32.mxu0 0.0
        %1824 = vmatmul.mubr.f32.gmra.mxu0 %v1748
        %v1825 = vpop.f32.mrf.mxu0
        %v1826 = vadd.f32 %v1729, %v1825
        %v1827 = vpop.f32.mrf.mxu0
        %1828 = vmatprep.mubr.f32.mxu0 0.0
        %1829 = vmatmul.mubr.f32.gmra.mxu0 %v1751
        %v1830 = vpop.f32.mrf.mxu0
        %v1831 = vadd.f32 %v1734, %v1830
        %v1832 = vpop.f32.mrf.mxu0
        %1833 = vmatprep.mubr.f32.mxu0 0.0
        %1834 = vmatmul.mubr.f32.gmra.mxu0 %v1754
        %v1835 = vpop.f32.mrf.mxu0
        %v1836 = vadd.f32 %v1739, %v1835
        %v1837 = vpop.f32.mrf.mxu0
        %1838 = vmatprep.mubr.f32.mxu0 0.0
        %1839 = vmatmul.mubr.f32.gmra.mxu0 %v1757
        %v1840 = vpop.f32.mrf.mxu0
        %v1841 = vadd.f32 %v1744, %v1840
        %v1842 = vpop.f32.mrf.mxu0
        %1843 = vdwg.mxu0
        %1844 = vmatprep.subr.mxu0 0.0
        %1845 = vmatpush1.msra.mxu0 0.0
        %1846 = vmatprep.subr.mxu0 0.0
        %1847 = vmatpush1.msra.mxu0 0.0
        %1848 = vmatprep.subr.mxu0 0.0
        %1849 = vmatpush1.msra.mxu0 0.0
        %1850 = vmatprep.subr.mxu0 0.0
        %1851 = vmatpush1.msra.mxu0 0.0
        %1852 = vmatprep.subr.mxu0 0.0
        %1853 = vmatpush1.msra.mxu0 0.0
        %1854 = vmatprep.subr.mxu0 0.0
        %1855 = vmatpush1.msra.mxu0 0.0
        %1856 = vmatprep.subr.mxu0 0.0
        %1857 = vmatpush1.msra.mxu0 0.0
        %1858 = vmatprep.subr.mxu0 0.0
        %1859 = vmatpush1.msra.mxu0 0.0
        %1860 = vmatprep.subr.mxu0 0.0
        %1861 = vmatpush1.msra.mxu0 0.0
        %1862 = vmatprep.subr.mxu0 0.0
        %1863 = vmatpush1.msra.mxu0 0.0
        %1864 = vmatprep.subr.mxu0 0.0
        %1865 = vmatpush1.msra.mxu0 0.0
        %1866 = vmatprep.subr.mxu0 0.0
        %1867 = vmatpush1.msra.mxu0 0.0
        %1868 = vmatprep.subr.mxu0 0.0
        %1869 = vmatpush1.msra.mxu0 %v240
        %1870 = vmatprep.subr.mxu0 0.0
        %1871 = vmatpush1.msra.mxu0 %v239
        %1872 = vmatprep.subr.mxu0 0.0
        %1873 = vmatpush1.msra.mxu0 %v238
        %1874 = vmatprep.subr.mxu0 0.0
        %1875 = vmatpush1.msra.mxu0 %v237
        %1876 = vmatprep.subr.mxu0 0.0
        %1877 = vmatpush2.msra.mxu0 0.0
        %1878 = vmatprep.subr.mxu0 0.0
        %1879 = vmatpush2.msra.mxu0 0.0
        %1880 = vmatprep.subr.mxu0 0.0
        %1881 = vmatpush2.msra.mxu0 0.0
        %1882 = vmatprep.subr.mxu0 0.0
        %1883 = vmatpush2.msra.mxu0 0.0
        %1884 = vmatprep.subr.mxu0 0.0
        %1885 = vmatpush2.msra.mxu0 0.0
        %1886 = vmatprep.subr.mxu0 0.0
        %1887 = vmatpush2.msra.mxu0 0.0
        %1888 = vmatprep.subr.mxu0 0.0
        %1889 = vmatpush2.msra.mxu0 0.0
        %1890 = vmatprep.subr.mxu0 0.0
        %1891 = vmatpush2.msra.mxu0 0.0
        %1892 = vmatprep.subr.mxu0 0.0
        %1893 = vmatpush2.msra.mxu0 0.0
        %1894 = vmatprep.subr.mxu0 0.0
        %1895 = vmatpush2.msra.mxu0 0.0
        %1896 = vmatprep.subr.mxu0 0.0
        %1897 = vmatpush2.msra.mxu0 0.0
        %1898 = vmatprep.subr.mxu0 0.0
        %1899 = vmatpush2.msra.mxu0 0.0
        %1900 = vmatprep.subr.mxu0 0.0
        %1901 = vmatpush2.msra.mxu0 0.0
        %1902 = vmatprep.subr.mxu0 0.0
        %1903 = vmatpush2.msra.mxu0 0.0
        %1904 = vmatprep.subr.mxu0 0.0
        %1905 = vmatpush2.msra.mxu0 0.0
        %1906 = vmatprep.subr.mxu0 0.0
        %1907 = vmatpush2.msra.mxu0 0.0
        %1908 = vmatprep.mubr.f32.mxu0 0.0
        %1909 = vmatmul.mubr.f32.gmra.mxu0 %v1651
        %v1910 = vpop.f32.mrf.mxu0
        %v1911 = vadd.f32 0.0, %v1910
        %v1912 = vpop.f32.mrf.mxu0
        %1913 = vmatprep.mubr.f32.mxu0 0.0
        %1914 = vmatmul.mubr.f32.gmra.mxu0 %v1654
        %v1915 = vpop.f32.mrf.mxu0
        %v1916 = vadd.f32 0.0, %v1915
        %v1917 = vpop.f32.mrf.mxu0
        %1918 = vmatprep.mubr.f32.mxu0 0.0
        %1919 = vmatmul.mubr.f32.gmra.mxu0 %v1657
        %v1920 = vpop.f32.mrf.mxu0
        %v1921 = vadd.f32 0.0, %v1920
        %v1922 = vpop.f32.mrf.mxu0
        %1923 = vmatprep.mubr.f32.mxu0 0.0
        %1924 = vmatmul.mubr.f32.gmra.mxu0 %v1660
        %v1925 = vpop.f32.mrf.mxu0
        %v1926 = vadd.f32 0.0, %v1925
        %v1927 = vpop.f32.mrf.mxu0
        %1928 = vdwg.mxu0
        %1929 = vmatprep.subr.mxu0 0.0
        %1930 = vmatpush1.msra.mxu0 0.0
        %1931 = vmatprep.subr.mxu0 0.0
        %1932 = vmatpush1.msra.mxu0 0.0
        %1933 = vmatprep.subr.mxu0 0.0
        %1934 = vmatpush1.msra.mxu0 0.0
        %1935 = vmatprep.subr.mxu0 0.0
        %1936 = vmatpush1.msra.mxu0 0.0
        %1937 = vmatprep.subr.mxu0 0.0
        %1938 = vmatpush1.msra.mxu0 0.0
        %1939 = vmatprep.subr.mxu0 0.0
        %1940 = vmatpush1.msra.mxu0 0.0
        %1941 = vmatprep.subr.mxu0 0.0
        %1942 = vmatpush1.msra.mxu0 0.0
        %1943 = vmatprep.subr.mxu0 0.0
        %1944 = vmatpush1.msra.mxu0 0.0
        %1945 = vmatprep.subr.mxu0 0.0
        %1946 = vmatpush1.msra.mxu0 0.0
        %1947 = vmatprep.subr.mxu0 0.0
        %1948 = vmatpush1.msra.mxu0 0.0
        %1949 = vmatprep.subr.mxu0 0.0
        %1950 = vmatpush1.msra.mxu0 0.0
        %1951 = vmatprep.subr.mxu0 0.0
        %1952 = vmatpush1.msra.mxu0 0.0
        %1953 = vmatprep.subr.mxu0 0.0
        %1954 = vmatpush1.msra.mxu0 %v236
        %1955 = vmatprep.subr.mxu0 0.0
        %1956 = vmatpush1.msra.mxu0 %v235
        %1957 = vmatprep.subr.mxu0 0.0
        %1958 = vmatpush1.msra.mxu0 %v234
        %1959 = vmatprep.subr.mxu0 0.0
        %1960 = vmatpush1.msra.mxu0 %v233
        %1961 = vmatprep.subr.mxu0 0.0
        %1962 = vmatpush2.msra.mxu0 0.0
        %1963 = vmatprep.subr.mxu0 0.0
        %1964 = vmatpush2.msra.mxu0 0.0
        %1965 = vmatprep.subr.mxu0 0.0
        %1966 = vmatpush2.msra.mxu0 0.0
        %1967 = vmatprep.subr.mxu0 0.0
        %1968 = vmatpush2.msra.mxu0 0.0
        %1969 = vmatprep.subr.mxu0 0.0
        %1970 = vmatpush2.msra.mxu0 0.0
        %1971 = vmatprep.subr.mxu0 0.0
        %1972 = vmatpush2.msra.mxu0 0.0
        %1973 = vmatprep.subr.mxu0 0.0
        %1974 = vmatpush2.msra.mxu0 0.0
        %1975 = vmatprep.subr.mxu0 0.0
        %1976 = vmatpush2.msra.mxu0 0.0
        %1977 = vmatprep.subr.mxu0 0.0
        %1978 = vmatpush2.msra.mxu0 0.0
        %1979 = vmatprep.subr.mxu0 0.0
        %1980 = vmatpush2.msra.mxu0 0.0
        %1981 = vmatprep.subr.mxu0 0.0
        %1982 = vmatpush2.msra.mxu0 0.0
        %1983 = vmatprep.subr.mxu0 0.0
        %1984 = vmatpush2.msra.mxu0 0.0
        %1985 = vmatprep.subr.mxu0 0.0
        %1986 = vmatpush2.msra.mxu0 0.0
        %1987 = vmatprep.subr.mxu0 0.0
        %1988 = vmatpush2.msra.mxu0 0.0
        %1989 = vmatprep.subr.mxu0 0.0
        %1990 = vmatpush2.msra.mxu0 0.0
        %1991 = vmatprep.subr.mxu0 0.0
        %1992 = vmatpush2.msra.mxu0 0.0
        %1993 = vmatprep.mubr.f32.mxu0 0.0
        %1994 = vmatmul.mubr.f32.gmra.mxu0 %v1748
        %v1995 = vpop.f32.mrf.mxu0
        %v1996 = vadd.f32 %v1911, %v1995
        %v1997 = vpop.f32.mrf.mxu0
        %1998 = vmatprep.mubr.f32.mxu0 0.0
        %1999 = vmatmul.mubr.f32.gmra.mxu0 %v1751
        %v2000 = vpop.f32.mrf.mxu0
        %v2001 = vadd.f32 %v1916, %v2000
        %v2002 = vpop.f32.mrf.mxu0
        %2003 = vmatprep.mubr.f32.mxu0 0.0
        %2004 = vmatmul.mubr.f32.gmra.mxu0 %v1754
        %v2005 = vpop.f32.mrf.mxu0
        %v2006 = vadd.f32 %v1921, %v2005
        %v2007 = vpop.f32.mrf.mxu0
        %2008 = vmatprep.mubr.f32.mxu0 0.0
        %2009 = vmatmul.mubr.f32.gmra.mxu0 %v1757
        %v2010 = vpop.f32.mrf.mxu0
        %v2011 = vadd.f32 %v1926, %v2010
        %v2012 = vpop.f32.mrf.mxu0
        %2013 = vdwg.mxu0
        %2014 = vmatprep.subr.mxu0 0.0
        %2015 = vmatpush1.msra.mxu0 0.0
        %2016 = vmatprep.subr.mxu0 0.0
        %2017 = vmatpush1.msra.mxu0 0.0
        %2018 = vmatprep.subr.mxu0 0.0
        %2019 = vmatpush1.msra.mxu0 0.0
        %2020 = vmatprep.subr.mxu0 0.0
        %2021 = vmatpush1.msra.mxu0 0.0
        %2022 = vmatprep.subr.mxu0 0.0
        %2023 = vmatpush1.msra.mxu0 0.0
        %2024 = vmatprep.subr.mxu0 0.0
        %2025 = vmatpush1.msra.mxu0 0.0
        %2026 = vmatprep.subr.mxu0 0.0
        %2027 = vmatpush1.msra.mxu0 0.0
        %2028 = vmatprep.subr.mxu0 0.0
        %2029 = vmatpush1.msra.mxu0 0.0
        %2030 = vmatprep.subr.mxu0 0.0
        %2031 = vmatpush1.msra.mxu0 0.0
        %2032 = vmatprep.subr.mxu0 0.0
        %2033 = vmatpush1.msra.mxu0 0.0
        %2034 = vmatprep.subr.mxu0 0.0
        %2035 = vmatpush1.msra.mxu0 0.0
        %2036 = vmatprep.subr.mxu0 0.0
        %2037 = vmatpush1.msra.mxu0 0.0
        %2038 = vmatprep.subr.mxu0 0.0
        %2039 = vmatpush1.msra.mxu0 %v248
        %2040 = vmatprep.subr.mxu0 0.0
        %2041 = vmatpush1.msra.mxu0 %v247
        %2042 = vmatprep.subr.mxu0 0.0
        %2043 = vmatpush1.msra.mxu0 %v246
        %2044 = vmatprep.subr.mxu0 0.0
        %2045 = vmatpush1.msra.mxu0 %v245
        %2046 = vmatprep.subr.mxu0 0.0
        %2047 = vmatpush2.msra.mxu0 0.0
        %2048 = vmatprep.subr.mxu0 0.0
        %2049 = vmatpush2.msra.mxu0 0.0
        %2050 = vmatprep.subr.mxu0 0.0
        %2051 = vmatpush2.msra.mxu0 0.0
        %2052 = vmatprep.subr.mxu0 0.0
        %2053 = vmatpush2.msra.mxu0 0.0
        %2054 = vmatprep.subr.mxu0 0.0
        %2055 = vmatpush2.msra.mxu0 0.0
        %2056 = vmatprep.subr.mxu0 0.0
        %2057 = vmatpush2.msra.mxu0 0.0
        %2058 = vmatprep.subr.mxu0 0.0
        %2059 = vmatpush2.msra.mxu0 0.0
        %2060 = vmatprep.subr.mxu0 0.0
        %2061 = vmatpush2.msra.mxu0 0.0
        %2062 = vmatprep.subr.mxu0 0.0
        %2063 = vmatpush2.msra.mxu0 0.0
        %2064 = vmatprep.subr.mxu0 0.0
        %2065 = vmatpush2.msra.mxu0 0.0
        %2066 = vmatprep.subr.mxu0 0.0
        %2067 = vmatpush2.msra.mxu0 0.0
        %2068 = vmatprep.subr.mxu0 0.0
        %2069 = vmatpush2.msra.mxu0 0.0
        %2070 = vmatprep.subr.mxu0 0.0
        %2071 = vmatpush2.msra.mxu0 0.0
        %2072 = vmatprep.subr.mxu0 0.0
        %2073 = vmatpush2.msra.mxu0 0.0
        %2074 = vmatprep.subr.mxu0 0.0
        %2075 = vmatpush2.msra.mxu0 0.0
        %2076 = vmatprep.subr.mxu0 0.0
        %2077 = vmatpush2.msra.mxu0 0.0
        %2078 = vmatprep.mubr.f32.mxu0 0.0
        %2079 = vmatmul.mubr.f32.gmra.mxu0 %v1651
        %v2080 = vpop.f32.mrf.mxu0
        %v2081 = vadd.f32 0.0, %v2080
        %v2082 = vpop.f32.mrf.mxu0
        %2083 = vmatprep.mubr.f32.mxu0 0.0
        %2084 = vmatmul.mubr.f32.gmra.mxu0 %v1654
        %v2085 = vpop.f32.mrf.mxu0
        %v2086 = vadd.f32 0.0, %v2085
        %v2087 = vpop.f32.mrf.mxu0
        %2088 = vmatprep.mubr.f32.mxu0 0.0
        %2089 = vmatmul.mubr.f32.gmra.mxu0 %v1657
        %v2090 = vpop.f32.mrf.mxu0
        %v2091 = vadd.f32 0.0, %v2090
        %v2092 = vpop.f32.mrf.mxu0
        %2093 = vmatprep.mubr.f32.mxu0 0.0
        %2094 = vmatmul.mubr.f32.gmra.mxu0 %v1660
        %v2095 = vpop.f32.mrf.mxu0
        %v2096 = vadd.f32 0.0, %v2095
        %v2097 = vpop.f32.mrf.mxu0
        %2098 = vdwg.mxu0
        %2099 = vmatprep.subr.mxu0 0.0
        %2100 = vmatpush1.msra.mxu0 0.0
        %2101 = vmatprep.subr.mxu0 0.0
        %2102 = vmatpush1.msra.mxu0 0.0
        %2103 = vmatprep.subr.mxu0 0.0
        %2104 = vmatpush1.msra.mxu0 0.0
        %2105 = vmatprep.subr.mxu0 0.0
        %2106 = vmatpush1.msra.mxu0 0.0
        %2107 = vmatprep.subr.mxu0 0.0
        %2108 = vmatpush1.msra.mxu0 0.0
        %2109 = vmatprep.subr.mxu0 0.0
        %2110 = vmatpush1.msra.mxu0 0.0
        %2111 = vmatprep.subr.mxu0 0.0
        %2112 = vmatpush1.msra.mxu0 0.0
        %2113 = vmatprep.subr.mxu0 0.0
        %2114 = vmatpush1.msra.mxu0 0.0
        %2115 = vmatprep.subr.mxu0 0.0
        %2116 = vmatpush1.msra.mxu0 0.0
        %2117 = vmatprep.subr.mxu0 0.0
        %2118 = vmatpush1.msra.mxu0 0.0
        %2119 = vmatprep.subr.mxu0 0.0
        %2120 = vmatpush1.msra.mxu0 0.0
        %2121 = vmatprep.subr.mxu0 0.0
        %2122 = vmatpush1.msra.mxu0 0.0
        %2123 = vmatprep.subr.mxu0 0.0
        %2124 = vmatpush1.msra.mxu0 %v244
        %2125 = vmatprep.subr.mxu0 0.0
        %2126 = vmatpush1.msra.mxu0 %v243
        %2127 = vmatprep.subr.mxu0 0.0
        %2128 = vmatpush1.msra.mxu0 %v242
        %2129 = vmatprep.subr.mxu0 0.0
        %2130 = vmatpush1.msra.mxu0 %v241
        %2131 = vmatprep.subr.mxu0 0.0
        %2132 = vmatpush2.msra.mxu0 0.0
        %2133 = vmatprep.subr.mxu0 0.0
        %2134 = vmatpush2.msra.mxu0 0.0
        %2135 = vmatprep.subr.mxu0 0.0
        %2136 = vmatpush2.msra.mxu0 0.0
        %2137 = vmatprep.subr.mxu0 0.0
        %2138 = vmatpush2.msra.mxu0 0.0
        %2139 = vmatprep.subr.mxu0 0.0
        %2140 = vmatpush2.msra.mxu0 0.0
        %2141 = vmatprep.subr.mxu0 0.0
        %2142 = vmatpush2.msra.mxu0 0.0
        %2143 = vmatprep.subr.mxu0 0.0
        %2144 = vmatpush2.msra.mxu0 0.0
        %2145 = vmatprep.subr.mxu0 0.0
        %2146 = vmatpush2.msra.mxu0 0.0
        %2147 = vmatprep.subr.mxu0 0.0
        %2148 = vmatpush2.msra.mxu0 0.0
        %2149 = vmatprep.subr.mxu0 0.0
        %2150 = vmatpush2.msra.mxu0 0.0
        %2151 = vmatprep.subr.mxu0 0.0
        %2152 = vmatpush2.msra.mxu0 0.0
        %2153 = vmatprep.subr.mxu0 0.0
        %2154 = vmatpush2.msra.mxu0 0.0
        %2155 = vmatprep.subr.mxu0 0.0
        %2156 = vmatpush2.msra.mxu0 0.0
        %2157 = vmatprep.subr.mxu0 0.0
        %2158 = vmatpush2.msra.mxu0 0.0
        %2159 = vmatprep.subr.mxu0 0.0
        %2160 = vmatpush2.msra.mxu0 0.0
        %2161 = vmatprep.subr.mxu0 0.0
        %2162 = vmatpush2.msra.mxu0 0.0
        %2163 = vmatprep.mubr.f32.mxu0 0.0
        %2164 = vmatmul.mubr.f32.gmra.mxu0 %v1748
        %v2165 = vpop.f32.mrf.mxu0
        %v2166 = vadd.f32 %v2081, %v2165
        %v2167 = vpop.f32.mrf.mxu0
        %2168 = vmatprep.mubr.f32.mxu0 0.0
        %2169 = vmatmul.mubr.f32.gmra.mxu0 %v1751
        %v2170 = vpop.f32.mrf.mxu0
        %v2171 = vadd.f32 %v2086, %v2170
        %v2172 = vpop.f32.mrf.mxu0
        %2173 = vmatprep.mubr.f32.mxu0 0.0
        %2174 = vmatmul.mubr.f32.gmra.mxu0 %v1754
        %v2175 = vpop.f32.mrf.mxu0
        %v2176 = vadd.f32 %v2091, %v2175
        %v2177 = vpop.f32.mrf.mxu0
        %2178 = vmatprep.mubr.f32.mxu0 0.0
        %2179 = vmatmul.mubr.f32.gmra.mxu0 %v1757
        %v2180 = vpop.f32.mrf.mxu0
        %v2181 = vadd.f32 %v2096, %v2180
        %v2182 = vpop.f32.mrf.mxu0
        %2183 = vdwg.mxu0
        %v2184 = vadd.f32 %v1826, %v1632
        %v2185 = vadd.f32 %v1831, %v1637
        %v2186 = vadd.f32 %v1836, %v1642
        %v2187 = vadd.f32 %v1841, %v1647
        %v2188 = vadd.f32 %v2184, %v1254
        %v2189 = vadd.f32 %v2185, %v1254
        %v2190 = vadd.f32 %v2186, %v1254
        %v2191 = vadd.f32 %v2187, %v1254
        %v2192 = vxor.u32 %v2188, 2147483648
        %v2193 = vxor.u32 %v2189, 2147483648
        %v2194 = vxor.u32 %v2190, 2147483648
        %v2195 = vxor.u32 %v2191, 2147483648
        %v2196 = vmul.f32 %v2192, 1.442695
        %v2197 = vpow.pop %v2196
        %v2198 = vmul.f32 %v2193, 1.442695
        %v2199 = vpow.pop %v2198
        %v2200 = vmul.f32 %v2194, 1.442695
        %v2201 = vpow.pop %v2200
        %v2202 = vmul.f32 %v2195, 1.442695
        %v2203 = vpow.pop %v2202
        %v2204 = vadd.f32 %v2197, 1.0
        %v2205 = vadd.f32 %v2199, 1.0
        %v2206 = vadd.f32 %v2201, 1.0
        %v2207 = vadd.f32 %v2203, 1.0
        %v2208 = vrcp.pop %v2204
        %v2209 = vmul.f32 1.0, %v2208
        %v2210 = vrcp.pop %v2205
        %v2211 = vmul.f32 1.0, %v2210
        %v2212 = vrcp.pop %v2206
        %v2213 = vmul.f32 1.0, %v2212
        %v2214 = vrcp.pop %v2207
        %v2215 = vmul.f32 1.0, %v2214
        %v2216 = vadd.f32 %v1996, %v1632
        %v2217 = vadd.f32 %v2001, %v1637
        %v2218 = vadd.f32 %v2006, %v1642
        %v2219 = vadd.f32 %v2011, %v1647
        %v2220 = vadd.f32 %v2216, %v1290
        %v2221 = vadd.f32 %v2217, %v1290
        %v2222 = vadd.f32 %v2218, %v1290
        %v2223 = vadd.f32 %v2219, %v1290
        %v2224 = vxor.u32 %v2220, 2147483648
        %v2225 = vxor.u32 %v2221, 2147483648
        %v2226 = vxor.u32 %v2222, 2147483648
        %v2227 = vxor.u32 %v2223, 2147483648
        %v2228 = vmul.f32 %v2224, 1.442695
        %v2229 = vpow.pop %v2228
        %v2230 = vmul.f32 %v2225, 1.442695
        %v2231 = vpow.pop %v2230
        %v2232 = vmul.f32 %v2226, 1.442695
        %v2233 = vpow.pop %v2232
        %v2234 = vmul.f32 %v2227, 1.442695
        %v2235 = vpow.pop %v2234
        %v2236 = vadd.f32 %v2229, 1.0
        %v2237 = vadd.f32 %v2231, 1.0
        %v2238 = vadd.f32 %v2233, 1.0
        %v2239 = vadd.f32 %v2235, 1.0
        %v2240 = vrcp.pop %v2236
        %v2241 = vmul.f32 1.0, %v2240
        %v2242 = vrcp.pop %v2237
        %v2243 = vmul.f32 1.0, %v2242
        %v2244 = vrcp.pop %v2238
        %v2245 = vmul.f32 1.0, %v2244
        %v2246 = vrcp.pop %v2239
        %v2247 = vmul.f32 1.0, %v2246
        %v2248 = vmul.f32 %v2241, %v1444
        %v2249 = vmul.f32 %v2243, %v1445
        %v2250 = vmul.f32 %v2245, %v1446
        %v2251 = vmul.f32 %v2247, %v1447
        %v2253 = vsel %vm401, %v2248, 0
        %v2256 = vsel %vm401, %v2249, 0
        %v2259 = vsel %vm401, %v2250, 0
        %v2262 = vsel %vm401, %v2251, 0
        %2264 = vmatprep.subr.mxu0 0.0
        %2265 = vmatpush1.msra.mxu0 0.0
        %2266 = vmatprep.subr.mxu0 0.0
        %2267 = vmatpush1.msra.mxu0 0.0
        %2268 = vmatprep.subr.mxu0 0.0
        %2269 = vmatpush1.msra.mxu0 0.0
        %2270 = vmatprep.subr.mxu0 0.0
        %2271 = vmatpush1.msra.mxu0 0.0
        %2272 = vmatprep.subr.mxu0 0.0
        %2273 = vmatpush1.msra.mxu0 0.0
        %2274 = vmatprep.subr.mxu0 0.0
        %2275 = vmatpush1.msra.mxu0 0.0
        %2276 = vmatprep.subr.mxu0 0.0
        %2277 = vmatpush1.msra.mxu0 0.0
        %2278 = vmatprep.subr.mxu0 0.0
        %2279 = vmatpush1.msra.mxu0 0.0
        %2280 = vmatprep.subr.mxu0 0.0
        %2281 = vmatpush1.msra.mxu0 0.0
        %2282 = vmatprep.subr.mxu0 0.0
        %2283 = vmatpush1.msra.mxu0 0.0
        %2284 = vmatprep.subr.mxu0 0.0
        %2285 = vmatpush1.msra.mxu0 0.0
        %2286 = vmatprep.subr.mxu0 0.0
        %2287 = vmatpush1.msra.mxu0 0.0
        %2288 = vmatprep.subr.mxu0 0.0
        %2289 = vmatpush1.msra.mxu0 %v256
        %2290 = vmatprep.subr.mxu0 0.0
        %2291 = vmatpush1.msra.mxu0 %v255
        %2292 = vmatprep.subr.mxu0 0.0
        %2293 = vmatpush1.msra.mxu0 %v254
        %2294 = vmatprep.subr.mxu0 0.0
        %2295 = vmatpush1.msra.mxu0 %v253
        %2296 = vmatprep.subr.mxu0 0.0
        %2297 = vmatpush2.msra.mxu0 0.0
        %2298 = vmatprep.subr.mxu0 0.0
        %2299 = vmatpush2.msra.mxu0 0.0
        %2300 = vmatprep.subr.mxu0 0.0
        %2301 = vmatpush2.msra.mxu0 0.0
        %2302 = vmatprep.subr.mxu0 0.0
        %2303 = vmatpush2.msra.mxu0 0.0
        %2304 = vmatprep.subr.mxu0 0.0
        %2305 = vmatpush2.msra.mxu0 0.0
        %2306 = vmatprep.subr.mxu0 0.0
        %2307 = vmatpush2.msra.mxu0 0.0
        %2308 = vmatprep.subr.mxu0 0.0
        %2309 = vmatpush2.msra.mxu0 0.0
        %2310 = vmatprep.subr.mxu0 0.0
        %2311 = vmatpush2.msra.mxu0 0.0
        %2312 = vmatprep.subr.mxu0 0.0
        %2313 = vmatpush2.msra.mxu0 0.0
        %2314 = vmatprep.subr.mxu0 0.0
        %2315 = vmatpush2.msra.mxu0 0.0
        %2316 = vmatprep.subr.mxu0 0.0
        %2317 = vmatpush2.msra.mxu0 0.0
        %2318 = vmatprep.subr.mxu0 0.0
        %2319 = vmatpush2.msra.mxu0 0.0
        %2320 = vmatprep.subr.mxu0 0.0
        %2321 = vmatpush2.msra.mxu0 0.0
        %2322 = vmatprep.subr.mxu0 0.0
        %2323 = vmatpush2.msra.mxu0 0.0
        %2324 = vmatprep.subr.mxu0 0.0
        %2325 = vmatpush2.msra.mxu0 0.0
        %2326 = vmatprep.subr.mxu0 0.0
        %2327 = vmatpush2.msra.mxu0 0.0
        %2328 = vmatprep.mubr.f32.mxu0 0.0
        %2329 = vmatmul.mubr.f32.gmra.mxu0 %v2253
        %v2330 = vpop.f32.mrf.mxu0
        %v2331 = vadd.f32 0.0, %v2330
        %v2332 = vpop.f32.mrf.mxu0
        %2333 = vmatprep.mubr.f32.mxu0 0.0
        %2334 = vmatmul.mubr.f32.gmra.mxu0 %v2256
        %v2335 = vpop.f32.mrf.mxu0
        %v2336 = vadd.f32 0.0, %v2335
        %v2337 = vpop.f32.mrf.mxu0
        %2338 = vmatprep.mubr.f32.mxu0 0.0
        %2339 = vmatmul.mubr.f32.gmra.mxu0 %v2259
        %v2340 = vpop.f32.mrf.mxu0
        %v2341 = vadd.f32 0.0, %v2340
        %v2342 = vpop.f32.mrf.mxu0
        %2343 = vmatprep.mubr.f32.mxu0 0.0
        %2344 = vmatmul.mubr.f32.gmra.mxu0 %v2262
        %v2345 = vpop.f32.mrf.mxu0
        %v2346 = vadd.f32 0.0, %v2345
        %v2347 = vpop.f32.mrf.mxu0
        %2348 = vdwg.mxu0
        %v2349 = vadd.f32 %v2166, %v2331
        %v2350 = vadd.f32 %v2171, %v2336
        %v2351 = vadd.f32 %v2176, %v2341
        %v2352 = vadd.f32 %v2181, %v2346
        %v2353 = vadd.f32 %v2349, %v1427
        %v2354 = vadd.f32 %v2350, %v1427
        %v2355 = vadd.f32 %v2351, %v1427
        %v2356 = vadd.f32 %v2352, %v1427
        %v2357 = vtanh.pop %v2353
        %v2358 = vtanh.pop %v2354
        %v2359 = vtanh.pop %v2355
        %v2360 = vtanh.pop %v2356
        %v2361 = vsub.f32 %v2357, %v1444
        %v2362 = vsub.f32 %v2358, %v1445
        %v2363 = vsub.f32 %v2359, %v1446
        %v2364 = vsub.f32 %v2360, %v1447
        %v2365 = vmul.f32 %v2209, %v2361
        %v2366 = vmul.f32 %v2211, %v2362
        %v2367 = vmul.f32 %v2213, %v2363
        %v2368 = vmul.f32 %v2215, %v2364
        %v2369 = vadd.f32 %v1444, %v2365
        %v2370 = vadd.f32 %v1445, %v2366
        %v2371 = vadd.f32 %v1446, %v2367
        %v2372 = vadd.f32 %v1447, %v2368
        %2373 = vmatprep.subr.mxu0 0.0
        %2374 = vmatpush1.msra.mxu0 0.0
        %2375 = vmatprep.subr.mxu0 0.0
        %2376 = vmatpush1.msra.mxu0 0.0
        %2377 = vmatprep.subr.mxu0 0.0
        %2378 = vmatpush1.msra.mxu0 0.0
        %2379 = vmatprep.subr.mxu0 0.0
        %2380 = vmatpush1.msra.mxu0 0.0
        %2381 = vmatprep.subr.mxu0 0.0
        %2382 = vmatpush1.msra.mxu0 0.0
        %2383 = vmatprep.subr.mxu0 0.0
        %2384 = vmatpush1.msra.mxu0 0.0
        %2385 = vmatprep.subr.mxu0 0.0
        %2386 = vmatpush1.msra.mxu0 0.0
        %2387 = vmatprep.subr.mxu0 0.0
        %2388 = vmatpush1.msra.mxu0 0.0
        %2389 = vmatprep.subr.mxu0 0.0
        %2390 = vmatpush1.msra.mxu0 0.0
        %2391 = vmatprep.subr.mxu0 0.0
        %2392 = vmatpush1.msra.mxu0 0.0
        %2393 = vmatprep.subr.mxu0 0.0
        %2394 = vmatpush1.msra.mxu0 0.0
        %2395 = vmatprep.subr.mxu0 0.0
        %2396 = vmatpush1.msra.mxu0 0.0
        %2397 = vmatprep.subr.mxu0 0.0
        %2398 = vmatpush1.msra.mxu0 %v2372
        %2399 = vmatprep.subr.mxu0 0.0
        %2400 = vmatpush1.msra.mxu0 %v2371
        %2401 = vmatprep.subr.mxu0 0.0
        %2402 = vmatpush1.msra.mxu0 %v2370
        %2403 = vmatprep.subr.mxu0 0.0
        %2404 = vmatpush1.msra.mxu0 %v2369
        %2405 = vmatprep.subr.mxu0 0.0
        %2406 = vmatpush2.msra.mxu0 0.0
        %2407 = vmatprep.subr.mxu0 0.0
        %2408 = vmatpush2.msra.mxu0 0.0
        %2409 = vmatprep.subr.mxu0 0.0
        %2410 = vmatpush2.msra.mxu0 0.0
        %2411 = vmatprep.subr.mxu0 0.0
        %2412 = vmatpush2.msra.mxu0 0.0
        %2413 = vmatprep.subr.mxu0 0.0
        %2414 = vmatpush2.msra.mxu0 0.0
        %2415 = vmatprep.subr.mxu0 0.0
        %2416 = vmatpush2.msra.mxu0 0.0
        %2417 = vmatprep.subr.mxu0 0.0
        %2418 = vmatpush2.msra.mxu0 0.0
        %2419 = vmatprep.subr.mxu0 0.0
        %2420 = vmatpush2.msra.mxu0 0.0
        %2421 = vmatprep.subr.mxu0 0.0
        %2422 = vmatpush2.msra.mxu0 0.0
        %2423 = vmatprep.subr.mxu0 0.0
        %2424 = vmatpush2.msra.mxu0 0.0
        %2425 = vmatprep.subr.mxu0 0.0
        %2426 = vmatpush2.msra.mxu0 0.0
        %2427 = vmatprep.subr.mxu0 0.0
        %2428 = vmatpush2.msra.mxu0 0.0
        %2429 = vmatprep.subr.mxu0 0.0
        %2430 = vmatpush2.msra.mxu0 0.0
        %2431 = vmatprep.subr.mxu0 0.0
        %2432 = vmatpush2.msra.mxu0 0.0
        %2433 = vmatprep.subr.mxu0 0.0
        %2434 = vmatpush2.msra.mxu0 0.0
        %2435 = vmatprep.subr.mxu0 0.0
        %2436 = vmatpush2.msra.mxu0 0.0
        %2437 = vmatprep.mubr.f32.mxu0 0.0
        %2438 = vmatmul.mubr.f32.gmra.mxu0 %v500
        %v2439 = vpop.f32.mrf.mxu0
        %v2440 = vadd.f32 0.0, %v2439
        %v2441 = vpop.f32.mrf.mxu0
        %2442 = vmatprep.mubr.f32.mxu0 0.0
        %2443 = vmatmul.mubr.f32.gmra.mxu0 %v503
        %v2444 = vpop.f32.mrf.mxu0
        %v2445 = vadd.f32 0.0, %v2444
        %v2446 = vpop.f32.mrf.mxu0
        %2447 = vmatprep.mubr.f32.mxu0 0.0
        %2448 = vmatmul.mubr.f32.gmra.mxu0 %v506
        %v2449 = vpop.f32.mrf.mxu0
        %v2450 = vadd.f32 0.0, %v2449
        %v2451 = vpop.f32.mrf.mxu0
        %2452 = vmatprep.mubr.f32.mxu0 0.0
        %2453 = vmatmul.mubr.f32.gmra.mxu0 %v509
        %v2454 = vpop.f32.mrf.mxu0
        %v2455 = vadd.f32 0.0, %v2454
        %v2456 = vpop.f32.mrf.mxu0
        %2457 = vmatprep.mubr.f32.mxu0 0.0
        %2458 = vmatmul.mubr.f32.gmra.mxu0 %v512
        %v2459 = vpop.f32.mrf.mxu0
        %v2460 = vadd.f32 0.0, %v2459
        %v2461 = vpop.f32.mrf.mxu0
        %2462 = vmatprep.mubr.f32.mxu0 0.0
        %2463 = vmatmul.mubr.f32.gmra.mxu0 %v515
        %v2464 = vpop.f32.mrf.mxu0
        %v2465 = vadd.f32 0.0, %v2464
        %v2466 = vpop.f32.mrf.mxu0
        %2467 = vmatprep.mubr.f32.mxu0 0.0
        %2468 = vmatmul.mubr.f32.gmra.mxu0 %v518
        %v2469 = vpop.f32.mrf.mxu0
        %v2470 = vadd.f32 0.0, %v2469
        %v2471 = vpop.f32.mrf.mxu0
        %2472 = vmatprep.mubr.f32.mxu0 0.0
        %2473 = vmatmul.mubr.f32.gmra.mxu0 %v521
        %v2474 = vpop.f32.mrf.mxu0
        %v2475 = vadd.f32 0.0, %v2474
        %v2476 = vpop.f32.mrf.mxu0
        %2477 = vdwg.mxu0
        %v2479 = vsel %vm401, %v2369, 0
        %v2482 = vsel %vm401, %v2370, 0
        %v2485 = vsel %vm401, %v2371, 0
        %v2488 = vsel %vm401, %v2372, 0
        %2490 = vmatprep.subr.mxu0 0.0
        %2491 = vmatpush1.msra.mxu0 0.0
        %2492 = vmatprep.subr.mxu0 0.0
        %2493 = vmatpush1.msra.mxu0 0.0
        %2494 = vmatprep.subr.mxu0 0.0
        %2495 = vmatpush1.msra.mxu0 0.0
        %2496 = vmatprep.subr.mxu0 0.0
        %2497 = vmatpush1.msra.mxu0 0.0
        %2498 = vmatprep.subr.mxu0 0.0
        %2499 = vmatpush1.msra.mxu0 0.0
        %2500 = vmatprep.subr.mxu0 0.0
        %2501 = vmatpush1.msra.mxu0 0.0
        %2502 = vmatprep.subr.mxu0 0.0
        %2503 = vmatpush1.msra.mxu0 0.0
        %2504 = vmatprep.subr.mxu0 0.0
        %2505 = vmatpush1.msra.mxu0 0.0
        %2506 = vmatprep.subr.mxu0 0.0
        %2507 = vmatpush1.msra.mxu0 0.0
        %2508 = vmatprep.subr.mxu0 0.0
        %2509 = vmatpush1.msra.mxu0 0.0
        %2510 = vmatprep.subr.mxu0 0.0
        %2511 = vmatpush1.msra.mxu0 0.0
        %2512 = vmatprep.subr.mxu0 0.0
        %2513 = vmatpush1.msra.mxu0 0.0
        %2514 = vmatprep.subr.mxu0 0.0
        %2515 = vmatpush1.msra.mxu0 %v252
        %2516 = vmatprep.subr.mxu0 0.0
        %2517 = vmatpush1.msra.mxu0 %v251
        %2518 = vmatprep.subr.mxu0 0.0
        %2519 = vmatpush1.msra.mxu0 %v250
        %2520 = vmatprep.subr.mxu0 0.0
        %2521 = vmatpush1.msra.mxu0 %v249
        %2522 = vmatprep.subr.mxu0 0.0
        %2523 = vmatpush2.msra.mxu0 0.0
        %2524 = vmatprep.subr.mxu0 0.0
        %2525 = vmatpush2.msra.mxu0 0.0
        %2526 = vmatprep.subr.mxu0 0.0
        %2527 = vmatpush2.msra.mxu0 0.0
        %2528 = vmatprep.subr.mxu0 0.0
        %2529 = vmatpush2.msra.mxu0 0.0
        %2530 = vmatprep.subr.mxu0 0.0
        %2531 = vmatpush2.msra.mxu0 0.0
        %2532 = vmatprep.subr.mxu0 0.0
        %2533 = vmatpush2.msra.mxu0 0.0
        %2534 = vmatprep.subr.mxu0 0.0
        %2535 = vmatpush2.msra.mxu0 0.0
        %2536 = vmatprep.subr.mxu0 0.0
        %2537 = vmatpush2.msra.mxu0 0.0
        %2538 = vmatprep.subr.mxu0 0.0
        %2539 = vmatpush2.msra.mxu0 0.0
        %2540 = vmatprep.subr.mxu0 0.0
        %2541 = vmatpush2.msra.mxu0 0.0
        %2542 = vmatprep.subr.mxu0 0.0
        %2543 = vmatpush2.msra.mxu0 0.0
        %2544 = vmatprep.subr.mxu0 0.0
        %2545 = vmatpush2.msra.mxu0 0.0
        %2546 = vmatprep.subr.mxu0 0.0
        %2547 = vmatpush2.msra.mxu0 0.0
        %2548 = vmatprep.subr.mxu0 0.0
        %2549 = vmatpush2.msra.mxu0 0.0
        %2550 = vmatprep.subr.mxu0 0.0
        %2551 = vmatpush2.msra.mxu0 0.0
        %2552 = vmatprep.subr.mxu0 0.0
        %2553 = vmatpush2.msra.mxu0 0.0
        %2554 = vmatprep.mubr.f32.mxu0 0.0
        %2555 = vmatmul.mubr.f32.gmra.mxu0 %v2479
        %v2556 = vpop.f32.mrf.mxu0
        %v2557 = vadd.f32 0.0, %v2556
        %v2558 = vpop.f32.mrf.mxu0
        %2559 = vmatprep.mubr.f32.mxu0 0.0
        %2560 = vmatmul.mubr.f32.gmra.mxu0 %v2482
        %v2561 = vpop.f32.mrf.mxu0
        %v2562 = vadd.f32 0.0, %v2561
        %v2563 = vpop.f32.mrf.mxu0
        %2564 = vmatprep.mubr.f32.mxu0 0.0
        %2565 = vmatmul.mubr.f32.gmra.mxu0 %v2485
        %v2566 = vpop.f32.mrf.mxu0
        %v2567 = vadd.f32 0.0, %v2566
        %v2568 = vpop.f32.mrf.mxu0
        %2569 = vmatprep.mubr.f32.mxu0 0.0
        %2570 = vmatmul.mubr.f32.gmra.mxu0 %v2488
        %v2571 = vpop.f32.mrf.mxu0
        %v2572 = vadd.f32 0.0, %v2571
        %v2573 = vpop.f32.mrf.mxu0
        %2574 = vdwg.mxu0
        %v2576 = vsel %vm401, %v2460, 0
        %v2579 = vsel %vm401, %v2465, 0
        %v2582 = vsel %vm401, %v2470, 0
        %v2585 = vsel %vm401, %v2475, 0
        %2587 = vmatprep.subr.mxu0 0.0
        %2588 = vmatpush1.msra.mxu0 0.0
        %2589 = vmatprep.subr.mxu0 0.0
        %2590 = vmatpush1.msra.mxu0 0.0
        %2591 = vmatprep.subr.mxu0 0.0
        %2592 = vmatpush1.msra.mxu0 0.0
        %2593 = vmatprep.subr.mxu0 0.0
        %2594 = vmatpush1.msra.mxu0 0.0
        %2595 = vmatprep.subr.mxu0 0.0
        %2596 = vmatpush1.msra.mxu0 0.0
        %2597 = vmatprep.subr.mxu0 0.0
        %2598 = vmatpush1.msra.mxu0 0.0
        %2599 = vmatprep.subr.mxu0 0.0
        %2600 = vmatpush1.msra.mxu0 0.0
        %2601 = vmatprep.subr.mxu0 0.0
        %2602 = vmatpush1.msra.mxu0 0.0
        %2603 = vmatprep.subr.mxu0 0.0
        %2604 = vmatpush1.msra.mxu0 0.0
        %2605 = vmatprep.subr.mxu0 0.0
        %2606 = vmatpush1.msra.mxu0 0.0
        %2607 = vmatprep.subr.mxu0 0.0
        %2608 = vmatpush1.msra.mxu0 0.0
        %2609 = vmatprep.subr.mxu0 0.0
        %2610 = vmatpush1.msra.mxu0 0.0
        %2611 = vmatprep.subr.mxu0 0.0
        %2612 = vmatpush1.msra.mxu0 %v232
        %2613 = vmatprep.subr.mxu0 0.0
        %2614 = vmatpush1.msra.mxu0 %v231
        %2615 = vmatprep.subr.mxu0 0.0
        %2616 = vmatpush1.msra.mxu0 %v230
        %2617 = vmatprep.subr.mxu0 0.0
        %2618 = vmatpush1.msra.mxu0 %v229
        %2619 = vmatprep.subr.mxu0 0.0
        %2620 = vmatpush2.msra.mxu0 0.0
        %2621 = vmatprep.subr.mxu0 0.0
        %2622 = vmatpush2.msra.mxu0 0.0
        %2623 = vmatprep.subr.mxu0 0.0
        %2624 = vmatpush2.msra.mxu0 0.0
        %2625 = vmatprep.subr.mxu0 0.0
        %2626 = vmatpush2.msra.mxu0 0.0
        %2627 = vmatprep.subr.mxu0 0.0
        %2628 = vmatpush2.msra.mxu0 0.0
        %2629 = vmatprep.subr.mxu0 0.0
        %2630 = vmatpush2.msra.mxu0 0.0
        %2631 = vmatprep.subr.mxu0 0.0
        %2632 = vmatpush2.msra.mxu0 0.0
        %2633 = vmatprep.subr.mxu0 0.0
        %2634 = vmatpush2.msra.mxu0 0.0
        %2635 = vmatprep.subr.mxu0 0.0
        %2636 = vmatpush2.msra.mxu0 0.0
        %2637 = vmatprep.subr.mxu0 0.0
        %2638 = vmatpush2.msra.mxu0 0.0
        %2639 = vmatprep.subr.mxu0 0.0
        %2640 = vmatpush2.msra.mxu0 0.0
        %2641 = vmatprep.subr.mxu0 0.0
        %2642 = vmatpush2.msra.mxu0 0.0
        %2643 = vmatprep.subr.mxu0 0.0
        %2644 = vmatpush2.msra.mxu0 0.0
        %2645 = vmatprep.subr.mxu0 0.0
        %2646 = vmatpush2.msra.mxu0 0.0
        %2647 = vmatprep.subr.mxu0 0.0
        %2648 = vmatpush2.msra.mxu0 0.0
        %2649 = vmatprep.subr.mxu0 0.0
        %2650 = vmatpush2.msra.mxu0 0.0
        %2651 = vmatprep.mubr.f32.mxu0 0.0
        %2652 = vmatmul.mubr.f32.gmra.mxu0 %v2576
        %v2653 = vpop.f32.mrf.mxu0
        %v2654 = vadd.f32 0.0, %v2653
        %v2655 = vpop.f32.mrf.mxu0
        %2656 = vmatprep.mubr.f32.mxu0 0.0
        %2657 = vmatmul.mubr.f32.gmra.mxu0 %v2579
        %v2658 = vpop.f32.mrf.mxu0
        %v2659 = vadd.f32 0.0, %v2658
        %v2660 = vpop.f32.mrf.mxu0
        %2661 = vmatprep.mubr.f32.mxu0 0.0
        %2662 = vmatmul.mubr.f32.gmra.mxu0 %v2582
        %v2663 = vpop.f32.mrf.mxu0
        %v2664 = vadd.f32 0.0, %v2663
        %v2665 = vpop.f32.mrf.mxu0
        %2666 = vmatprep.mubr.f32.mxu0 0.0
        %2667 = vmatmul.mubr.f32.gmra.mxu0 %v2585
        %v2668 = vpop.f32.mrf.mxu0
        %v2669 = vadd.f32 0.0, %v2668
        %v2670 = vpop.f32.mrf.mxu0
        %2671 = vdwg.mxu0
        %v2673 = vsel %vm401, %v2440, 0
        %v2676 = vsel %vm401, %v2445, 0
        %v2679 = vsel %vm401, %v2450, 0
        %v2682 = vsel %vm401, %v2455, 0
        %2684 = vmatprep.subr.mxu0 0.0
        %2685 = vmatpush1.msra.mxu0 0.0
        %2686 = vmatprep.subr.mxu0 0.0
        %2687 = vmatpush1.msra.mxu0 0.0
        %2688 = vmatprep.subr.mxu0 0.0
        %2689 = vmatpush1.msra.mxu0 0.0
        %2690 = vmatprep.subr.mxu0 0.0
        %2691 = vmatpush1.msra.mxu0 0.0
        %2692 = vmatprep.subr.mxu0 0.0
        %2693 = vmatpush1.msra.mxu0 0.0
        %2694 = vmatprep.subr.mxu0 0.0
        %2695 = vmatpush1.msra.mxu0 0.0
        %2696 = vmatprep.subr.mxu0 0.0
        %2697 = vmatpush1.msra.mxu0 0.0
        %2698 = vmatprep.subr.mxu0 0.0
        %2699 = vmatpush1.msra.mxu0 0.0
        %2700 = vmatprep.subr.mxu0 0.0
        %2701 = vmatpush1.msra.mxu0 0.0
        %2702 = vmatprep.subr.mxu0 0.0
        %2703 = vmatpush1.msra.mxu0 0.0
        %2704 = vmatprep.subr.mxu0 0.0
        %2705 = vmatpush1.msra.mxu0 0.0
        %2706 = vmatprep.subr.mxu0 0.0
        %2707 = vmatpush1.msra.mxu0 0.0
        %2708 = vmatprep.subr.mxu0 0.0
        %2709 = vmatpush1.msra.mxu0 %v228
        %2710 = vmatprep.subr.mxu0 0.0
        %2711 = vmatpush1.msra.mxu0 %v227
        %2712 = vmatprep.subr.mxu0 0.0
        %2713 = vmatpush1.msra.mxu0 %v226
        %2714 = vmatprep.subr.mxu0 0.0
        %2715 = vmatpush1.msra.mxu0 %v225
        %2716 = vmatprep.subr.mxu0 0.0
        %2717 = vmatpush2.msra.mxu0 0.0
        %2718 = vmatprep.subr.mxu0 0.0
        %2719 = vmatpush2.msra.mxu0 0.0
        %2720 = vmatprep.subr.mxu0 0.0
        %2721 = vmatpush2.msra.mxu0 0.0
        %2722 = vmatprep.subr.mxu0 0.0
        %2723 = vmatpush2.msra.mxu0 0.0
        %2724 = vmatprep.subr.mxu0 0.0
        %2725 = vmatpush2.msra.mxu0 0.0
        %2726 = vmatprep.subr.mxu0 0.0
        %2727 = vmatpush2.msra.mxu0 0.0
        %2728 = vmatprep.subr.mxu0 0.0
        %2729 = vmatpush2.msra.mxu0 0.0
        %2730 = vmatprep.subr.mxu0 0.0
        %2731 = vmatpush2.msra.mxu0 0.0
        %2732 = vmatprep.subr.mxu0 0.0
        %2733 = vmatpush2.msra.mxu0 0.0
        %2734 = vmatprep.subr.mxu0 0.0
        %2735 = vmatpush2.msra.mxu0 0.0
        %2736 = vmatprep.subr.mxu0 0.0
        %2737 = vmatpush2.msra.mxu0 0.0
        %2738 = vmatprep.subr.mxu0 0.0
        %2739 = vmatpush2.msra.mxu0 0.0
        %2740 = vmatprep.subr.mxu0 0.0
        %2741 = vmatpush2.msra.mxu0 0.0
        %2742 = vmatprep.subr.mxu0 0.0
        %2743 = vmatpush2.msra.mxu0 0.0
        %2744 = vmatprep.subr.mxu0 0.0
        %2745 = vmatpush2.msra.mxu0 0.0
        %2746 = vmatprep.subr.mxu0 0.0
        %2747 = vmatpush2.msra.mxu0 0.0
        %2748 = vmatprep.mubr.f32.mxu0 0.0
        %2749 = vmatmul.mubr.f32.gmra.mxu0 %v2673
        %v2750 = vpop.f32.mrf.mxu0
        %v2751 = vadd.f32 %v2654, %v2750
        %v2752 = vpop.f32.mrf.mxu0
        %2753 = vmatprep.mubr.f32.mxu0 0.0
        %2754 = vmatmul.mubr.f32.gmra.mxu0 %v2676
        %v2755 = vpop.f32.mrf.mxu0
        %v2756 = vadd.f32 %v2659, %v2755
        %v2757 = vpop.f32.mrf.mxu0
        %2758 = vmatprep.mubr.f32.mxu0 0.0
        %2759 = vmatmul.mubr.f32.gmra.mxu0 %v2679
        %v2760 = vpop.f32.mrf.mxu0
        %v2761 = vadd.f32 %v2664, %v2760
        %v2762 = vpop.f32.mrf.mxu0
        %2763 = vmatprep.mubr.f32.mxu0 0.0
        %2764 = vmatmul.mubr.f32.gmra.mxu0 %v2682
        %v2765 = vpop.f32.mrf.mxu0
        %v2766 = vadd.f32 %v2669, %v2765
        %v2767 = vpop.f32.mrf.mxu0
        %2768 = vdwg.mxu0
        %2769 = vmatprep.subr.mxu0 0.0
        %2770 = vmatpush1.msra.mxu0 0.0
        %2771 = vmatprep.subr.mxu0 0.0
        %2772 = vmatpush1.msra.mxu0 0.0
        %2773 = vmatprep.subr.mxu0 0.0
        %2774 = vmatpush1.msra.mxu0 0.0
        %2775 = vmatprep.subr.mxu0 0.0
        %2776 = vmatpush1.msra.mxu0 0.0
        %2777 = vmatprep.subr.mxu0 0.0
        %2778 = vmatpush1.msra.mxu0 0.0
        %2779 = vmatprep.subr.mxu0 0.0
        %2780 = vmatpush1.msra.mxu0 0.0
        %2781 = vmatprep.subr.mxu0 0.0
        %2782 = vmatpush1.msra.mxu0 0.0
        %2783 = vmatprep.subr.mxu0 0.0
        %2784 = vmatpush1.msra.mxu0 0.0
        %2785 = vmatprep.subr.mxu0 0.0
        %2786 = vmatpush1.msra.mxu0 0.0
        %2787 = vmatprep.subr.mxu0 0.0
        %2788 = vmatpush1.msra.mxu0 0.0
        %2789 = vmatprep.subr.mxu0 0.0
        %2790 = vmatpush1.msra.mxu0 0.0
        %2791 = vmatprep.subr.mxu0 0.0
        %2792 = vmatpush1.msra.mxu0 0.0
        %2793 = vmatprep.subr.mxu0 0.0
        %2794 = vmatpush1.msra.mxu0 %v240
        %2795 = vmatprep.subr.mxu0 0.0
        %2796 = vmatpush1.msra.mxu0 %v239
        %2797 = vmatprep.subr.mxu0 0.0
        %2798 = vmatpush1.msra.mxu0 %v238
        %2799 = vmatprep.subr.mxu0 0.0
        %2800 = vmatpush1.msra.mxu0 %v237
        %2801 = vmatprep.subr.mxu0 0.0
        %2802 = vmatpush2.msra.mxu0 0.0
        %2803 = vmatprep.subr.mxu0 0.0
        %2804 = vmatpush2.msra.mxu0 0.0
        %2805 = vmatprep.subr.mxu0 0.0
        %2806 = vmatpush2.msra.mxu0 0.0
        %2807 = vmatprep.subr.mxu0 0.0
        %2808 = vmatpush2.msra.mxu0 0.0
        %2809 = vmatprep.subr.mxu0 0.0
        %2810 = vmatpush2.msra.mxu0 0.0
        %2811 = vmatprep.subr.mxu0 0.0
        %2812 = vmatpush2.msra.mxu0 0.0
        %2813 = vmatprep.subr.mxu0 0.0
        %2814 = vmatpush2.msra.mxu0 0.0
        %2815 = vmatprep.subr.mxu0 0.0
        %2816 = vmatpush2.msra.mxu0 0.0
        %2817 = vmatprep.subr.mxu0 0.0
        %2818 = vmatpush2.msra.mxu0 0.0
        %2819 = vmatprep.subr.mxu0 0.0
        %2820 = vmatpush2.msra.mxu0 0.0
        %2821 = vmatprep.subr.mxu0 0.0
        %2822 = vmatpush2.msra.mxu0 0.0
        %2823 = vmatprep.subr.mxu0 0.0
        %2824 = vmatpush2.msra.mxu0 0.0
        %2825 = vmatprep.subr.mxu0 0.0
        %2826 = vmatpush2.msra.mxu0 0.0
        %2827 = vmatprep.subr.mxu0 0.0
        %2828 = vmatpush2.msra.mxu0 0.0
        %2829 = vmatprep.subr.mxu0 0.0
        %2830 = vmatpush2.msra.mxu0 0.0
        %2831 = vmatprep.subr.mxu0 0.0
        %2832 = vmatpush2.msra.mxu0 0.0
        %2833 = vmatprep.mubr.f32.mxu0 0.0
        %2834 = vmatmul.mubr.f32.gmra.mxu0 %v2576
        %v2835 = vpop.f32.mrf.mxu0
        %v2836 = vadd.f32 0.0, %v2835
        %v2837 = vpop.f32.mrf.mxu0
        %2838 = vmatprep.mubr.f32.mxu0 0.0
        %2839 = vmatmul.mubr.f32.gmra.mxu0 %v2579
        %v2840 = vpop.f32.mrf.mxu0
        %v2841 = vadd.f32 0.0, %v2840
        %v2842 = vpop.f32.mrf.mxu0
        %2843 = vmatprep.mubr.f32.mxu0 0.0
        %2844 = vmatmul.mubr.f32.gmra.mxu0 %v2582
        %v2845 = vpop.f32.mrf.mxu0
        %v2846 = vadd.f32 0.0, %v2845
        %v2847 = vpop.f32.mrf.mxu0
        %2848 = vmatprep.mubr.f32.mxu0 0.0
        %2849 = vmatmul.mubr.f32.gmra.mxu0 %v2585
        %v2850 = vpop.f32.mrf.mxu0
        %v2851 = vadd.f32 0.0, %v2850
        %v2852 = vpop.f32.mrf.mxu0
        %2853 = vdwg.mxu0
        %2854 = vmatprep.subr.mxu0 0.0
        %2855 = vmatpush1.msra.mxu0 0.0
        %2856 = vmatprep.subr.mxu0 0.0
        %2857 = vmatpush1.msra.mxu0 0.0
        %2858 = vmatprep.subr.mxu0 0.0
        %2859 = vmatpush1.msra.mxu0 0.0
        %2860 = vmatprep.subr.mxu0 0.0
        %2861 = vmatpush1.msra.mxu0 0.0
        %2862 = vmatprep.subr.mxu0 0.0
        %2863 = vmatpush1.msra.mxu0 0.0
        %2864 = vmatprep.subr.mxu0 0.0
        %2865 = vmatpush1.msra.mxu0 0.0
        %2866 = vmatprep.subr.mxu0 0.0
        %2867 = vmatpush1.msra.mxu0 0.0
        %2868 = vmatprep.subr.mxu0 0.0
        %2869 = vmatpush1.msra.mxu0 0.0
        %2870 = vmatprep.subr.mxu0 0.0
        %2871 = vmatpush1.msra.mxu0 0.0
        %2872 = vmatprep.subr.mxu0 0.0
        %2873 = vmatpush1.msra.mxu0 0.0
        %2874 = vmatprep.subr.mxu0 0.0
        %2875 = vmatpush1.msra.mxu0 0.0
        %2876 = vmatprep.subr.mxu0 0.0
        %2877 = vmatpush1.msra.mxu0 0.0
        %2878 = vmatprep.subr.mxu0 0.0
        %2879 = vmatpush1.msra.mxu0 %v236
        %2880 = vmatprep.subr.mxu0 0.0
        %2881 = vmatpush1.msra.mxu0 %v235
        %2882 = vmatprep.subr.mxu0 0.0
        %2883 = vmatpush1.msra.mxu0 %v234
        %2884 = vmatprep.subr.mxu0 0.0
        %2885 = vmatpush1.msra.mxu0 %v233
        %2886 = vmatprep.subr.mxu0 0.0
        %2887 = vmatpush2.msra.mxu0 0.0
        %2888 = vmatprep.subr.mxu0 0.0
        %2889 = vmatpush2.msra.mxu0 0.0
        %2890 = vmatprep.subr.mxu0 0.0
        %2891 = vmatpush2.msra.mxu0 0.0
        %2892 = vmatprep.subr.mxu0 0.0
        %2893 = vmatpush2.msra.mxu0 0.0
        %2894 = vmatprep.subr.mxu0 0.0
        %2895 = vmatpush2.msra.mxu0 0.0
        %2896 = vmatprep.subr.mxu0 0.0
        %2897 = vmatpush2.msra.mxu0 0.0
        %2898 = vmatprep.subr.mxu0 0.0
        %2899 = vmatpush2.msra.mxu0 0.0
        %2900 = vmatprep.subr.mxu0 0.0
        %2901 = vmatpush2.msra.mxu0 0.0
        %2902 = vmatprep.subr.mxu0 0.0
        %2903 = vmatpush2.msra.mxu0 0.0
        %2904 = vmatprep.subr.mxu0 0.0
        %2905 = vmatpush2.msra.mxu0 0.0
        %2906 = vmatprep.subr.mxu0 0.0
        %2907 = vmatpush2.msra.mxu0 0.0
        %2908 = vmatprep.subr.mxu0 0.0
        %2909 = vmatpush2.msra.mxu0 0.0
        %2910 = vmatprep.subr.mxu0 0.0
        %2911 = vmatpush2.msra.mxu0 0.0
        %2912 = vmatprep.subr.mxu0 0.0
        %2913 = vmatpush2.msra.mxu0 0.0
        %2914 = vmatprep.subr.mxu0 0.0
        %2915 = vmatpush2.msra.mxu0 0.0
        %2916 = vmatprep.subr.mxu0 0.0
        %2917 = vmatpush2.msra.mxu0 0.0
        %2918 = vmatprep.mubr.f32.mxu0 0.0
        %2919 = vmatmul.mubr.f32.gmra.mxu0 %v2673
        %v2920 = vpop.f32.mrf.mxu0
        %v2921 = vadd.f32 %v2836, %v2920
        %v2922 = vpop.f32.mrf.mxu0
        %2923 = vmatprep.mubr.f32.mxu0 0.0
        %2924 = vmatmul.mubr.f32.gmra.mxu0 %v2676
        %v2925 = vpop.f32.mrf.mxu0
        %v2926 = vadd.f32 %v2841, %v2925
        %v2927 = vpop.f32.mrf.mxu0
        %2928 = vmatprep.mubr.f32.mxu0 0.0
        %2929 = vmatmul.mubr.f32.gmra.mxu0 %v2679
        %v2930 = vpop.f32.mrf.mxu0
        %v2931 = vadd.f32 %v2846, %v2930
        %v2932 = vpop.f32.mrf.mxu0
        %2933 = vmatprep.mubr.f32.mxu0 0.0
        %2934 = vmatmul.mubr.f32.gmra.mxu0 %v2682
        %v2935 = vpop.f32.mrf.mxu0
        %v2936 = vadd.f32 %v2851, %v2935
        %v2937 = vpop.f32.mrf.mxu0
        %2938 = vdwg.mxu0
        %2939 = vmatprep.subr.mxu0 0.0
        %2940 = vmatpush1.msra.mxu0 0.0
        %2941 = vmatprep.subr.mxu0 0.0
        %2942 = vmatpush1.msra.mxu0 0.0
        %2943 = vmatprep.subr.mxu0 0.0
        %2944 = vmatpush1.msra.mxu0 0.0
        %2945 = vmatprep.subr.mxu0 0.0
        %2946 = vmatpush1.msra.mxu0 0.0
        %2947 = vmatprep.subr.mxu0 0.0
        %2948 = vmatpush1.msra.mxu0 0.0
        %2949 = vmatprep.subr.mxu0 0.0
        %2950 = vmatpush1.msra.mxu0 0.0
        %2951 = vmatprep.subr.mxu0 0.0
        %2952 = vmatpush1.msra.mxu0 0.0
        %2953 = vmatprep.subr.mxu0 0.0
        %2954 = vmatpush1.msra.mxu0 0.0
        %2955 = vmatprep.subr.mxu0 0.0
        %2956 = vmatpush1.msra.mxu0 0.0
        %2957 = vmatprep.subr.mxu0 0.0
        %2958 = vmatpush1.msra.mxu0 0.0
        %2959 = vmatprep.subr.mxu0 0.0
        %2960 = vmatpush1.msra.mxu0 0.0
        %2961 = vmatprep.subr.mxu0 0.0
        %2962 = vmatpush1.msra.mxu0 0.0
        %2963 = vmatprep.subr.mxu0 0.0
        %2964 = vmatpush1.msra.mxu0 %v248
        %2965 = vmatprep.subr.mxu0 0.0
        %2966 = vmatpush1.msra.mxu0 %v247
        %2967 = vmatprep.subr.mxu0 0.0
        %2968 = vmatpush1.msra.mxu0 %v246
        %2969 = vmatprep.subr.mxu0 0.0
        %2970 = vmatpush1.msra.mxu0 %v245
        %2971 = vmatprep.subr.mxu0 0.0
        %2972 = vmatpush2.msra.mxu0 0.0
        %2973 = vmatprep.subr.mxu0 0.0
        %2974 = vmatpush2.msra.mxu0 0.0
        %2975 = vmatprep.subr.mxu0 0.0
        %2976 = vmatpush2.msra.mxu0 0.0
        %2977 = vmatprep.subr.mxu0 0.0
        %2978 = vmatpush2.msra.mxu0 0.0
        %2979 = vmatprep.subr.mxu0 0.0
        %2980 = vmatpush2.msra.mxu0 0.0
        %2981 = vmatprep.subr.mxu0 0.0
        %2982 = vmatpush2.msra.mxu0 0.0
        %2983 = vmatprep.subr.mxu0 0.0
        %2984 = vmatpush2.msra.mxu0 0.0
        %2985 = vmatprep.subr.mxu0 0.0
        %2986 = vmatpush2.msra.mxu0 0.0
        %2987 = vmatprep.subr.mxu0 0.0
        %2988 = vmatpush2.msra.mxu0 0.0
        %2989 = vmatprep.subr.mxu0 0.0
        %2990 = vmatpush2.msra.mxu0 0.0
        %2991 = vmatprep.subr.mxu0 0.0
        %2992 = vmatpush2.msra.mxu0 0.0
        %2993 = vmatprep.subr.mxu0 0.0
        %2994 = vmatpush2.msra.mxu0 0.0
        %2995 = vmatprep.subr.mxu0 0.0
        %2996 = vmatpush2.msra.mxu0 0.0
        %2997 = vmatprep.subr.mxu0 0.0
        %2998 = vmatpush2.msra.mxu0 0.0
        %2999 = vmatprep.subr.mxu0 0.0
        %3000 = vmatpush2.msra.mxu0 0.0
        %3001 = vmatprep.subr.mxu0 0.0
        %3002 = vmatpush2.msra.mxu0 0.0
        %3003 = vmatprep.mubr.f32.mxu0 0.0
        %3004 = vmatmul.mubr.f32.gmra.mxu0 %v2576
        %v3005 = vpop.f32.mrf.mxu0
        %v3006 = vadd.f32 0.0, %v3005
        %v3007 = vpop.f32.mrf.mxu0
        %3008 = vmatprep.mubr.f32.mxu0 0.0
        %3009 = vmatmul.mubr.f32.gmra.mxu0 %v2579
        %v3010 = vpop.f32.mrf.mxu0
        %v3011 = vadd.f32 0.0, %v3010
        %v3012 = vpop.f32.mrf.mxu0
        %3013 = vmatprep.mubr.f32.mxu0 0.0
        %3014 = vmatmul.mubr.f32.gmra.mxu0 %v2582
        %v3015 = vpop.f32.mrf.mxu0
        %v3016 = vadd.f32 0.0, %v3015
        %v3017 = vpop.f32.mrf.mxu0
        %3018 = vmatprep.mubr.f32.mxu0 0.0
        %3019 = vmatmul.mubr.f32.gmra.mxu0 %v2585
        %v3020 = vpop.f32.mrf.mxu0
        %v3021 = vadd.f32 0.0, %v3020
        %v3022 = vpop.f32.mrf.mxu0
        %3023 = vdwg.mxu0
        %3024 = vmatprep.subr.mxu0 0.0
        %3025 = vmatpush1.msra.mxu0 0.0
        %3026 = vmatprep.subr.mxu0 0.0
        %3027 = vmatpush1.msra.mxu0 0.0
        %3028 = vmatprep.subr.mxu0 0.0
        %3029 = vmatpush1.msra.mxu0 0.0
        %3030 = vmatprep.subr.mxu0 0.0
        %3031 = vmatpush1.msra.mxu0 0.0
        %3032 = vmatprep.subr.mxu0 0.0
        %3033 = vmatpush1.msra.mxu0 0.0
        %3034 = vmatprep.subr.mxu0 0.0
        %3035 = vmatpush1.msra.mxu0 0.0
        %3036 = vmatprep.subr.mxu0 0.0
        %3037 = vmatpush1.msra.mxu0 0.0
        %3038 = vmatprep.subr.mxu0 0.0
        %3039 = vmatpush1.msra.mxu0 0.0
        %3040 = vmatprep.subr.mxu0 0.0
        %3041 = vmatpush1.msra.mxu0 0.0
        %3042 = vmatprep.subr.mxu0 0.0
        %3043 = vmatpush1.msra.mxu0 0.0
        %3044 = vmatprep.subr.mxu0 0.0
        %3045 = vmatpush1.msra.mxu0 0.0
        %3046 = vmatprep.subr.mxu0 0.0
        %3047 = vmatpush1.msra.mxu0 0.0
        %3048 = vmatprep.subr.mxu0 0.0
        %3049 = vmatpush1.msra.mxu0 %v244
        %3050 = vmatprep.subr.mxu0 0.0
        %3051 = vmatpush1.msra.mxu0 %v243
        %3052 = vmatprep.subr.mxu0 0.0
        %3053 = vmatpush1.msra.mxu0 %v242
        %3054 = vmatprep.subr.mxu0 0.0
        %3055 = vmatpush1.msra.mxu0 %v241
        %3056 = vmatprep.subr.mxu0 0.0
        %3057 = vmatpush2.msra.mxu0 0.0
        %3058 = vmatprep.subr.mxu0 0.0
        %3059 = vmatpush2.msra.mxu0 0.0
        %3060 = vmatprep.subr.mxu0 0.0
        %3061 = vmatpush2.msra.mxu0 0.0
        %3062 = vmatprep.subr.mxu0 0.0
        %3063 = vmatpush2.msra.mxu0 0.0
        %3064 = vmatprep.subr.mxu0 0.0
        %3065 = vmatpush2.msra.mxu0 0.0
        %3066 = vmatprep.subr.mxu0 0.0
        %3067 = vmatpush2.msra.mxu0 0.0
        %3068 = vmatprep.subr.mxu0 0.0
        %3069 = vmatpush2.msra.mxu0 0.0
        %3070 = vmatprep.subr.mxu0 0.0
        %3071 = vmatpush2.msra.mxu0 0.0
        %3072 = vmatprep.subr.mxu0 0.0
        %3073 = vmatpush2.msra.mxu0 0.0
        %3074 = vmatprep.subr.mxu0 0.0
        %3075 = vmatpush2.msra.mxu0 0.0
        %3076 = vmatprep.subr.mxu0 0.0
        %3077 = vmatpush2.msra.mxu0 0.0
        %3078 = vmatprep.subr.mxu0 0.0
        %3079 = vmatpush2.msra.mxu0 0.0
        %3080 = vmatprep.subr.mxu0 0.0
        %3081 = vmatpush2.msra.mxu0 0.0
        %3082 = vmatprep.subr.mxu0 0.0
        %3083 = vmatpush2.msra.mxu0 0.0
        %3084 = vmatprep.subr.mxu0 0.0
        %3085 = vmatpush2.msra.mxu0 0.0
        %3086 = vmatprep.subr.mxu0 0.0
        %3087 = vmatpush2.msra.mxu0 0.0
        %3088 = vmatprep.mubr.f32.mxu0 0.0
        %3089 = vmatmul.mubr.f32.gmra.mxu0 %v2673
        %v3090 = vpop.f32.mrf.mxu0
        %v3091 = vadd.f32 %v3006, %v3090
        %v3092 = vpop.f32.mrf.mxu0
        %3093 = vmatprep.mubr.f32.mxu0 0.0
        %3094 = vmatmul.mubr.f32.gmra.mxu0 %v2676
        %v3095 = vpop.f32.mrf.mxu0
        %v3096 = vadd.f32 %v3011, %v3095
        %v3097 = vpop.f32.mrf.mxu0
        %3098 = vmatprep.mubr.f32.mxu0 0.0
        %3099 = vmatmul.mubr.f32.gmra.mxu0 %v2679
        %v3100 = vpop.f32.mrf.mxu0
        %v3101 = vadd.f32 %v3016, %v3100
        %v3102 = vpop.f32.mrf.mxu0
        %3103 = vmatprep.mubr.f32.mxu0 0.0
        %3104 = vmatmul.mubr.f32.gmra.mxu0 %v2682
        %v3105 = vpop.f32.mrf.mxu0
        %v3106 = vadd.f32 %v3021, %v3105
        %v3107 = vpop.f32.mrf.mxu0
        %3108 = vdwg.mxu0
        %v3109 = vadd.f32 %v2751, %v2557
        %v3110 = vadd.f32 %v2756, %v2562
        %v3111 = vadd.f32 %v2761, %v2567
        %v3112 = vadd.f32 %v2766, %v2572
        %v3113 = vadd.f32 %v3109, %v1254
        %v3114 = vadd.f32 %v3110, %v1254
        %v3115 = vadd.f32 %v3111, %v1254
        %v3116 = vadd.f32 %v3112, %v1254
        %v3117 = vxor.u32 %v3113, 2147483648
        %v3118 = vxor.u32 %v3114, 2147483648
        %v3119 = vxor.u32 %v3115, 2147483648
        %v3120 = vxor.u32 %v3116, 2147483648
        %v3121 = vmul.f32 %v3117, 1.442695
        %v3122 = vpow.pop %v3121
        %v3123 = vmul.f32 %v3118, 1.442695
        %v3124 = vpow.pop %v3123
        %v3125 = vmul.f32 %v3119, 1.442695
        %v3126 = vpow.pop %v3125
        %v3127 = vmul.f32 %v3120, 1.442695
        %v3128 = vpow.pop %v3127
        %v3129 = vadd.f32 %v3122, 1.0
        %v3130 = vadd.f32 %v3124, 1.0
        %v3131 = vadd.f32 %v3126, 1.0
        %v3132 = vadd.f32 %v3128, 1.0
        %v3133 = vrcp.pop %v3129
        %v3134 = vmul.f32 1.0, %v3133
        %v3135 = vrcp.pop %v3130
        %v3136 = vmul.f32 1.0, %v3135
        %v3137 = vrcp.pop %v3131
        %v3138 = vmul.f32 1.0, %v3137
        %v3139 = vrcp.pop %v3132
        %v3140 = vmul.f32 1.0, %v3139
        %v3141 = vadd.f32 %v2921, %v2557
        %v3142 = vadd.f32 %v2926, %v2562
        %v3143 = vadd.f32 %v2931, %v2567
        %v3144 = vadd.f32 %v2936, %v2572
        %v3145 = vadd.f32 %v3141, %v1290
        %v3146 = vadd.f32 %v3142, %v1290
        %v3147 = vadd.f32 %v3143, %v1290
        %v3148 = vadd.f32 %v3144, %v1290
        %v3149 = vxor.u32 %v3145, 2147483648
        %v3150 = vxor.u32 %v3146, 2147483648
        %v3151 = vxor.u32 %v3147, 2147483648
        %v3152 = vxor.u32 %v3148, 2147483648
        %v3153 = vmul.f32 %v3149, 1.442695
        %v3154 = vpow.pop %v3153
        %v3155 = vmul.f32 %v3150, 1.442695
        %v3156 = vpow.pop %v3155
        %v3157 = vmul.f32 %v3151, 1.442695
        %v3158 = vpow.pop %v3157
        %v3159 = vmul.f32 %v3152, 1.442695
        %v3160 = vpow.pop %v3159
        %v3161 = vadd.f32 %v3154, 1.0
        %v3162 = vadd.f32 %v3156, 1.0
        %v3163 = vadd.f32 %v3158, 1.0
        %v3164 = vadd.f32 %v3160, 1.0
        %v3165 = vrcp.pop %v3161
        %v3166 = vmul.f32 1.0, %v3165
        %v3167 = vrcp.pop %v3162
        %v3168 = vmul.f32 1.0, %v3167
        %v3169 = vrcp.pop %v3163
        %v3170 = vmul.f32 1.0, %v3169
        %v3171 = vrcp.pop %v3164
        %v3172 = vmul.f32 1.0, %v3171
        %v3173 = vmul.f32 %v3166, %v2369
        %v3174 = vmul.f32 %v3168, %v2370
        %v3175 = vmul.f32 %v3170, %v2371
        %v3176 = vmul.f32 %v3172, %v2372
        %v3178 = vsel %vm401, %v3173, 0
        %v3181 = vsel %vm401, %v3174, 0
        %v3184 = vsel %vm401, %v3175, 0
        %v3187 = vsel %vm401, %v3176, 0
        %3189 = vmatprep.subr.mxu0 0.0
        %3190 = vmatpush1.msra.mxu0 0.0
        %3191 = vmatprep.subr.mxu0 0.0
        %3192 = vmatpush1.msra.mxu0 0.0
        %3193 = vmatprep.subr.mxu0 0.0
        %3194 = vmatpush1.msra.mxu0 0.0
        %3195 = vmatprep.subr.mxu0 0.0
        %3196 = vmatpush1.msra.mxu0 0.0
        %3197 = vmatprep.subr.mxu0 0.0
        %3198 = vmatpush1.msra.mxu0 0.0
        %3199 = vmatprep.subr.mxu0 0.0
        %3200 = vmatpush1.msra.mxu0 0.0
        %3201 = vmatprep.subr.mxu0 0.0
        %3202 = vmatpush1.msra.mxu0 0.0
        %3203 = vmatprep.subr.mxu0 0.0
        %3204 = vmatpush1.msra.mxu0 0.0
        %3205 = vmatprep.subr.mxu0 0.0
        %3206 = vmatpush1.msra.mxu0 0.0
        %3207 = vmatprep.subr.mxu0 0.0
        %3208 = vmatpush1.msra.mxu0 0.0
        %3209 = vmatprep.subr.mxu0 0.0
        %3210 = vmatpush1.msra.mxu0 0.0
        %3211 = vmatprep.subr.mxu0 0.0
        %3212 = vmatpush1.msra.mxu0 0.0
        %3213 = vmatprep.subr.mxu0 0.0
        %3214 = vmatpush1.msra.mxu0 %v256
        %3215 = vmatprep.subr.mxu0 0.0
        %3216 = vmatpush1.msra.mxu0 %v255
        %3217 = vmatprep.subr.mxu0 0.0
        %3218 = vmatpush1.msra.mxu0 %v254
        %3219 = vmatprep.subr.mxu0 0.0
        %3220 = vmatpush1.msra.mxu0 %v253
        %3221 = vmatprep.subr.mxu0 0.0
        %3222 = vmatpush2.msra.mxu0 0.0
        %3223 = vmatprep.subr.mxu0 0.0
        %3224 = vmatpush2.msra.mxu0 0.0
        %3225 = vmatprep.subr.mxu0 0.0
        %3226 = vmatpush2.msra.mxu0 0.0
        %3227 = vmatprep.subr.mxu0 0.0
        %3228 = vmatpush2.msra.mxu0 0.0
        %3229 = vmatprep.subr.mxu0 0.0
        %3230 = vmatpush2.msra.mxu0 0.0
        %3231 = vmatprep.subr.mxu0 0.0
        %3232 = vmatpush2.msra.mxu0 0.0
        %3233 = vmatprep.subr.mxu0 0.0
        %3234 = vmatpush2.msra.mxu0 0.0
        %3235 = vmatprep.subr.mxu0 0.0
        %3236 = vmatpush2.msra.mxu0 0.0
        %3237 = vmatprep.subr.mxu0 0.0
        %3238 = vmatpush2.msra.mxu0 0.0
        %3239 = vmatprep.subr.mxu0 0.0
        %3240 = vmatpush2.msra.mxu0 0.0
        %3241 = vmatprep.subr.mxu0 0.0
        %3242 = vmatpush2.msra.mxu0 0.0
        %3243 = vmatprep.subr.mxu0 0.0
        %3244 = vmatpush2.msra.mxu0 0.0
        %3245 = vmatprep.subr.mxu0 0.0
        %3246 = vmatpush2.msra.mxu0 0.0
        %3247 = vmatprep.subr.mxu0 0.0
        %3248 = vmatpush2.msra.mxu0 0.0
        %3249 = vmatprep.subr.mxu0 0.0
        %3250 = vmatpush2.msra.mxu0 0.0
        %3251 = vmatprep.subr.mxu0 0.0
        %3252 = vmatpush2.msra.mxu0 0.0
        %3253 = vmatprep.mubr.f32.mxu0 0.0
        %3254 = vmatmul.mubr.f32.gmra.mxu0 %v3178
        %v3255 = vpop.f32.mrf.mxu0
        %v3256 = vadd.f32 0.0, %v3255
        %v3257 = vpop.f32.mrf.mxu0
        %3258 = vmatprep.mubr.f32.mxu0 0.0
        %3259 = vmatmul.mubr.f32.gmra.mxu0 %v3181
        %v3260 = vpop.f32.mrf.mxu0
        %v3261 = vadd.f32 0.0, %v3260
        %v3262 = vpop.f32.mrf.mxu0
        %3263 = vmatprep.mubr.f32.mxu0 0.0
        %3264 = vmatmul.mubr.f32.gmra.mxu0 %v3184
        %v3265 = vpop.f32.mrf.mxu0
        %v3266 = vadd.f32 0.0, %v3265
        %v3267 = vpop.f32.mrf.mxu0
        %3268 = vmatprep.mubr.f32.mxu0 0.0
        %3269 = vmatmul.mubr.f32.gmra.mxu0 %v3187
        %v3270 = vpop.f32.mrf.mxu0
        %v3271 = vadd.f32 0.0, %v3270
        %v3272 = vpop.f32.mrf.mxu0
        %3273 = vdwg.mxu0
        %v3274 = vadd.f32 %v3091, %v3256
        %v3275 = vadd.f32 %v3096, %v3261
        %v3276 = vadd.f32 %v3101, %v3266
        %v3277 = vadd.f32 %v3106, %v3271
        %v3278 = vadd.f32 %v3274, %v1427
        %v3279 = vadd.f32 %v3275, %v1427
        %v3280 = vadd.f32 %v3276, %v1427
        %v3281 = vadd.f32 %v3277, %v1427
        %v3282 = vtanh.pop %v3278
        %v3283 = vtanh.pop %v3279
        %v3284 = vtanh.pop %v3280
        %v3285 = vtanh.pop %v3281
        %v3286 = vsub.f32 %v3282, %v2369
        %v3287 = vsub.f32 %v3283, %v2370
        %v3288 = vsub.f32 %v3284, %v2371
        %v3289 = vsub.f32 %v3285, %v2372
        %v3290 = vmul.f32 %v3134, %v3286
        %v3291 = vmul.f32 %v3136, %v3287
        %v3292 = vmul.f32 %v3138, %v3288
        %v3293 = vmul.f32 %v3140, %v3289
        %v3294 = vadd.f32 %v2369, %v3290
        %v3295 = vadd.f32 %v2370, %v3291
        %v3296 = vadd.f32 %v2371, %v3292
        %v3297 = vadd.f32 %v2372, %v3293
        %v3299 = vsel %vm401, %v3294, 0
        %v3302 = vsel %vm401, %v3295, 0
        %v3305 = vsel %vm401, %v3296, 0
        %v3308 = vsel %vm401, %v3297, 0
        %3310 = vmatprep.subr.mxu0 0.0
        %3311 = vmatpush1.msra.mxu0 0.0
        %3312 = vmatprep.subr.mxu0 0.0
        %3313 = vmatpush1.msra.mxu0 0.0
        %3314 = vmatprep.subr.mxu0 0.0
        %3315 = vmatpush1.msra.mxu0 0.0
        %3316 = vmatprep.subr.mxu0 0.0
        %3317 = vmatpush1.msra.mxu0 0.0
        %3318 = vmatprep.subr.mxu0 0.0
        %3319 = vmatpush1.msra.mxu0 0.0
        %3320 = vmatprep.subr.mxu0 0.0
        %3321 = vmatpush1.msra.mxu0 0.0
        %3322 = vmatprep.subr.mxu0 0.0
        %3323 = vmatpush1.msra.mxu0 0.0
        %3324 = vmatprep.subr.mxu0 0.0
        %3325 = vmatpush1.msra.mxu0 0.0
        %3326 = vmatprep.subr.mxu0 0.0
        %3327 = vmatpush1.msra.mxu0 0.0
        %3328 = vmatprep.subr.mxu0 0.0
        %3329 = vmatpush1.msra.mxu0 0.0
        %3330 = vmatprep.subr.mxu0 0.0
        %3331 = vmatpush1.msra.mxu0 0.0
        %3332 = vmatprep.subr.mxu0 0.0
        %3333 = vmatpush1.msra.mxu0 0.0
        %3334 = vmatprep.subr.mxu0 0.0
        %3335 = vmatpush1.msra.mxu0 %v260
        %3336 = vmatprep.subr.mxu0 0.0
        %3337 = vmatpush1.msra.mxu0 %v259
        %3338 = vmatprep.subr.mxu0 0.0
        %3339 = vmatpush1.msra.mxu0 %v258
        %3340 = vmatprep.subr.mxu0 0.0
        %3341 = vmatpush1.msra.mxu0 %v257
        %3342 = vmatprep.subr.mxu0 0.0
        %3343 = vmatpush2.msra.mxu0 0.0
        %3344 = vmatprep.subr.mxu0 0.0
        %3345 = vmatpush2.msra.mxu0 0.0
        %3346 = vmatprep.subr.mxu0 0.0
        %3347 = vmatpush2.msra.mxu0 0.0
        %3348 = vmatprep.subr.mxu0 0.0
        %3349 = vmatpush2.msra.mxu0 0.0
        %3350 = vmatprep.subr.mxu0 0.0
        %3351 = vmatpush2.msra.mxu0 0.0
        %3352 = vmatprep.subr.mxu0 0.0
        %3353 = vmatpush2.msra.mxu0 0.0
        %3354 = vmatprep.subr.mxu0 0.0
        %3355 = vmatpush2.msra.mxu0 0.0
        %3356 = vmatprep.subr.mxu0 0.0
        %3357 = vmatpush2.msra.mxu0 0.0
        %3358 = vmatprep.subr.mxu0 0.0
        %3359 = vmatpush2.msra.mxu0 0.0
        %3360 = vmatprep.subr.mxu0 0.0
        %3361 = vmatpush2.msra.mxu0 0.0
        %3362 = vmatprep.subr.mxu0 0.0
        %3363 = vmatpush2.msra.mxu0 0.0
        %3364 = vmatprep.subr.mxu0 0.0
        %3365 = vmatpush2.msra.mxu0 0.0
        %3366 = vmatprep.subr.mxu0 0.0
        %3367 = vmatpush2.msra.mxu0 0.0
        %3368 = vmatprep.subr.mxu0 0.0
        %3369 = vmatpush2.msra.mxu0 0.0
        %3370 = vmatprep.subr.mxu0 0.0
        %3371 = vmatpush2.msra.mxu0 0.0
        %3372 = vmatprep.subr.mxu0 0.0
        %3373 = vmatpush2.msra.mxu0 0.0
        %3374 = vmatprep.mubr.f32.mxu0 0.0
        %3375 = vmatmul.mubr.f32.gmra.mxu0 %v3299
        %v3376 = vpop.f32.mrf.mxu0
        %v3377 = vadd.f32 %v481, %v3376
        %v3378 = vpop.f32.mrf.mxu0
        %3379 = vmatprep.mubr.f32.mxu0 0.0
        %3380 = vmatmul.mubr.f32.gmra.mxu0 %v3302
        %v3381 = vpop.f32.mrf.mxu0
        %v3382 = vadd.f32 %v486, %v3381
        %v3383 = vpop.f32.mrf.mxu0
        %3384 = vmatprep.mubr.f32.mxu0 0.0
        %3385 = vmatmul.mubr.f32.gmra.mxu0 %v3305
        %v3386 = vpop.f32.mrf.mxu0
        %v3387 = vadd.f32 %v491, %v3386
        %v3388 = vpop.f32.mrf.mxu0
        %3389 = vmatprep.mubr.f32.mxu0 0.0
        %3390 = vmatmul.mubr.f32.gmra.mxu0 %v3308
        %v3391 = vpop.f32.mrf.mxu0
        %v3392 = vadd.f32 %v496, %v3391
        %v3393 = vpop.f32.mrf.mxu0
        %3394 = vdwg.mxu0
        %v3395 = vmax.f32 %v3377, 0.0
        %v3396 = vmax.f32 %v3382, 0.0
        %v3397 = vmax.f32 %v3387, 0.0
        %v3398 = vmax.f32 %v3392, 0.0
        %v3400 = vsel %vm401, %v3395, 0
        %v3403 = vsel %vm401, %v3396, 0
        %v3406 = vsel %vm401, %v3397, 0
        %v3409 = vsel %vm401, %v3398, 0
        %3411 = vmatprep.subr.mxu0 0.0
        %3412 = vmatpush1.msra.mxu0 0.0
        %3413 = vmatprep.subr.mxu0 0.0
        %3414 = vmatpush1.msra.mxu0 0.0
        %3415 = vmatprep.subr.mxu0 0.0
        %3416 = vmatpush1.msra.mxu0 0.0
        %3417 = vmatprep.subr.mxu0 0.0
        %3418 = vmatpush1.msra.mxu0 0.0
        %3419 = vmatprep.subr.mxu0 0.0
        %3420 = vmatpush1.msra.mxu0 0.0
        %3421 = vmatprep.subr.mxu0 0.0
        %3422 = vmatpush1.msra.mxu0 0.0
        %3423 = vmatprep.subr.mxu0 0.0
        %3424 = vmatpush1.msra.mxu0 0.0
        %3425 = vmatprep.subr.mxu0 0.0
        %3426 = vmatpush1.msra.mxu0 0.0
        %3427 = vmatprep.subr.mxu0 0.0
        %3428 = vmatpush1.msra.mxu0 0.0
        %3429 = vmatprep.subr.mxu0 0.0
        %3430 = vmatpush1.msra.mxu0 0.0
        %3431 = vmatprep.subr.mxu0 0.0
        %3432 = vmatpush1.msra.mxu0 0.0
        %3433 = vmatprep.subr.mxu0 0.0
        %3434 = vmatpush1.msra.mxu0 0.0
        %3435 = vmatprep.subr.mxu0 0.0
        %3436 = vmatpush1.msra.mxu0 %v281
        %3437 = vmatprep.subr.mxu0 0.0
        %3438 = vmatpush1.msra.mxu0 %v280
        %3439 = vmatprep.subr.mxu0 0.0
        %3440 = vmatpush1.msra.mxu0 %v279
        %3441 = vmatprep.subr.mxu0 0.0
        %3442 = vmatpush1.msra.mxu0 %v278
        %3443 = vmatprep.subr.mxu0 0.0
        %3444 = vmatpush2.msra.mxu0 0.0
        %3445 = vmatprep.subr.mxu0 0.0
        %3446 = vmatpush2.msra.mxu0 0.0
        %3447 = vmatprep.subr.mxu0 0.0
        %3448 = vmatpush2.msra.mxu0 0.0
        %3449 = vmatprep.subr.mxu0 0.0
        %3450 = vmatpush2.msra.mxu0 0.0
        %3451 = vmatprep.subr.mxu0 0.0
        %3452 = vmatpush2.msra.mxu0 0.0
        %3453 = vmatprep.subr.mxu0 0.0
        %3454 = vmatpush2.msra.mxu0 0.0
        %3455 = vmatprep.subr.mxu0 0.0
        %3456 = vmatpush2.msra.mxu0 0.0
        %3457 = vmatprep.subr.mxu0 0.0
        %3458 = vmatpush2.msra.mxu0 0.0
        %3459 = vmatprep.subr.mxu0 0.0
        %3460 = vmatpush2.msra.mxu0 0.0
        %3461 = vmatprep.subr.mxu0 0.0
        %3462 = vmatpush2.msra.mxu0 0.0
        %3463 = vmatprep.subr.mxu0 0.0
        %3464 = vmatpush2.msra.mxu0 0.0
        %3465 = vmatprep.subr.mxu0 0.0
        %3466 = vmatpush2.msra.mxu0 0.0
        %3467 = vmatprep.subr.mxu0 0.0
        %3468 = vmatpush2.msra.mxu0 0.0
        %3469 = vmatprep.subr.mxu0 0.0
        %3470 = vmatpush2.msra.mxu0 0.0
        %3471 = vmatprep.subr.mxu0 0.0
        %3472 = vmatpush2.msra.mxu0 0.0
        %3473 = vmatprep.subr.mxu0 0.0
        %3474 = vmatpush2.msra.mxu0 0.0
        %3475 = vmatprep.mubr.f32.mxu0 0.0
        %3476 = vmatmul.mubr.f32.gmra.mxu0 %v3400
        %v3477 = vpop.f32.mrf.mxu0
        %v3478 = vadd.f32 0.0, %v3477
        %v3479 = vpop.f32.mrf.mxu0
        %3480 = vmatprep.mubr.f32.mxu0 0.0
        %3481 = vmatmul.mubr.f32.gmra.mxu0 %v3403
        %v3482 = vpop.f32.mrf.mxu0
        %v3483 = vadd.f32 0.0, %v3482
        %v3484 = vpop.f32.mrf.mxu0
        %3485 = vmatprep.mubr.f32.mxu0 0.0
        %3486 = vmatmul.mubr.f32.gmra.mxu0 %v3406
        %v3487 = vpop.f32.mrf.mxu0
        %v3488 = vadd.f32 0.0, %v3487
        %v3489 = vpop.f32.mrf.mxu0
        %3490 = vmatprep.mubr.f32.mxu0 0.0
        %3491 = vmatmul.mubr.f32.gmra.mxu0 %v3409
        %v3492 = vpop.f32.mrf.mxu0
        %v3493 = vadd.f32 0.0, %v3492
        %v3494 = vpop.f32.mrf.mxu0
        %3495 = vdwg.mxu0
        %v3496 = vmul.f32 %v3478, %v282
        %v3497 = vmul.f32 %v3483, %v283
        %v3498 = vmul.f32 %v3488, %v284
        %v3499 = vmul.f32 %v3493, %v285
        %vm3500 = vcmask 523264
        %v3502 = vsel %vm3500, %v3496, 0
        %v3505 = vsel %vm3500, %v3497, 0
        %v3508 = vsel %vm3500, %v3498, 0
        %v3511 = vsel %vm3500, %v3499, 0
        %3513 = vmatprep.subr.mxu0 0.0
        %3514 = vmatpush1.msra.mxu0 0.0
        %3515 = vmatprep.subr.mxu0 0.0
        %3516 = vmatpush1.msra.mxu0 0.0
        %3517 = vmatprep.subr.mxu0 0.0
        %3518 = vmatpush1.msra.mxu0 0.0
        %3519 = vmatprep.subr.mxu0 0.0
        %3520 = vmatpush1.msra.mxu0 0.0
        %3521 = vmatprep.subr.mxu0 0.0
        %3522 = vmatpush1.msra.mxu0 0.0
        %3523 = vmatprep.subr.mxu0 0.0
        %3524 = vmatpush1.msra.mxu0 0.0
        %3525 = vmatprep.subr.mxu0 0.0
        %3526 = vmatpush1.msra.mxu0 0.0
        %3527 = vmatprep.subr.mxu0 0.0
        %3528 = vmatpush1.msra.mxu0 0.0
        %3529 = vmatprep.subr.mxu0 0.0
        %3530 = vmatpush1.msra.mxu0 %v293
        %3531 = vmatprep.subr.mxu0 0.0
        %3532 = vmatpush1.msra.mxu0 %v292
        %3533 = vmatprep.subr.mxu0 0.0
        %3534 = vmatpush1.msra.mxu0 %v291
        %3535 = vmatprep.subr.mxu0 0.0
        %3536 = vmatpush1.msra.mxu0 %v290
        %3537 = vmatprep.subr.mxu0 0.0
        %3538 = vmatpush1.msra.mxu0 %v289
        %3539 = vmatprep.subr.mxu0 0.0
        %3540 = vmatpush1.msra.mxu0 %v288
        %3541 = vmatprep.subr.mxu0 0.0
        %3542 = vmatpush1.msra.mxu0 %v287
        %3543 = vmatprep.subr.mxu0 0.0
        %3544 = vmatpush1.msra.mxu0 %v286
        %3545 = vmatprep.subr.mxu0 0.0
        %3546 = vmatpush2.msra.mxu0 0.0
        %3547 = vmatprep.subr.mxu0 0.0
        %3548 = vmatpush2.msra.mxu0 0.0
        %3549 = vmatprep.subr.mxu0 0.0
        %3550 = vmatpush2.msra.mxu0 0.0
        %3551 = vmatprep.subr.mxu0 0.0
        %3552 = vmatpush2.msra.mxu0 0.0
        %3553 = vmatprep.subr.mxu0 0.0
        %3554 = vmatpush2.msra.mxu0 0.0
        %3555 = vmatprep.subr.mxu0 0.0
        %3556 = vmatpush2.msra.mxu0 0.0
        %3557 = vmatprep.subr.mxu0 0.0
        %3558 = vmatpush2.msra.mxu0 0.0
        %3559 = vmatprep.subr.mxu0 0.0
        %3560 = vmatpush2.msra.mxu0 0.0
        %3561 = vmatprep.subr.mxu0 0.0
        %3562 = vmatpush2.msra.mxu0 0.0
        %3563 = vmatprep.subr.mxu0 0.0
        %3564 = vmatpush2.msra.mxu0 0.0
        %3565 = vmatprep.subr.mxu0 0.0
        %3566 = vmatpush2.msra.mxu0 0.0
        %3567 = vmatprep.subr.mxu0 0.0
        %3568 = vmatpush2.msra.mxu0 0.0
        %3569 = vmatprep.subr.mxu0 0.0
        %3570 = vmatpush2.msra.mxu0 0.0
        %3571 = vmatprep.subr.mxu0 0.0
        %3572 = vmatpush2.msra.mxu0 0.0
        %3573 = vmatprep.subr.mxu0 0.0
        %3574 = vmatpush2.msra.mxu0 0.0
        %3575 = vmatprep.subr.mxu0 0.0
        %3576 = vmatpush2.msra.mxu0 0.0
        %3577 = vmatprep.mubr.f32.mxu0 0.0
        %3578 = vmatmul.mubr.f32.gmra.mxu0 %v3502
        %v3579 = vpop.f32.mrf.mxu0
        %v3580 = vadd.f32 0.0, %v3579
        %v3581 = vpop.f32.mrf.mxu0
        %3582 = vmatprep.mubr.f32.mxu0 0.0
        %3583 = vmatmul.mubr.f32.gmra.mxu0 %v3505
        %v3584 = vpop.f32.mrf.mxu0
        %v3585 = vadd.f32 0.0, %v3584
        %v3586 = vpop.f32.mrf.mxu0
        %3587 = vmatprep.mubr.f32.mxu0 0.0
        %3588 = vmatmul.mubr.f32.gmra.mxu0 %v3508
        %v3589 = vpop.f32.mrf.mxu0
        %v3590 = vadd.f32 0.0, %v3589
        %v3591 = vpop.f32.mrf.mxu0
        %3592 = vmatprep.mubr.f32.mxu0 0.0
        %3593 = vmatmul.mubr.f32.gmra.mxu0 %v3511
        %v3594 = vpop.f32.mrf.mxu0
        %v3595 = vadd.f32 0.0, %v3594
        %v3596 = vpop.f32.mrf.mxu0
        %3597 = vdwg.mxu0
        %v3598 = vlaneseq
        %v3599 = vshrl.u32 %v3598, 7
        %v3600 = vsub.s32 0, %v3599
        %v3601 = vrot.slane %v294, %v3600
        %v3603 = vsel %vm401, %v273, 0
        %3605 = vmatprep.subr.mxu0 0.0
        %3606 = vmatpush1.msra.mxu0 0.0
        %3607 = vmatprep.subr.mxu0 0.0
        %3608 = vmatpush1.msra.mxu0 0.0
        %3609 = vmatprep.subr.mxu0 0.0
        %3610 = vmatpush1.msra.mxu0 0.0
        %3611 = vmatprep.subr.mxu0 0.0
        %3612 = vmatpush1.msra.mxu0 0.0
        %3613 = vmatprep.subr.mxu0 0.0
        %3614 = vmatpush1.msra.mxu0 0.0
        %3615 = vmatprep.subr.mxu0 0.0
        %3616 = vmatpush1.msra.mxu0 0.0
        %3617 = vmatprep.subr.mxu0 0.0
        %3618 = vmatpush1.msra.mxu0 0.0
        %3619 = vmatprep.subr.mxu0 0.0
        %3620 = vmatpush1.msra.mxu0 0.0
        %3621 = vmatprep.subr.mxu0 0.0
        %3622 = vmatpush1.msra.mxu0 0.0
        %3623 = vmatprep.subr.mxu0 0.0
        %3624 = vmatpush1.msra.mxu0 0.0
        %3625 = vmatprep.subr.mxu0 0.0
        %3626 = vmatpush1.msra.mxu0 0.0
        %3627 = vmatprep.subr.mxu0 0.0
        %3628 = vmatpush1.msra.mxu0 0.0
        %3629 = vmatprep.subr.mxu0 0.0
        %3630 = vmatpush1.msra.mxu0 %v3595
        %3631 = vmatprep.subr.mxu0 0.0
        %3632 = vmatpush1.msra.mxu0 %v3590
        %3633 = vmatprep.subr.mxu0 0.0
        %3634 = vmatpush1.msra.mxu0 %v3585
        %3635 = vmatprep.subr.mxu0 0.0
        %3636 = vmatpush1.msra.mxu0 %v3580
        %3637 = vmatprep.subr.mxu0 0.0
        %3638 = vmatpush2.msra.mxu0 0.0
        %3639 = vmatprep.subr.mxu0 0.0
        %3640 = vmatpush2.msra.mxu0 0.0
        %3641 = vmatprep.subr.mxu0 0.0
        %3642 = vmatpush2.msra.mxu0 0.0
        %3643 = vmatprep.subr.mxu0 0.0
        %3644 = vmatpush2.msra.mxu0 0.0
        %3645 = vmatprep.subr.mxu0 0.0
        %3646 = vmatpush2.msra.mxu0 0.0
        %3647 = vmatprep.subr.mxu0 0.0
        %3648 = vmatpush2.msra.mxu0 0.0
        %3649 = vmatprep.subr.mxu0 0.0
        %3650 = vmatpush2.msra.mxu0 0.0
        %3651 = vmatprep.subr.mxu0 0.0
        %3652 = vmatpush2.msra.mxu0 0.0
        %3653 = vmatprep.subr.mxu0 0.0
        %3654 = vmatpush2.msra.mxu0 0.0
        %3655 = vmatprep.subr.mxu0 0.0
        %3656 = vmatpush2.msra.mxu0 0.0
        %3657 = vmatprep.subr.mxu0 0.0
        %3658 = vmatpush2.msra.mxu0 0.0
        %3659 = vmatprep.subr.mxu0 0.0
        %3660 = vmatpush2.msra.mxu0 0.0
        %3661 = vmatprep.subr.mxu0 0.0
        %3662 = vmatpush2.msra.mxu0 0.0
        %3663 = vmatprep.subr.mxu0 0.0
        %3664 = vmatpush2.msra.mxu0 0.0
        %3665 = vmatprep.subr.mxu0 0.0
        %3666 = vmatpush2.msra.mxu0 0.0
        %3667 = vmatprep.subr.mxu0 0.0
        %3668 = vmatpush2.msra.mxu0 0.0
        %3669 = vmatprep.mubr.f32.mxu0 0.0
        %3670 = vmatmul.mubr.f32.gmra.mxu0 %v3603
        %v3671 = vpop.f32.mrf.mxu0
        %v3672 = vadd.f32 %v3601, %v3671
        %v3673 = vpop.f32.mrf.mxu0
        %3674 = vdwg.mxu0
        %vm3675 = vcmask 60416
        %3676 = vst.msk [vmem:[%s215] sm:$0xf] %vm3675, %v3672
        %s3677 = sand.u32 %s137, 1
        %s3678 = scalar_lea.sflag [#allocation3], %s3677
        %s3679 = sand.u32 %s137, 1
        %s3680 = smul.addr %s3679, 4
        %s3681 = scalar_lea.vmem [#allocation2], %s3680
        // Predicated region
        $region41: #{ggnn_obj_forward.1} parent=39 // pred_check
          %p3682 = pneg %p147
        $region42: #{ggnn_obj_forward.1} parent=39 // pred_check_branch
          %3684 = sbr.rel (%p3682) target = $region44
        $region43: #{ggnn_obj_forward.1} parent=39 // pred_region
          %s3686 = ssub.s32 64, 64
          %3687 = vsyncadd %s3678, %s3686
          %s3688 = smul.addr %s19, 64
          %s3689 = scalar_lea.hbm %s5, %s3688
          %s3691 = sshll.u32 %s3681, 4
          %s3692 = int_to_ptr.vmem [resolvable:$true] %s3691
          %3694 = dma.vmem_to_hbm [thread:$0]  %s3692, 64, %s3689, %s3678
        $region44: #{ggnn_obj_forward.1} parent=39 // pred_fallthru
          _
      $region40: #{ggnn_obj_forward.1} parent=5 // pred_fallthru
        _
      %p3695 = scmp.le.s32.totalorder 2, %s14
      // Predicated region
      $region45: #{ggnn_obj_forward.1} parent=5 // pred_check
        %p3696 = pneg %p3695
      $region46: #{ggnn_obj_forward.1} parent=5 // pred_check_branch
        %3698 = sbr.rel (%p3696) target = $region48
      $region47: #{ggnn_obj_forward.1} parent=5 // pred_region
        %s3699 = ssub.s32 %s14, 2
        // Predicated region
        $region49: #{ggnn_obj_forward.1} parent=47 // pred_check
          %p3700 = pneg %p153
        $region50: #{ggnn_obj_forward.1} parent=47 // pred_check_branch
          %3702 = sbr.rel (%p3700) target = $region52
        $region51: #{ggnn_obj_forward.1} parent=47 // pred_region
          %s3703 = sand.u32 %s138, 1
          %s3704 = scalar_lea.sflag [#allocation3], %s3703
          %s3705 = sand.u32 %s138, 1
          %s3706 = smul.addr %s3705, 4
          %s3707 = scalar_lea.vmem [#allocation2], %s3706
          %3708 = dma.done %s3704, 64
        $region52: #{ggnn_obj_forward.1} parent=47 // pred_fallthru
          _
      $region48: #{ggnn_obj_forward.1} parent=5 // pred_fallthru
        _
    $region6: #{ggnn_obj_forward.1} parent=1 // loop_footer
      %s18 = sadd.s32 1, %s14
    $region7: #{ggnn_obj_forward.1} parent=1 // loop_footer_branch
      %13 = sbr.rel target = $region3
    $region8: #{ggnn_obj_forward.1} parent=1 // loop_exit
      _
    %3709 = vsyncpa [#allocation3], 1
    %s3710 = scalar_lea.sflag [#allocation3], 1
    %3711 = vsyncpa %s3710, 1

</llo_original>
